<compile_context>
chip_gen: v7x
topology: tpu7x:2x2x1
jax: 0.10.0
libtpu: 0.0.40
codegen_flags: <defaults>
</compile_context>

<pallas_src>
import functools

import jax
import jax.numpy as jnp
from jax.experimental import pallas as pl
from jax.experimental.pallas import tpu as pltpu

DIM_X = 3
FILTER_SIZE = 128
LAYER_SIZE = 8          # total linear layers = LAYER_SIZE + 1 (output layer)
ROW_CHUNK = 256         # inner sub-chunk of rows per MXU pass (128 on v5e)


def _round_up(x, m):
    return ((x + m - 1) // m) * m


def _mlp_kernel(x_ref, w0_ref, b0_ref, wh_ref, bh_ref, wo_ref, bo_ref, out_ref):
    """One tile of points through the full MLP (all weights resident in VMEM).

    x_ref:  (tm, 3)            f32
    w0_ref: (3, 128)           f32   (input layer, computed on the VPU)
    b0_ref: (1, 128)           f32
    wh_ref: (7, 128, 128)      bf16  (hidden layers, MXU bf16 / f32 acc)
    bh_ref: (7, 1, 128)        f32
    wo_ref: (128, 128)         bf16  (output layer, zero-padded to lane-dense)
    bo_ref: (1, 128)           f32
    out_ref:(tm, 128)          f32   (only [:, :3] is meaningful)
    """
    rows = x_ref.shape[0]
    n_chunks = rows // ROW_CHUNK            # static

    # Hoist small loop-invariant loads out of the chunk loop.
    w0_c0 = w0_ref[0:1, :]
    w0_c1 = w0_ref[1:2, :]
    w0_c2 = w0_ref[2:3, :]
    b0 = b0_ref[...]
    wo = wo_ref[...]
    bo = bo_ref[...]

    for c in range(n_chunks):               # short, fully static unroll
        r0 = c * ROW_CHUNK
        x = x_ref[pl.ds(r0, ROW_CHUNK), :].astype(jnp.float32)       # (RC, 3)

        # Input layer Linear(3 -> 128) + ReLU as 3 broadcast FMAs on the VPU
        # (avoids padding K=3 up to the full MXU contraction depth).
        h = (x[:, 0:1] * w0_c0 +
             x[:, 1:2] * w0_c1 +
             x[:, 2:3] * w0_c2 + b0)
        h = jnp.maximum(h, 0.0)                                      # (RC, 128) f32

        # Hidden layers: 7 x [Linear(128 -> 128) + ReLU], bf16 MXU, f32 acc.
        for l in range(LAYER_SIZE - 1):
            h = jnp.dot(h.astype(jnp.bfloat16), wh_ref[l],
                        preferred_element_type=jnp.float32) + bh_ref[l]
            h = jnp.maximum(h, 0.0)

        # Output layer Linear(128 -> 3), zero-padded to 128 lanes, no activation.
        out = jnp.dot(h.astype(jnp.bfloat16), wo,
                      preferred_element_type=jnp.float32) + bo
        out_ref[pl.ds(r0, ROW_CHUNK), :] = out.astype(out_ref.dtype)


@functools.partial(jax.jit, static_argnames=("tm",))
def neural_prior_flow(pc1, params, *, tm=1024):
    """Points -> Flow.  pc1: [B, N, 3] -> pred_flow: [B, N, 3]."""
    B, N, _ = pc1.shape
    M = B * N

    # Tile sizing: round tm to the inner chunk, shrink for tiny inputs, and pad
    # M up to a tile multiple (no divisibility assert).  For large point clouds
    # this yields many grid steps, which "parallel" shards across v7x's 2 TCs.
    tm = _round_up(tm, ROW_CHUNK)
    m_min = _round_up(M, ROW_CHUNK)
    tm_eff = min(tm, m_min)
    M_pad = _round_up(M, tm_eff)

    x = pc1.reshape(M, DIM_X).astype(jnp.float32)
    if M_pad != M:
        x = jnp.pad(x, ((0, M_pad - M), (0, 0)))

    # Parameter prep: f32 master weights, bf16 cast once here for the MXU path.
    w0 = params["w0"].astype(jnp.float32)                    # (3, 128)  VPU path
    b0 = params["b0"].astype(jnp.float32)                    # (1, 128)
    wh = params["wh"].astype(jnp.bfloat16)                   # (7, 128, 128)
    bh = params["bh"].astype(jnp.float32)                    # (7, 1, 128)
    wo = jnp.zeros((FILTER_SIZE, FILTER_SIZE), jnp.bfloat16) # (128, 128) lane-dense
    wo = wo.at[:, :DIM_X].set(params["wo"].astype(jnp.bfloat16))
    bo = jnp.zeros((1, FILTER_SIZE), jnp.float32)
    bo = bo.at[:, :DIM_X].set(params["bo"].astype(jnp.float32))

    grid = (M_pad // tm_eff,)

    flops = 2 * M_pad * (DIM_X * FILTER_SIZE
                         + (LAYER_SIZE - 1) * FILTER_SIZE * FILTER_SIZE
                         + FILTER_SIZE * FILTER_SIZE)
    bytes_accessed = (M_pad * DIM_X * 4                       # x in
                      + M_pad * FILTER_SIZE * 4               # out
                      + (LAYER_SIZE - 1) * FILTER_SIZE * FILTER_SIZE * 2
                      + FILTER_SIZE * FILTER_SIZE * 2
                      + DIM_X * FILTER_SIZE * 4
                      + (LAYER_SIZE + 1) * FILTER_SIZE * 4)

    out = pl.pallas_call(
        _mlp_kernel,
        out_shape=jax.ShapeDtypeStruct((M_pad, FILTER_SIZE), jnp.float32),
        grid=grid,
        in_specs=[
            pl.BlockSpec((tm_eff, DIM_X), lambda i: (i, 0)),                 # x tile
            pl.BlockSpec((DIM_X, FILTER_SIZE), lambda i: (0, 0)),            # w0
            pl.BlockSpec((1, FILTER_SIZE), lambda i: (0, 0)),                # b0
            pl.BlockSpec((LAYER_SIZE - 1, FILTER_SIZE, FILTER_SIZE),
                         lambda i: (0, 0, 0)),                               # wh
            pl.BlockSpec((LAYER_SIZE - 1, 1, FILTER_SIZE),
                         lambda i: (0, 0, 0)),                               # bh
            pl.BlockSpec((FILTER_SIZE, FILTER_SIZE), lambda i: (0, 0)),      # wo (padded)
            pl.BlockSpec((1, FILTER_SIZE), lambda i: (0, 0)),                # bo (padded)
        ],
        out_specs=pl.BlockSpec((tm_eff, FILTER_SIZE), lambda i: (i, 0)),
        compiler_params=pltpu.CompilerParams(
            dimension_semantics=("parallel",)),
        cost_estimate=pl.CostEstimate(flops=int(flops), transcendentals=0,
                                      bytes_accessed=int(bytes_accessed)),
    )(x, w0, b0, wh, bh, wo, bo)

    return out[:M, :DIM_X].reshape(B, N, DIM_X).astype(pc1.dtype)


def _xavier_uniform(key, fan_in, fan_out, dtype=jnp.float32):
    # torch.nn.init.xavier_uniform_ on weight (out, in); stored here as (in, out).
    bound = (6.0 / (fan_in + fan_out)) ** 0.5
    return jax.random.uniform(key, (fan_in, fan_out), dtype, -bound, bound)


def init_params(key):
    """Deterministic init matching init_weights(): xavier_uniform weights, zero biases."""
    keys = jax.random.split(key, LAYER_SIZE + 1)
    w0 = _xavier_uniform(keys[0], DIM_X, FILTER_SIZE)
    b0 = jnp.zeros((1, FILTER_SIZE), jnp.float32)
    wh = jnp.stack([_xavier_uniform(keys[1 + l], FILTER_SIZE, FILTER_SIZE)
                    for l in range(LAYER_SIZE - 1)], axis=0)
    bh = jnp.zeros((LAYER_SIZE - 1, 1, FILTER_SIZE), jnp.float32)
    wo = _xavier_uniform(keys[LAYER_SIZE], FILTER_SIZE, DIM_X)
    bo = jnp.zeros((1, DIM_X), jnp.float32)
    return {"w0": w0, "b0": b0, "wh": wh, "bh": bh, "wo": wo, "bo": bo}


def reference_mlp(pc1, params):
    """Pure-JAX f32 reference of the same MLP (for correctness check)."""
    h = jnp.maximum(pc1 @ params["w0"] + params["b0"][0], 0.0)
    for l in range(LAYER_SIZE - 1):
        h = jnp.maximum(h @ params["wh"][l] + params["bh"][l, 0], 0.0)
    return h @ params["wo"] + params["bo"][0]


# TODO(synk): the outer forward() optimisation loop (500 Adam steps), DBSCAN
# clustering, DT bilinear-distance loss and center_rigidity_loss are host /
# driver logic and external deps with no single-kernel Pallas equivalent.

if __name__ == "__main__":
    key = jax.random.PRNGKey(0)
    k_params, k_pts = jax.random.split(key)

    params = init_params(k_params)

    # data['pc1'][:1] -> B=1 point cloud; N=300 is deliberately NOT a tile
    # multiple so the padding/slicing path is exercised.
    B, N = 1, 300
    pc1 = jax.random.normal(k_pts, (B, N, DIM_X), jnp.float32)

    pred_flow = neural_prior_flow(pc1, params)
    pred_flow = jax.block_until_ready(pred_flow)

    ref = reference_mlp(pc1, params)
    assert pred_flow.shape == (B, N, DIM_X)
    # bf16 hidden-layer matmuls vs. the f32 reference -> loosened tolerance.
    assert jnp.allclose(pred_flow, ref, atol=2e-2, rtol=2e-2), "mismatch vs reference"

    print("KERNEL_OK")
</pallas_src>

<mosaic_0001>
module attributes {stable_mosaic.version = 11 : i64} {
  func.func @_mlp_kernel(%arg0: i32, %arg1: memref<512x3xf32, #tpu.memory_space<vmem>>, %arg2: memref<3x128xf32, #tpu.memory_space<vmem>>, %arg3: memref<1x128xf32, #tpu.memory_space<vmem>>, %arg4: memref<7x128x128xbf16, #tpu.memory_space<vmem>>, %arg5: memref<7x1x128xf32, #tpu.memory_space<vmem>>, %arg6: memref<128x128xbf16, #tpu.memory_space<vmem>>, %arg7: memref<1x128xf32, #tpu.memory_space<vmem>>, %arg8: memref<512x128xf32, #tpu.memory_space<vmem>>) attributes {dimension_semantics = [#tpu.dimension_semantics<parallel>], iteration_bounds = array<i64: 1>, scalar_prefetch = 0 : i64, scratch_operands = 0 : i64, tpu.core_type = #tpu.core_type<tc>, window_params = [{transform_indices = @transform_0, window_bounds = array<i64: 512, 3>}, {pipeline_mode = #tpu.pipeline_mode<synchronous>, transform_indices = @transform_1, window_bounds = array<i64: 3, 128>}, {pipeline_mode = #tpu.pipeline_mode<synchronous>, transform_indices = @transform_2, window_bounds = array<i64: 1, 128>}, {pipeline_mode = #tpu.pipeline_mode<synchronous>, transform_indices = @transform_3, window_bounds = array<i64: 7, 128, 128>}, {pipeline_mode = #tpu.pipeline_mode<synchronous>, transform_indices = @transform_4, window_bounds = array<i64: 7, 1, 128>}, {pipeline_mode = #tpu.pipeline_mode<synchronous>, transform_indices = @transform_5, window_bounds = array<i64: 128, 128>}, {pipeline_mode = #tpu.pipeline_mode<synchronous>, transform_indices = @transform_6, window_bounds = array<i64: 1, 128>}, {transform_indices = @transform_7, window_bounds = array<i64: 512, 128>}]} {
    %c0 = arith.constant 0 : index
    %c0_0 = arith.constant 0 : index
    %0 = vector.load %arg2[%c0, %c0_0] : memref<3x128xf32, #tpu.memory_space<vmem>>, vector<1x128xf32>
    %c1 = arith.constant 1 : index
    %c0_1 = arith.constant 0 : index
    %1 = vector.load %arg2[%c1, %c0_1] : memref<3x128xf32, #tpu.memory_space<vmem>>, vector<1x128xf32>
    %c2 = arith.constant 2 : index
    %c0_2 = arith.constant 0 : index
    %2 = vector.load %arg2[%c2, %c0_2] : memref<3x128xf32, #tpu.memory_space<vmem>>, vector<1x128xf32>
    %c0_3 = arith.constant 0 : index
    %c0_4 = arith.constant 0 : index
    %3 = vector.load %arg3[%c0_3, %c0_4] : memref<1x128xf32, #tpu.memory_space<vmem>>, vector<1x128xf32>
    %c0_5 = arith.constant 0 : index
    %c0_6 = arith.constant 0 : index
    %4 = vector.load %arg6[%c0_5, %c0_6] : memref<128x128xbf16, #tpu.memory_space<vmem>>, vector<128x128xbf16>
    %c0_7 = arith.constant 0 : index
    %c0_8 = arith.constant 0 : index
    %5 = vector.load %arg7[%c0_7, %c0_8] : memref<1x128xf32, #tpu.memory_space<vmem>>, vector<1x128xf32>
    %c0_9 = arith.constant 0 : index
    %c0_10 = arith.constant 0 : index
    %6 = vector.load %arg1[%c0_9, %c0_10] : memref<512x3xf32, #tpu.memory_space<vmem>>, vector<256x3xf32>
    %7 = vector.extract_strided_slice %6 {offsets = [0, 0], sizes = [256, 1], strides = [1, 1]} : vector<256x3xf32> to vector<256x1xf32>
    %8 = vector.broadcast %7 : vector<256x1xf32> to vector<256x128xf32>
    %9 = vector.broadcast %0 : vector<1x128xf32> to vector<256x128xf32>
    %10 = arith.mulf %8, %9 : vector<256x128xf32>
    %11 = vector.extract_strided_slice %6 {offsets = [0, 1], sizes = [256, 1], strides = [1, 1]} : vector<256x3xf32> to vector<256x1xf32>
    %12 = vector.broadcast %11 : vector<256x1xf32> to vector<256x128xf32>
    %13 = vector.broadcast %1 : vector<1x128xf32> to vector<256x128xf32>
    %14 = arith.mulf %12, %13 : vector<256x128xf32>
    %15 = arith.addf %10, %14 : vector<256x128xf32>
    %16 = vector.extract_strided_slice %6 {offsets = [0, 2], sizes = [256, 1], strides = [1, 1]} : vector<256x3xf32> to vector<256x1xf32>
    %17 = vector.broadcast %16 : vector<256x1xf32> to vector<256x128xf32>
    %18 = vector.broadcast %2 : vector<1x128xf32> to vector<256x128xf32>
    %19 = arith.mulf %17, %18 : vector<256x128xf32>
    %20 = arith.addf %15, %19 : vector<256x128xf32>
    %21 = vector.broadcast %3 : vector<1x128xf32> to vector<256x128xf32>
    %22 = arith.addf %20, %21 : vector<256x128xf32>
    %cst = arith.constant 0.000000e+00 : f32
    %23 = vector.broadcast %cst : f32 to vector<256x128xf32>
    %24 = arith.maximumf %22, %23 : vector<256x128xf32>
    %25 = arith.truncf %24 : vector<256x128xf32> to vector<256x128xbf16>
    %c0_11 = arith.constant 0 : index
    %c0_12 = arith.constant 0 : index
    %c0_13 = arith.constant 0 : index
    %26 = vector.load %arg4[%c0_11, %c0_12, %c0_13] : memref<7x128x128xbf16, #tpu.memory_space<vmem>>, vector<1x128x128xbf16>
    %27 = vector.shape_cast %26 : vector<1x128x128xbf16> to vector<128x128xbf16>
    %cst_14 = arith.constant dense<0.000000e+00> : vector<256x128xf32>
    %28 = tpu.matmul %25, %27, %cst_14 {dimension_numbers = #tpu.dot_dimension_numbers<[1], [0], [0], [1], [0, 0, 1, 1], [], []>} : vector<256x128xbf16>, vector<128x128xbf16>, vector<256x128xf32> -> vector<256x128xf32>
    %c0_15 = arith.constant 0 : index
    %c0_16 = arith.constant 0 : index
    %c0_17 = arith.constant 0 : index
    %29 = vector.load %arg5[%c0_15, %c0_16, %c0_17] : memref<7x1x128xf32, #tpu.memory_space<vmem>>, vector<1x1x128xf32>
    %30 = vector.shape_cast %29 : vector<1x1x128xf32> to vector<1x128xf32>
    %31 = vector.broadcast %30 : vector<1x128xf32> to vector<256x128xf32>
    %32 = arith.addf %28, %31 : vector<256x128xf32>
    %cst_18 = arith.constant 0.000000e+00 : f32
    %33 = vector.broadcast %cst_18 : f32 to vector<256x128xf32>
    %34 = arith.maximumf %32, %33 : vector<256x128xf32>
    %35 = arith.truncf %34 : vector<256x128xf32> to vector<256x128xbf16>
    %c1_19 = arith.constant 1 : index
    %c0_20 = arith.constant 0 : index
    %c0_21 = arith.constant 0 : index
    %36 = vector.load %arg4[%c1_19, %c0_20, %c0_21] : memref<7x128x128xbf16, #tpu.memory_space<vmem>>, vector<1x128x128xbf16>
    %37 = vector.shape_cast %36 : vector<1x128x128xbf16> to vector<128x128xbf16>
    %cst_22 = arith.constant dense<0.000000e+00> : vector<256x128xf32>
    %38 = tpu.matmul %35, %37, %cst_22 {dimension_numbers = #tpu.dot_dimension_numbers<[1], [0], [0], [1], [0, 0, 1, 1], [], []>} : vector<256x128xbf16>, vector<128x128xbf16>, vector<256x128xf32> -> vector<256x128xf32>
    %c1_23 = arith.constant 1 : index
    %c0_24 = arith.constant 0 : index
    %c0_25 = arith.constant 0 : index
    %39 = vector.load %arg5[%c1_23, %c0_24, %c0_25] : memref<7x1x128xf32, #tpu.memory_space<vmem>>, vector<1x1x128xf32>
    %40 = vector.shape_cast %39 : vector<1x1x128xf32> to vector<1x128xf32>
    %41 = vector.broadcast %40 : vector<1x128xf32> to vector<256x128xf32>
    %42 = arith.addf %38, %41 : vector<256x128xf32>
    %cst_26 = arith.constant 0.000000e+00 : f32
    %43 = vector.broadcast %cst_26 : f32 to vector<256x128xf32>
    %44 = arith.maximumf %42, %43 : vector<256x128xf32>
    %45 = arith.truncf %44 : vector<256x128xf32> to vector<256x128xbf16>
    %c2_27 = arith.constant 2 : index
    %c0_28 = arith.constant 0 : index
    %c0_29 = arith.constant 0 : index
    %46 = vector.load %arg4[%c2_27, %c0_28, %c0_29] : memref<7x128x128xbf16, #tpu.memory_space<vmem>>, vector<1x128x128xbf16>
    %47 = vector.shape_cast %46 : vector<1x128x128xbf16> to vector<128x128xbf16>
    %cst_30 = arith.constant dense<0.000000e+00> : vector<256x128xf32>
    %48 = tpu.matmul %45, %47, %cst_30 {dimension_numbers = #tpu.dot_dimension_numbers<[1], [0], [0], [1], [0, 0, 1, 1], [], []>} : vector<256x128xbf16>, vector<128x128xbf16>, vector<256x128xf32> -> vector<256x128xf32>
    %c2_31 = arith.constant 2 : index
    %c0_32 = arith.constant 0 : index
    %c0_33 = arith.constant 0 : index
    %49 = vector.load %arg5[%c2_31, %c0_32, %c0_33] : memref<7x1x128xf32, #tpu.memory_space<vmem>>, vector<1x1x128xf32>
    %50 = vector.shape_cast %49 : vector<1x1x128xf32> to vector<1x128xf32>
    %51 = vector.broadcast %50 : vector<1x128xf32> to vector<256x128xf32>
    %52 = arith.addf %48, %51 : vector<256x128xf32>
    %cst_34 = arith.constant 0.000000e+00 : f32
    %53 = vector.broadcast %cst_34 : f32 to vector<256x128xf32>
    %54 = arith.maximumf %52, %53 : vector<256x128xf32>
    %55 = arith.truncf %54 : vector<256x128xf32> to vector<256x128xbf16>
    %c3 = arith.constant 3 : index
    %c0_35 = arith.constant 0 : index
    %c0_36 = arith.constant 0 : index
    %56 = vector.load %arg4[%c3, %c0_35, %c0_36] : memref<7x128x128xbf16, #tpu.memory_space<vmem>>, vector<1x128x128xbf16>
    %57 = vector.shape_cast %56 : vector<1x128x128xbf16> to vector<128x128xbf16>
    %cst_37 = arith.constant dense<0.000000e+00> : vector<256x128xf32>
    %58 = tpu.matmul %55, %57, %cst_37 {dimension_numbers = #tpu.dot_dimension_numbers<[1], [0], [0], [1], [0, 0, 1, 1], [], []>} : vector<256x128xbf16>, vector<128x128xbf16>, vector<256x128xf32> -> vector<256x128xf32>
    %c3_38 = arith.constant 3 : index
    %c0_39 = arith.constant 0 : index
    %c0_40 = arith.constant 0 : index
    %59 = vector.load %arg5[%c3_38, %c0_39, %c0_40] : memref<7x1x128xf32, #tpu.memory_space<vmem>>, vector<1x1x128xf32>
    %60 = vector.shape_cast %59 : vector<1x1x128xf32> to vector<1x128xf32>
    %61 = vector.broadcast %60 : vector<1x128xf32> to vector<256x128xf32>
    %62 = arith.addf %58, %61 : vector<256x128xf32>
    %cst_41 = arith.constant 0.000000e+00 : f32
    %63 = vector.broadcast %cst_41 : f32 to vector<256x128xf32>
    %64 = arith.maximumf %62, %63 : vector<256x128xf32>
    %65 = arith.truncf %64 : vector<256x128xf32> to vector<256x128xbf16>
    %c4 = arith.constant 4 : index
    %c0_42 = arith.constant 0 : index
    %c0_43 = arith.constant 0 : index
    %66 = vector.load %arg4[%c4, %c0_42, %c0_43] : memref<7x128x128xbf16, #tpu.memory_space<vmem>>, vector<1x128x128xbf16>
    %67 = vector.shape_cast %66 : vector<1x128x128xbf16> to vector<128x128xbf16>
    %cst_44 = arith.constant dense<0.000000e+00> : vector<256x128xf32>
    %68 = tpu.matmul %65, %67, %cst_44 {dimension_numbers = #tpu.dot_dimension_numbers<[1], [0], [0], [1], [0, 0, 1, 1], [], []>} : vector<256x128xbf16>, vector<128x128xbf16>, vector<256x128xf32> -> vector<256x128xf32>
    %c4_45 = arith.constant 4 : index
    %c0_46 = arith.constant 0 : index
    %c0_47 = arith.constant 0 : index
    %69 = vector.load %arg5[%c4_45, %c0_46, %c0_47] : memref<7x1x128xf32, #tpu.memory_space<vmem>>, vector<1x1x128xf32>
    %70 = vector.shape_cast %69 : vector<1x1x128xf32> to vector<1x128xf32>
    %71 = vector.broadcast %70 : vector<1x128xf32> to vector<256x128xf32>
    %72 = arith.addf %68, %71 : vector<256x128xf32>
    %cst_48 = arith.constant 0.000000e+00 : f32
    %73 = vector.broadcast %cst_48 : f32 to vector<256x128xf32>
    %74 = arith.maximumf %72, %73 : vector<256x128xf32>
    %75 = arith.truncf %74 : vector<256x128xf32> to vector<256x128xbf16>
    %c5 = arith.constant 5 : index
    %c0_49 = arith.constant 0 : index
    %c0_50 = arith.constant 0 : index
    %76 = vector.load %arg4[%c5, %c0_49, %c0_50] : memref<7x128x128xbf16, #tpu.memory_space<vmem>>, vector<1x128x128xbf16>
    %77 = vector.shape_cast %76 : vector<1x128x128xbf16> to vector<128x128xbf16>
    %cst_51 = arith.constant dense<0.000000e+00> : vector<256x128xf32>
    %78 = tpu.matmul %75, %77, %cst_51 {dimension_numbers = #tpu.dot_dimension_numbers<[1], [0], [0], [1], [0, 0, 1, 1], [], []>} : vector<256x128xbf16>, vector<128x128xbf16>, vector<256x128xf32> -> vector<256x128xf32>
    %c5_52 = arith.constant 5 : index
    %c0_53 = arith.constant 0 : index
    %c0_54 = arith.constant 0 : index
    %79 = vector.load %arg5[%c5_52, %c0_53, %c0_54] : memref<7x1x128xf32, #tpu.memory_space<vmem>>, vector<1x1x128xf32>
    %80 = vector.shape_cast %79 : vector<1x1x128xf32> to vector<1x128xf32>
    %81 = vector.broadcast %80 : vector<1x128xf32> to vector<256x128xf32>
    %82 = arith.addf %78, %81 : vector<256x128xf32>
    %cst_55 = arith.constant 0.000000e+00 : f32
    %83 = vector.broadcast %cst_55 : f32 to vector<256x128xf32>
    %84 = arith.maximumf %82, %83 : vector<256x128xf32>
    %85 = arith.truncf %84 : vector<256x128xf32> to vector<256x128xbf16>
    %c6 = arith.constant 6 : index
    %c0_56 = arith.constant 0 : index
    %c0_57 = arith.constant 0 : index
    %86 = vector.load %arg4[%c6, %c0_56, %c0_57] : memref<7x128x128xbf16, #tpu.memory_space<vmem>>, vector<1x128x128xbf16>
    %87 = vector.shape_cast %86 : vector<1x128x128xbf16> to vector<128x128xbf16>
    %cst_58 = arith.constant dense<0.000000e+00> : vector<256x128xf32>
    %88 = tpu.matmul %85, %87, %cst_58 {dimension_numbers = #tpu.dot_dimension_numbers<[1], [0], [0], [1], [0, 0, 1, 1], [], []>} : vector<256x128xbf16>, vector<128x128xbf16>, vector<256x128xf32> -> vector<256x128xf32>
    %c6_59 = arith.constant 6 : index
    %c0_60 = arith.constant 0 : index
    %c0_61 = arith.constant 0 : index
    %89 = vector.load %arg5[%c6_59, %c0_60, %c0_61] : memref<7x1x128xf32, #tpu.memory_space<vmem>>, vector<1x1x128xf32>
    %90 = vector.shape_cast %89 : vector<1x1x128xf32> to vector<1x128xf32>
    %91 = vector.broadcast %90 : vector<1x128xf32> to vector<256x128xf32>
    %92 = arith.addf %88, %91 : vector<256x128xf32>
    %cst_62 = arith.constant 0.000000e+00 : f32
    %93 = vector.broadcast %cst_62 : f32 to vector<256x128xf32>
    %94 = arith.maximumf %92, %93 : vector<256x128xf32>
    %95 = arith.truncf %94 : vector<256x128xf32> to vector<256x128xbf16>
    %cst_63 = arith.constant dense<0.000000e+00> : vector<256x128xf32>
    %96 = tpu.matmul %95, %4, %cst_63 {dimension_numbers = #tpu.dot_dimension_numbers<[1], [0], [0], [1], [0, 0, 1, 1], [], []>} : vector<256x128xbf16>, vector<128x128xbf16>, vector<256x128xf32> -> vector<256x128xf32>
    %97 = vector.broadcast %5 : vector<1x128xf32> to vector<256x128xf32>
    %98 = arith.addf %96, %97 : vector<256x128xf32>
    %c0_64 = arith.constant 0 : index
    %c0_65 = arith.constant 0 : index
    %99 = vector.load %arg8[%c0_64, %c0_65] : memref<512x128xf32, #tpu.memory_space<vmem>>, vector<256x128xf32>
    tpu.vector_store %arg8[%c0_64, %c0_65], %98 {strides = array<i32>} : memref<512x128xf32, #tpu.memory_space<vmem>>, vector<256x128xf32>,
    %c256 = arith.constant 256 : index
    %c0_66 = arith.constant 0 : index
    %100 = vector.load %arg1[%c256, %c0_66] : memref<512x3xf32, #tpu.memory_space<vmem>>, vector<256x3xf32>
    %101 = vector.extract_strided_slice %100 {offsets = [0, 0], sizes = [256, 1], strides = [1, 1]} : vector<256x3xf32> to vector<256x1xf32>
    %102 = vector.broadcast %101 : vector<256x1xf32> to vector<256x128xf32>
    %103 = vector.broadcast %0 : vector<1x128xf32> to vector<256x128xf32>
    %104 = arith.mulf %102, %103 : vector<256x128xf32>
    %105 = vector.extract_strided_slice %100 {offsets = [0, 1], sizes = [256, 1], strides = [1, 1]} : vector<256x3xf32> to vector<256x1xf32>
    %106 = vector.broadcast %105 : vector<256x1xf32> to vector<256x128xf32>
    %107 = vector.broadcast %1 : vector<1x128xf32> to vector<256x128xf32>
    %108 = arith.mulf %106, %107 : vector<256x128xf32>
    %109 = arith.addf %104, %108 : vector<256x128xf32>
    %110 = vector.extract_strided_slice %100 {offsets = [0, 2], sizes = [256, 1], strides = [1, 1]} : vector<256x3xf32> to vector<256x1xf32>
    %111 = vector.broadcast %110 : vector<256x1xf32> to vector<256x128xf32>
    %112 = vector.broadcast %2 : vector<1x128xf32> to vector<256x128xf32>
    %113 = arith.mulf %111, %112 : vector<256x128xf32>
    %114 = arith.addf %109, %113 : vector<256x128xf32>
    %115 = vector.broadcast %3 : vector<1x128xf32> to vector<256x128xf32>
    %116 = arith.addf %114, %115 : vector<256x128xf32>
    %cst_67 = arith.constant 0.000000e+00 : f32
    %117 = vector.broadcast %cst_67 : f32 to vector<256x128xf32>
    %118 = arith.maximumf %116, %117 : vector<256x128xf32>
    %119 = arith.truncf %118 : vector<256x128xf32> to vector<256x128xbf16>
    %c0_68 = arith.constant 0 : index
    %c0_69 = arith.constant 0 : index
    %c0_70 = arith.constant 0 : index
    %120 = vector.load %arg4[%c0_68, %c0_69, %c0_70] : memref<7x128x128xbf16, #tpu.memory_space<vmem>>, vector<1x128x128xbf16>
    %121 = vector.shape_cast %120 : vector<1x128x128xbf16> to vector<128x128xbf16>
    %cst_71 = arith.constant dense<0.000000e+00> : vector<256x128xf32>
    %122 = tpu.matmul %119, %121, %cst_71 {dimension_numbers = #tpu.dot_dimension_numbers<[1], [0], [0], [1], [0, 0, 1, 1], [], []>} : vector<256x128xbf16>, vector<128x128xbf16>, vector<256x128xf32> -> vector<256x128xf32>
    %c0_72 = arith.constant 0 : index
    %c0_73 = arith.constant 0 : index
    %c0_74 = arith.constant 0 : index
    %123 = vector.load %arg5[%c0_72, %c0_73, %c0_74] : memref<7x1x128xf32, #tpu.memory_space<vmem>>, vector<1x1x128xf32>
    %124 = vector.shape_cast %123 : vector<1x1x128xf32> to vector<1x128xf32>
    %125 = vector.broadcast %124 : vector<1x128xf32> to vector<256x128xf32>
    %126 = arith.addf %122, %125 : vector<256x128xf32>
    %cst_75 = arith.constant 0.000000e+00 : f32
    %127 = vector.broadcast %cst_75 : f32 to vector<256x128xf32>
    %128 = arith.maximumf %126, %127 : vector<256x128xf32>
    %129 = arith.truncf %128 : vector<256x128xf32> to vector<256x128xbf16>
    %c1_76 = arith.constant 1 : index
    %c0_77 = arith.constant 0 : index
    %c0_78 = arith.constant 0 : index
    %130 = vector.load %arg4[%c1_76, %c0_77, %c0_78] : memref<7x128x128xbf16, #tpu.memory_space<vmem>>, vector<1x128x128xbf16>
    %131 = vector.shape_cast %130 : vector<1x128x128xbf16> to vector<128x128xbf16>
    %cst_79 = arith.constant dense<0.000000e+00> : vector<256x128xf32>
    %132 = tpu.matmul %129, %131, %cst_79 {dimension_numbers = #tpu.dot_dimension_numbers<[1], [0], [0], [1], [0, 0, 1, 1], [], []>} : vector<256x128xbf16>, vector<128x128xbf16>, vector<256x128xf32> -> vector<256x128xf32>
    %c1_80 = arith.constant 1 : index
    %c0_81 = arith.constant 0 : index
    %c0_82 = arith.constant 0 : index
    %133 = vector.load %arg5[%c1_80, %c0_81, %c0_82] : memref<7x1x128xf32, #tpu.memory_space<vmem>>, vector<1x1x128xf32>
    %134 = vector.shape_cast %133 : vector<1x1x128xf32> to vector<1x128xf32>
    %135 = vector.broadcast %134 : vector<1x128xf32> to vector<256x128xf32>
    %136 = arith.addf %132, %135 : vector<256x128xf32>
    %cst_83 = arith.constant 0.000000e+00 : f32
    %137 = vector.broadcast %cst_83 : f32 to vector<256x128xf32>
    %138 = arith.maximumf %136, %137 : vector<256x128xf32>
    %139 = arith.truncf %138 : vector<256x128xf32> to vector<256x128xbf16>
    %c2_84 = arith.constant 2 : index
    %c0_85 = arith.constant 0 : index
    %c0_86 = arith.constant 0 : index
    %140 = vector.load %arg4[%c2_84, %c0_85, %c0_86] : memref<7x128x128xbf16, #tpu.memory_space<vmem>>, vector<1x128x128xbf16>
    %141 = vector.shape_cast %140 : vector<1x128x128xbf16> to vector<128x128xbf16>
    %cst_87 = arith.constant dense<0.000000e+00> : vector<256x128xf32>
    %142 = tpu.matmul %139, %141, %cst_87 {dimension_numbers = #tpu.dot_dimension_numbers<[1], [0], [0], [1], [0, 0, 1, 1], [], []>} : vector<256x128xbf16>, vector<128x128xbf16>, vector<256x128xf32> -> vector<256x128xf32>
    %c2_88 = arith.constant 2 : index
    %c0_89 = arith.constant 0 : index
    %c0_90 = arith.constant 0 : index
    %143 = vector.load %arg5[%c2_88, %c0_89, %c0_90] : memref<7x1x128xf32, #tpu.memory_space<vmem>>, vector<1x1x128xf32>
    %144 = vector.shape_cast %143 : vector<1x1x128xf32> to vector<1x128xf32>
    %145 = vector.broadcast %144 : vector<1x128xf32> to vector<256x128xf32>
    %146 = arith.addf %142, %145 : vector<256x128xf32>
    %cst_91 = arith.constant 0.000000e+00 : f32
    %147 = vector.broadcast %cst_91 : f32 to vector<256x128xf32>
    %148 = arith.maximumf %146, %147 : vector<256x128xf32>
    %149 = arith.truncf %148 : vector<256x128xf32> to vector<256x128xbf16>
    %c3_92 = arith.constant 3 : index
    %c0_93 = arith.constant 0 : index
    %c0_94 = arith.constant 0 : index
    %150 = vector.load %arg4[%c3_92, %c0_93, %c0_94] : memref<7x128x128xbf16, #tpu.memory_space<vmem>>, vector<1x128x128xbf16>
    %151 = vector.shape_cast %150 : vector<1x128x128xbf16> to vector<128x128xbf16>
    %cst_95 = arith.constant dense<0.000000e+00> : vector<256x128xf32>
    %152 = tpu.matmul %149, %151, %cst_95 {dimension_numbers = #tpu.dot_dimension_numbers<[1], [0], [0], [1], [0, 0, 1, 1], [], []>} : vector<256x128xbf16>, vector<128x128xbf16>, vector<256x128xf32> -> vector<256x128xf32>
    %c3_96 = arith.constant 3 : index
    %c0_97 = arith.constant 0 : index
    %c0_98 = arith.constant 0 : index
    %153 = vector.load %arg5[%c3_96, %c0_97, %c0_98] : memref<7x1x128xf32, #tpu.memory_space<vmem>>, vector<1x1x128xf32>
    %154 = vector.shape_cast %153 : vector<1x1x128xf32> to vector<1x128xf32>
    %155 = vector.broadcast %154 : vector<1x128xf32> to vector<256x128xf32>
    %156 = arith.addf %152, %155 : vector<256x128xf32>
    %cst_99 = arith.constant 0.000000e+00 : f32
    %157 = vector.broadcast %cst_99 : f32 to vector<256x128xf32>
    %158 = arith.maximumf %156, %157 : vector<256x128xf32>
    %159 = arith.truncf %158 : vector<256x128xf32> to vector<256x128xbf16>
    %c4_100 = arith.constant 4 : index
    %c0_101 = arith.constant 0 : index
    %c0_102 = arith.constant 0 : index
    %160 = vector.load %arg4[%c4_100, %c0_101, %c0_102] : memref<7x128x128xbf16, #tpu.memory_space<vmem>>, vector<1x128x128xbf16>
    %161 = vector.shape_cast %160 : vector<1x128x128xbf16> to vector<128x128xbf16>
    %cst_103 = arith.constant dense<0.000000e+00> : vector<256x128xf32>
    %162 = tpu.matmul %159, %161, %cst_103 {dimension_numbers = #tpu.dot_dimension_numbers<[1], [0], [0], [1], [0, 0, 1, 1], [], []>} : vector<256x128xbf16>, vector<128x128xbf16>, vector<256x128xf32> -> vector<256x128xf32>
    %c4_104 = arith.constant 4 : index
    %c0_105 = arith.constant 0 : index
    %c0_106 = arith.constant 0 : index
    %163 = vector.load %arg5[%c4_104, %c0_105, %c0_106] : memref<7x1x128xf32, #tpu.memory_space<vmem>>, vector<1x1x128xf32>
    %164 = vector.shape_cast %163 : vector<1x1x128xf32> to vector<1x128xf32>
    %165 = vector.broadcast %164 : vector<1x128xf32> to vector<256x128xf32>
    %166 = arith.addf %162, %165 : vector<256x128xf32>
    %cst_107 = arith.constant 0.000000e+00 : f32
    %167 = vector.broadcast %cst_107 : f32 to vector<256x128xf32>
    %168 = arith.maximumf %166, %167 : vector<256x128xf32>
    %169 = arith.truncf %168 : vector<256x128xf32> to vector<256x128xbf16>
    %c5_108 = arith.constant 5 : index
    %c0_109 = arith.constant 0 : index
    %c0_110 = arith.constant 0 : index
    %170 = vector.load %arg4[%c5_108, %c0_109, %c0_110] : memref<7x128x128xbf16, #tpu.memory_space<vmem>>, vector<1x128x128xbf16>
    %171 = vector.shape_cast %170 : vector<1x128x128xbf16> to vector<128x128xbf16>
    %cst_111 = arith.constant dense<0.000000e+00> : vector<256x128xf32>
    %172 = tpu.matmul %169, %171, %cst_111 {dimension_numbers = #tpu.dot_dimension_numbers<[1], [0], [0], [1], [0, 0, 1, 1], [], []>} : vector<256x128xbf16>, vector<128x128xbf16>, vector<256x128xf32> -> vector<256x128xf32>
    %c5_112 = arith.constant 5 : index
    %c0_113 = arith.constant 0 : index
    %c0_114 = arith.constant 0 : index
    %173 = vector.load %arg5[%c5_112, %c0_113, %c0_114] : memref<7x1x128xf32, #tpu.memory_space<vmem>>, vector<1x1x128xf32>
    %174 = vector.shape_cast %173 : vector<1x1x128xf32> to vector<1x128xf32>
    %175 = vector.broadcast %174 : vector<1x128xf32> to vector<256x128xf32>
    %176 = arith.addf %172, %175 : vector<256x128xf32>
    %cst_115 = arith.constant 0.000000e+00 : f32
    %177 = vector.broadcast %cst_115 : f32 to vector<256x128xf32>
    %178 = arith.maximumf %176, %177 : vector<256x128xf32>
    %179 = arith.truncf %178 : vector<256x128xf32> to vector<256x128xbf16>
    %c6_116 = arith.constant 6 : index
    %c0_117 = arith.constant 0 : index
    %c0_118 = arith.constant 0 : index
    %180 = vector.load %arg4[%c6_116, %c0_117, %c0_118] : memref<7x128x128xbf16, #tpu.memory_space<vmem>>, vector<1x128x128xbf16>
    %181 = vector.shape_cast %180 : vector<1x128x128xbf16> to vector<128x128xbf16>
    %cst_119 = arith.constant dense<0.000000e+00> : vector<256x128xf32>
    %182 = tpu.matmul %179, %181, %cst_119 {dimension_numbers = #tpu.dot_dimension_numbers<[1], [0], [0], [1], [0, 0, 1, 1], [], []>} : vector<256x128xbf16>, vector<128x128xbf16>, vector<256x128xf32> -> vector<256x128xf32>
    %c6_120 = arith.constant 6 : index
    %c0_121 = arith.constant 0 : index
    %c0_122 = arith.constant 0 : index
    %183 = vector.load %arg5[%c6_120, %c0_121, %c0_122] : memref<7x1x128xf32, #tpu.memory_space<vmem>>, vector<1x1x128xf32>
    %184 = vector.shape_cast %183 : vector<1x1x128xf32> to vector<1x128xf32>
    %185 = vector.broadcast %184 : vector<1x128xf32> to vector<256x128xf32>
    %186 = arith.addf %182, %185 : vector<256x128xf32>
    %cst_123 = arith.constant 0.000000e+00 : f32
    %187 = vector.broadcast %cst_123 : f32 to vector<256x128xf32>
    %188 = arith.maximumf %186, %187 : vector<256x128xf32>
    %189 = arith.truncf %188 : vector<256x128xf32> to vector<256x128xbf16>
    %cst_124 = arith.constant dense<0.000000e+00> : vector<256x128xf32>
    %190 = tpu.matmul %189, %4, %cst_124 {dimension_numbers = #tpu.dot_dimension_numbers<[1], [0], [0], [1], [0, 0, 1, 1], [], []>} : vector<256x128xbf16>, vector<128x128xbf16>, vector<256x128xf32> -> vector<256x128xf32>
    %191 = vector.broadcast %5 : vector<1x128xf32> to vector<256x128xf32>
    %192 = arith.addf %190, %191 : vector<256x128xf32>
    %c256_125 = arith.constant 256 : index
    %c0_126 = arith.constant 0 : index
    %193 = vector.load %arg8[%c256_125, %c0_126] : memref<512x128xf32, #tpu.memory_space<vmem>>, vector<256x128xf32>
    tpu.vector_store %arg8[%c256_125, %c0_126], %192 {strides = array<i32>} : memref<512x128xf32, #tpu.memory_space<vmem>>, vector<256x128xf32>,
    return
  }
  func.func @transform_0(%arg0: i32) -> (i32, i32) {
    %c0_i32 = arith.constant 0 : i32
    %c0_i32_0 = arith.constant 0 : i32
    return %arg0, %c0_i32 : i32, i32
  }
  func.func @transform_1(%arg0: i32) -> (i32, i32) {
    %c0_i32 = arith.constant 0 : i32
    %c0_i32_0 = arith.constant 0 : i32
    %c0_i32_1 = arith.constant 0 : i32
    return %c0_i32, %c0_i32_0 : i32, i32
  }
  func.func @transform_2(%arg0: i32) -> (i32, i32) {
    %c0_i32 = arith.constant 0 : i32
    %c0_i32_0 = arith.constant 0 : i32
    %c0_i32_1 = arith.constant 0 : i32
    return %c0_i32, %c0_i32_0 : i32, i32
  }
  func.func @transform_3(%arg0: i32) -> (i32, i32, i32) {
    %c0_i32 = arith.constant 0 : i32
    %c0_i32_0 = arith.constant 0 : i32
    %c0_i32_1 = arith.constant 0 : i32
    %c0_i32_2 = arith.constant 0 : i32
    return %c0_i32, %c0_i32_0, %c0_i32_1 : i32, i32, i32
  }
  func.func @transform_4(%arg0: i32) -> (i32, i32, i32) {
    %c0_i32 = arith.constant 0 : i32
    %c0_i32_0 = arith.constant 0 : i32
    %c0_i32_1 = arith.constant 0 : i32
    %c0_i32_2 = arith.constant 0 : i32
    return %c0_i32, %c0_i32_0, %c0_i32_1 : i32, i32, i32
  }
  func.func @transform_5(%arg0: i32) -> (i32, i32) {
    %c0_i32 = arith.constant 0 : i32
    %c0_i32_0 = arith.constant 0 : i32
    %c0_i32_1 = arith.constant 0 : i32
    return %c0_i32, %c0_i32_0 : i32, i32
  }
  func.func @transform_6(%arg0: i32) -> (i32, i32) {
    %c0_i32 = arith.constant 0 : i32
    %c0_i32_0 = arith.constant 0 : i32
    %c0_i32_1 = arith.constant 0 : i32
    return %c0_i32, %c0_i32_0 : i32, i32
  }
  func.func @transform_7(%arg0: i32) -> (i32, i32) {
    %c0_i32 = arith.constant 0 : i32
    %c0_i32_0 = arith.constant 0 : i32
    return %arg0, %c0_i32 : i32, i32
  }
}

</mosaic_0001>

<llo_original>
// kernel: neural_prior_flow.1
$region0: #{neural_prior_flow.1}
  #allocation0 [shape = 'u32[]', space=smem, size = 0x4, offset = 0x4, fixed_abs, tag = 'smem constant byte address 0x4 - core index']
  #allocation1 [shape = 'u32[144,128]{1,0:T(1,128)}', space=vmem, size = 0x12000, scoped, tag = 'internal scratch']
  %s0 = inlined_call_operand.vmem [shape: f32[512,3], index: 0, kind: input, shape index: {}]
  %s1 = inlined_call_operand.vmem [shape: f32[3,128], index: 1, kind: input, shape index: {}]
  %s2 = inlined_call_operand.vmem [shape: f32[1,128], index: 2, kind: input, shape index: {}]
  %s3 = inlined_call_operand.vmem [shape: bf16[7,128,128], index: 3, kind: input, shape index: {}]
  %s4 = inlined_call_operand.vmem [shape: f32[7,1,128], index: 4, kind: input, shape index: {}]
  %s5 = inlined_call_operand.vmem [shape: bf16[128,128], index: 5, kind: input, shape index: {}]
  %s6 = inlined_call_operand.vmem [shape: f32[1,128], index: 6, kind: input, shape index: {}]
  %s7 = inlined_call_operand.vmem [shape: f32[512,128], index: 7, kind: output, shape index: {}]
  %s8 = sld [smem:[#allocation0]]
  $region38: #{neural_prior_flow.1} parent=0
    _
  %s10 = ssub.s32 1, %s8
  %s11 = scalar_select 0, %s10, %s8
  // Predicated region
  $region2: #{neural_prior_flow.1} parent=0 // pred_check
    _
  $region3: #{neural_prior_flow.1} parent=0 // pred_check_branch
    %13 = sbr.rel (0) target = $region5
  $region4: #{neural_prior_flow.1} parent=0 // pred_region
    _
  $region5: #{neural_prior_flow.1} parent=0 // pred_fallthru
    _
  // Predicated region
  $region6: #{neural_prior_flow.1} parent=0 // pred_check
    _
  $region7: #{neural_prior_flow.1} parent=0 // pred_check_branch
    %15 = sbr.rel (0) target = $region9
  $region8: #{neural_prior_flow.1} parent=0 // pred_region
    _
  $region9: #{neural_prior_flow.1} parent=0 // pred_fallthru
    _
  // Predicated region
  $region10: #{neural_prior_flow.1} parent=0 // pred_check
    _
  $region11: #{neural_prior_flow.1} parent=0 // pred_check_branch
    %17 = sbr.rel (0) target = $region13
  $region12: #{neural_prior_flow.1} parent=0 // pred_region
    _
  $region13: #{neural_prior_flow.1} parent=0 // pred_fallthru
    _
  // Predicated region
  $region14: #{neural_prior_flow.1} parent=0 // pred_check
    _
  $region15: #{neural_prior_flow.1} parent=0 // pred_check_branch
    %19 = sbr.rel (0) target = $region17
  $region16: #{neural_prior_flow.1} parent=0 // pred_region
    _
  $region17: #{neural_prior_flow.1} parent=0 // pred_fallthru
    _
  // Predicated region
  $region18: #{neural_prior_flow.1} parent=0 // pred_check
    _
  $region19: #{neural_prior_flow.1} parent=0 // pred_check_branch
    %21 = sbr.rel (0) target = $region21
  $region20: #{neural_prior_flow.1} parent=0 // pred_region
    _
  $region21: #{neural_prior_flow.1} parent=0 // pred_fallthru
    _
  // Predicated region
  $region22: #{neural_prior_flow.1} parent=0 // pred_check
    _
  $region23: #{neural_prior_flow.1} parent=0 // pred_check_branch
    %23 = sbr.rel (0) target = $region25
  $region24: #{neural_prior_flow.1} parent=0 // pred_region
    _
  $region25: #{neural_prior_flow.1} parent=0 // pred_fallthru
    _
  // Predicated region
  $region26: #{neural_prior_flow.1} parent=0 // pred_check
    _
  $region27: #{neural_prior_flow.1} parent=0 // pred_check_branch
    %25 = sbr.rel (0) target = $region29
  $region28: #{neural_prior_flow.1} parent=0 // pred_region
    _
  $region29: #{neural_prior_flow.1} parent=0 // pred_fallthru
    _
  %v27 = vld [vmem:[%s1] sm:$0x1]
  %v28 = vld [vmem:[%s1 + $0x1] sm:$0x1]
  %v29 = vld [vmem:[%s1 + $0x2] sm:$0x1]
  %v30 = vld [vmem:[%s2] sm:$0x1]
  %v31 = vld [vmem:[%s5] sm:$0xf]
  %v32 = vld [vmem:[%s5 + $0x4] sm:$0xf]
  %v33 = vld [vmem:[%s5 + $0x8] sm:$0xf]
  %v34 = vld [vmem:[%s5 + $0xc] sm:$0xf]
  %v35 = vld [vmem:[%s5 + $0x10] sm:$0xf]
  %v36 = vld [vmem:[%s5 + $0x14] sm:$0xf]
  %v37 = vld [vmem:[%s5 + $0x18] sm:$0xf]
  %v38 = vld [vmem:[%s5 + $0x1c] sm:$0xf]
  %v39 = vld [vmem:[%s5 + $0x20] sm:$0xf]
  %v40 = vld [vmem:[%s5 + $0x24] sm:$0xf]
  %v41 = vld [vmem:[%s5 + $0x28] sm:$0xf]
  %v42 = vld [vmem:[%s5 + $0x2c] sm:$0xf]
  %v43 = vld [vmem:[%s5 + $0x30] sm:$0xf]
  %v44 = vld [vmem:[%s5 + $0x34] sm:$0xf]
  %v45 = vld [vmem:[%s5 + $0x38] sm:$0xf]
  %v46 = vld [vmem:[%s5 + $0x3c] sm:$0xf]
  %v47 = vld [vmem:[%s6] sm:$0x1]
  %v48 = vld [vmem:[%s0] sm:$0xff]
  %v49 = vld [vmem:[%s0 + $0x8] sm:$0xff]
  %v50 = vld [vmem:[%s0 + $0x10] sm:$0xff]
  %v51 = vld [vmem:[%s0 + $0x18] sm:$0xff]
  %v52 = vld [vmem:[%s0 + $0x20] sm:$0xff]
  %v53 = vld [vmem:[%s0 + $0x28] sm:$0xff]
  %v54 = vld [vmem:[%s0 + $0x30] sm:$0xff]
  %v55 = vld [vmem:[%s0 + $0x38] sm:$0xff]
  %v56 = vld [vmem:[%s0 + $0x40] sm:$0xff]
  %v57 = vld [vmem:[%s0 + $0x48] sm:$0xff]
  %v58 = vld [vmem:[%s0 + $0x50] sm:$0xff]
  %v59 = vld [vmem:[%s0 + $0x58] sm:$0xff]
  %v60 = vld [vmem:[%s0 + $0x60] sm:$0xff]
  %v61 = vld [vmem:[%s0 + $0x68] sm:$0xff]
  %v62 = vld [vmem:[%s0 + $0x70] sm:$0xff]
  %v63 = vld [vmem:[%s0 + $0x78] sm:$0xff]
  %v64 = vld [vmem:[%s0 + $0x80] sm:$0xff]
  %v65 = vld [vmem:[%s0 + $0x88] sm:$0xff]
  %v66 = vld [vmem:[%s0 + $0x90] sm:$0xff]
  %v67 = vld [vmem:[%s0 + $0x98] sm:$0xff]
  %v68 = vld [vmem:[%s0 + $0xa0] sm:$0xff]
  %v69 = vld [vmem:[%s0 + $0xa8] sm:$0xff]
  %v70 = vld [vmem:[%s0 + $0xb0] sm:$0xff]
  %v71 = vld [vmem:[%s0 + $0xb8] sm:$0xff]
  %v72 = vld [vmem:[%s0 + $0xc0] sm:$0xff]
  %v73 = vld [vmem:[%s0 + $0xc8] sm:$0xff]
  %v74 = vld [vmem:[%s0 + $0xd0] sm:$0xff]
  %v75 = vld [vmem:[%s0 + $0xd8] sm:$0xff]
  %v76 = vld [vmem:[%s0 + $0xe0] sm:$0xff]
  %v77 = vld [vmem:[%s0 + $0xe8] sm:$0xff]
  %v78 = vld [vmem:[%s0 + $0xf0] sm:$0xff]
  %v79 = vld [vmem:[%s0 + $0xf8] sm:$0xff]
  %81 = vset.pattern.permute.xlu0 0
  %82 = vperm.xlu0 %81, %v48
  %v83 = vpop.permute.xlu0 %82
  %86 = vset.pattern.permute.xlu0 0
  %87 = vperm.xlu0 %86, %v49
  %v88 = vpop.permute.xlu0 %87
  %91 = vset.pattern.permute.xlu0 0
  %92 = vperm.xlu0 %91, %v50
  %v93 = vpop.permute.xlu0 %92
  %96 = vset.pattern.permute.xlu0 0
  %97 = vperm.xlu0 %96, %v51
  %v98 = vpop.permute.xlu0 %97
  %101 = vset.pattern.permute.xlu0 0
  %102 = vperm.xlu0 %101, %v52
  %v103 = vpop.permute.xlu0 %102
  %106 = vset.pattern.permute.xlu0 0
  %107 = vperm.xlu0 %106, %v53
  %v108 = vpop.permute.xlu0 %107
  %111 = vset.pattern.permute.xlu0 0
  %112 = vperm.xlu0 %111, %v54
  %v113 = vpop.permute.xlu0 %112
  %116 = vset.pattern.permute.xlu0 0
  %117 = vperm.xlu0 %116, %v55
  %v118 = vpop.permute.xlu0 %117
  %121 = vset.pattern.permute.xlu0 0
  %122 = vperm.xlu0 %121, %v56
  %v123 = vpop.permute.xlu0 %122
  %126 = vset.pattern.permute.xlu0 0
  %127 = vperm.xlu0 %126, %v57
  %v128 = vpop.permute.xlu0 %127
  %131 = vset.pattern.permute.xlu0 0
  %132 = vperm.xlu0 %131, %v58
  %v133 = vpop.permute.xlu0 %132
  %136 = vset.pattern.permute.xlu0 0
  %137 = vperm.xlu0 %136, %v59
  %v138 = vpop.permute.xlu0 %137
  %141 = vset.pattern.permute.xlu0 0
  %142 = vperm.xlu0 %141, %v60
  %v143 = vpop.permute.xlu0 %142
  %146 = vset.pattern.permute.xlu0 0
  %147 = vperm.xlu0 %146, %v61
  %v148 = vpop.permute.xlu0 %147
  %151 = vset.pattern.permute.xlu0 0
  %152 = vperm.xlu0 %151, %v62
  %v153 = vpop.permute.xlu0 %152
  %156 = vset.pattern.permute.xlu0 0
  %157 = vperm.xlu0 %156, %v63
  %v158 = vpop.permute.xlu0 %157
  %161 = vset.pattern.permute.xlu0 0
  %162 = vperm.xlu0 %161, %v64
  %v163 = vpop.permute.xlu0 %162
  %166 = vset.pattern.permute.xlu0 0
  %167 = vperm.xlu0 %166, %v65
  %v168 = vpop.permute.xlu0 %167
  %171 = vset.pattern.permute.xlu0 0
  %172 = vperm.xlu0 %171, %v66
  %v173 = vpop.permute.xlu0 %172
  %176 = vset.pattern.permute.xlu0 0
  %177 = vperm.xlu0 %176, %v67
  %v178 = vpop.permute.xlu0 %177
  %181 = vset.pattern.permute.xlu0 0
  %182 = vperm.xlu0 %181, %v68
  %v183 = vpop.permute.xlu0 %182
  %186 = vset.pattern.permute.xlu0 0
  %187 = vperm.xlu0 %186, %v69
  %v188 = vpop.permute.xlu0 %187
  %191 = vset.pattern.permute.xlu0 0
  %192 = vperm.xlu0 %191, %v70
  %v193 = vpop.permute.xlu0 %192
  %196 = vset.pattern.permute.xlu0 0
  %197 = vperm.xlu0 %196, %v71
  %v198 = vpop.permute.xlu0 %197
  %201 = vset.pattern.permute.xlu0 0
  %202 = vperm.xlu0 %201, %v72
  %v203 = vpop.permute.xlu0 %202
  %206 = vset.pattern.permute.xlu0 0
  %207 = vperm.xlu0 %206, %v73
  %v208 = vpop.permute.xlu0 %207
  %211 = vset.pattern.permute.xlu0 0
  %212 = vperm.xlu0 %211, %v74
  %v213 = vpop.permute.xlu0 %212
  %216 = vset.pattern.permute.xlu0 0
  %217 = vperm.xlu0 %216, %v75
  %v218 = vpop.permute.xlu0 %217
  %221 = vset.pattern.permute.xlu0 0
  %222 = vperm.xlu0 %221, %v76
  %v223 = vpop.permute.xlu0 %222
  %226 = vset.pattern.permute.xlu0 0
  %227 = vperm.xlu0 %226, %v77
  %v228 = vpop.permute.xlu0 %227
  %231 = vset.pattern.permute.xlu0 0
  %232 = vperm.xlu0 %231, %v78
  %v233 = vpop.permute.xlu0 %232
  %236 = vset.pattern.permute.xlu0 0
  %237 = vperm.xlu0 %236, %v79
  %v238 = vpop.permute.xlu0 %237
  %v240 = vlaneseq
  %v241 = vshrl.u32 %v240, 7
  %v242 = vsub.s32 0, %v241
  %v243 = vrot.slane %v27, %v242
  %v244 = vmul.f32 %v83, %v243
  %v245 = vmul.f32 %v88, %v243
  %v246 = vmul.f32 %v93, %v243
  %v247 = vmul.f32 %v98, %v243
  %v248 = vmul.f32 %v103, %v243
  %v249 = vmul.f32 %v108, %v243
  %v250 = vmul.f32 %v113, %v243
  %v251 = vmul.f32 %v118, %v243
  %v252 = vmul.f32 %v123, %v243
  %v253 = vmul.f32 %v128, %v243
  %v254 = vmul.f32 %v133, %v243
  %v255 = vmul.f32 %v138, %v243
  %v256 = vmul.f32 %v143, %v243
  %v257 = vmul.f32 %v148, %v243
  %v258 = vmul.f32 %v153, %v243
  %v259 = vmul.f32 %v158, %v243
  %v260 = vmul.f32 %v163, %v243
  %v261 = vmul.f32 %v168, %v243
  %v262 = vmul.f32 %v173, %v243
  %v263 = vmul.f32 %v178, %v243
  %v264 = vmul.f32 %v183, %v243
  %v265 = vmul.f32 %v188, %v243
  %v266 = vmul.f32 %v193, %v243
  %v267 = vmul.f32 %v198, %v243
  %v268 = vmul.f32 %v203, %v243
  %v269 = vmul.f32 %v208, %v243
  %v270 = vmul.f32 %v213, %v243
  %v271 = vmul.f32 %v218, %v243
  %v272 = vmul.f32 %v223, %v243
  %v273 = vmul.f32 %v228, %v243
  %v274 = vmul.f32 %v233, %v243
  %v275 = vmul.f32 %v238, %v243
  %276 = vset.pattern.permute.xlu0 1
  %277 = vperm.xlu0 %276, %v48
  %v278 = vpop.permute.xlu0 %277
  %280 = vset.pattern.permute.xlu0 1
  %281 = vperm.xlu0 %280, %v49
  %v282 = vpop.permute.xlu0 %281
  %284 = vset.pattern.permute.xlu0 1
  %285 = vperm.xlu0 %284, %v50
  %v286 = vpop.permute.xlu0 %285
  %288 = vset.pattern.permute.xlu0 1
  %289 = vperm.xlu0 %288, %v51
  %v290 = vpop.permute.xlu0 %289
  %292 = vset.pattern.permute.xlu0 1
  %293 = vperm.xlu0 %292, %v52
  %v294 = vpop.permute.xlu0 %293
  %296 = vset.pattern.permute.xlu0 1
  %297 = vperm.xlu0 %296, %v53
  %v298 = vpop.permute.xlu0 %297
  %300 = vset.pattern.permute.xlu0 1
  %301 = vperm.xlu0 %300, %v54
  %v302 = vpop.permute.xlu0 %301
  %304 = vset.pattern.permute.xlu0 1
  %305 = vperm.xlu0 %304, %v55
  %v306 = vpop.permute.xlu0 %305
  %308 = vset.pattern.permute.xlu0 1
  %309 = vperm.xlu0 %308, %v56
  %v310 = vpop.permute.xlu0 %309
  %312 = vset.pattern.permute.xlu0 1
  %313 = vperm.xlu0 %312, %v57
  %v314 = vpop.permute.xlu0 %313
  %316 = vset.pattern.permute.xlu0 1
  %317 = vperm.xlu0 %316, %v58
  %v318 = vpop.permute.xlu0 %317
  %320 = vset.pattern.permute.xlu0 1
  %321 = vperm.xlu0 %320, %v59
  %v322 = vpop.permute.xlu0 %321
  %324 = vset.pattern.permute.xlu0 1
  %325 = vperm.xlu0 %324, %v60
  %v326 = vpop.permute.xlu0 %325
  %328 = vset.pattern.permute.xlu0 1
  %329 = vperm.xlu0 %328, %v61
  %v330 = vpop.permute.xlu0 %329
  %332 = vset.pattern.permute.xlu0 1
  %333 = vperm.xlu0 %332, %v62
  %v334 = vpop.permute.xlu0 %333
  %336 = vset.pattern.permute.xlu0 1
  %337 = vperm.xlu0 %336, %v63
  %v338 = vpop.permute.xlu0 %337
  %340 = vset.pattern.permute.xlu0 1
  %341 = vperm.xlu0 %340, %v64
  %v342 = vpop.permute.xlu0 %341
  %344 = vset.pattern.permute.xlu0 1
  %345 = vperm.xlu0 %344, %v65
  %v346 = vpop.permute.xlu0 %345
  %348 = vset.pattern.permute.xlu0 1
  %349 = vperm.xlu0 %348, %v66
  %v350 = vpop.permute.xlu0 %349
  %352 = vset.pattern.permute.xlu0 1
  %353 = vperm.xlu0 %352, %v67
  %v354 = vpop.permute.xlu0 %353
  %356 = vset.pattern.permute.xlu0 1
  %357 = vperm.xlu0 %356, %v68
  %v358 = vpop.permute.xlu0 %357
  %360 = vset.pattern.permute.xlu0 1
  %361 = vperm.xlu0 %360, %v69
  %v362 = vpop.permute.xlu0 %361
  %364 = vset.pattern.permute.xlu0 1
  %365 = vperm.xlu0 %364, %v70
  %v366 = vpop.permute.xlu0 %365
  %368 = vset.pattern.permute.xlu0 1
  %369 = vperm.xlu0 %368, %v71
  %v370 = vpop.permute.xlu0 %369
  %372 = vset.pattern.permute.xlu0 1
  %373 = vperm.xlu0 %372, %v72
  %v374 = vpop.permute.xlu0 %373
  %376 = vset.pattern.permute.xlu0 1
  %377 = vperm.xlu0 %376, %v73
  %v378 = vpop.permute.xlu0 %377
  %380 = vset.pattern.permute.xlu0 1
  %381 = vperm.xlu0 %380, %v74
  %v382 = vpop.permute.xlu0 %381
  %384 = vset.pattern.permute.xlu0 1
  %385 = vperm.xlu0 %384, %v75
  %v386 = vpop.permute.xlu0 %385
  %388 = vset.pattern.permute.xlu0 1
  %389 = vperm.xlu0 %388, %v76
  %v390 = vpop.permute.xlu0 %389
  %392 = vset.pattern.permute.xlu0 1
  %393 = vperm.xlu0 %392, %v77
  %v394 = vpop.permute.xlu0 %393
  %396 = vset.pattern.permute.xlu0 1
  %397 = vperm.xlu0 %396, %v78
  %v398 = vpop.permute.xlu0 %397
  %400 = vset.pattern.permute.xlu0 1
  %401 = vperm.xlu0 %400, %v79
  %v402 = vpop.permute.xlu0 %401
  %v404 = vlaneseq
  %v405 = vshrl.u32 %v404, 7
  %v406 = vsub.s32 0, %v405
  %v407 = vrot.slane %v28, %v406
  %v408 = vmul.f32 %v278, %v407
  %v409 = vmul.f32 %v282, %v407
  %v410 = vmul.f32 %v286, %v407
  %v411 = vmul.f32 %v290, %v407
  %v412 = vmul.f32 %v294, %v407
  %v413 = vmul.f32 %v298, %v407
  %v414 = vmul.f32 %v302, %v407
  %v415 = vmul.f32 %v306, %v407
  %v416 = vmul.f32 %v310, %v407
  %v417 = vmul.f32 %v314, %v407
  %v418 = vmul.f32 %v318, %v407
  %v419 = vmul.f32 %v322, %v407
  %v420 = vmul.f32 %v326, %v407
  %v421 = vmul.f32 %v330, %v407
  %v422 = vmul.f32 %v334, %v407
  %v423 = vmul.f32 %v338, %v407
  %v424 = vmul.f32 %v342, %v407
  %v425 = vmul.f32 %v346, %v407
  %v426 = vmul.f32 %v350, %v407
  %v427 = vmul.f32 %v354, %v407
  %v428 = vmul.f32 %v358, %v407
  %v429 = vmul.f32 %v362, %v407
  %v430 = vmul.f32 %v366, %v407
  %v431 = vmul.f32 %v370, %v407
  %v432 = vmul.f32 %v374, %v407
  %v433 = vmul.f32 %v378, %v407
  %v434 = vmul.f32 %v382, %v407
  %v435 = vmul.f32 %v386, %v407
  %v436 = vmul.f32 %v390, %v407
  %v437 = vmul.f32 %v394, %v407
  %v438 = vmul.f32 %v398, %v407
  %v439 = vmul.f32 %v402, %v407
  %v440 = vadd.f32 %v244, %v408
  %v441 = vadd.f32 %v245, %v409
  %v442 = vadd.f32 %v246, %v410
  %v443 = vadd.f32 %v247, %v411
  %v444 = vadd.f32 %v248, %v412
  %v445 = vadd.f32 %v249, %v413
  %v446 = vadd.f32 %v250, %v414
  %v447 = vadd.f32 %v251, %v415
  %v448 = vadd.f32 %v252, %v416
  %v449 = vadd.f32 %v253, %v417
  %v450 = vadd.f32 %v254, %v418
  %v451 = vadd.f32 %v255, %v419
  %v452 = vadd.f32 %v256, %v420
  %v453 = vadd.f32 %v257, %v421
  %v454 = vadd.f32 %v258, %v422
  %v455 = vadd.f32 %v259, %v423
  %v456 = vadd.f32 %v260, %v424
  %v457 = vadd.f32 %v261, %v425
  %v458 = vadd.f32 %v262, %v426
  %v459 = vadd.f32 %v263, %v427
  %v460 = vadd.f32 %v264, %v428
  %v461 = vadd.f32 %v265, %v429
  %v462 = vadd.f32 %v266, %v430
  %v463 = vadd.f32 %v267, %v431
  %v464 = vadd.f32 %v268, %v432
  %v465 = vadd.f32 %v269, %v433
  %v466 = vadd.f32 %v270, %v434
  %v467 = vadd.f32 %v271, %v435
  %v468 = vadd.f32 %v272, %v436
  %v469 = vadd.f32 %v273, %v437
  %v470 = vadd.f32 %v274, %v438
  %v471 = vadd.f32 %v275, %v439
  %472 = vset.pattern.permute.xlu0 2
  %473 = vperm.xlu0 %472, %v48
  %v474 = vpop.permute.xlu0 %473
  %476 = vset.pattern.permute.xlu0 2
  %477 = vperm.xlu0 %476, %v49
  %v478 = vpop.permute.xlu0 %477
  %480 = vset.pattern.permute.xlu0 2
  %481 = vperm.xlu0 %480, %v50
  %v482 = vpop.permute.xlu0 %481
  %484 = vset.pattern.permute.xlu0 2
  %485 = vperm.xlu0 %484, %v51
  %v486 = vpop.permute.xlu0 %485
  %488 = vset.pattern.permute.xlu0 2
  %489 = vperm.xlu0 %488, %v52
  %v490 = vpop.permute.xlu0 %489
  %492 = vset.pattern.permute.xlu0 2
  %493 = vperm.xlu0 %492, %v53
  %v494 = vpop.permute.xlu0 %493
  %496 = vset.pattern.permute.xlu0 2
  %497 = vperm.xlu0 %496, %v54
  %v498 = vpop.permute.xlu0 %497
  %500 = vset.pattern.permute.xlu0 2
  %501 = vperm.xlu0 %500, %v55
  %v502 = vpop.permute.xlu0 %501
  %504 = vset.pattern.permute.xlu0 2
  %505 = vperm.xlu0 %504, %v56
  %v506 = vpop.permute.xlu0 %505
  %508 = vset.pattern.permute.xlu0 2
  %509 = vperm.xlu0 %508, %v57
  %v510 = vpop.permute.xlu0 %509
  %512 = vset.pattern.permute.xlu0 2
  %513 = vperm.xlu0 %512, %v58
  %v514 = vpop.permute.xlu0 %513
  %516 = vset.pattern.permute.xlu0 2
  %517 = vperm.xlu0 %516, %v59
  %v518 = vpop.permute.xlu0 %517
  %520 = vset.pattern.permute.xlu0 2
  %521 = vperm.xlu0 %520, %v60
  %v522 = vpop.permute.xlu0 %521
  %524 = vset.pattern.permute.xlu0 2
  %525 = vperm.xlu0 %524, %v61
  %v526 = vpop.permute.xlu0 %525
  %528 = vset.pattern.permute.xlu0 2
  %529 = vperm.xlu0 %528, %v62
  %v530 = vpop.permute.xlu0 %529
  %532 = vset.pattern.permute.xlu0 2
  %533 = vperm.xlu0 %532, %v63
  %v534 = vpop.permute.xlu0 %533
  %536 = vset.pattern.permute.xlu0 2
  %537 = vperm.xlu0 %536, %v64
  %v538 = vpop.permute.xlu0 %537
  %540 = vset.pattern.permute.xlu0 2
  %541 = vperm.xlu0 %540, %v65
  %v542 = vpop.permute.xlu0 %541
  %544 = vset.pattern.permute.xlu0 2
  %545 = vperm.xlu0 %544, %v66
  %v546 = vpop.permute.xlu0 %545
  %548 = vset.pattern.permute.xlu0 2
  %549 = vperm.xlu0 %548, %v67
  %v550 = vpop.permute.xlu0 %549
  %552 = vset.pattern.permute.xlu0 2
  %553 = vperm.xlu0 %552, %v68
  %v554 = vpop.permute.xlu0 %553
  %556 = vset.pattern.permute.xlu0 2
  %557 = vperm.xlu0 %556, %v69
  %v558 = vpop.permute.xlu0 %557
  %560 = vset.pattern.permute.xlu0 2
  %561 = vperm.xlu0 %560, %v70
  %v562 = vpop.permute.xlu0 %561
  %564 = vset.pattern.permute.xlu0 2
  %565 = vperm.xlu0 %564, %v71
  %v566 = vpop.permute.xlu0 %565
  %568 = vset.pattern.permute.xlu0 2
  %569 = vperm.xlu0 %568, %v72
  %v570 = vpop.permute.xlu0 %569
  %572 = vset.pattern.permute.xlu0 2
  %573 = vperm.xlu0 %572, %v73
  %v574 = vpop.permute.xlu0 %573
  %576 = vset.pattern.permute.xlu0 2
  %577 = vperm.xlu0 %576, %v74
  %v578 = vpop.permute.xlu0 %577
  %580 = vset.pattern.permute.xlu0 2
  %581 = vperm.xlu0 %580, %v75
  %v582 = vpop.permute.xlu0 %581
  %584 = vset.pattern.permute.xlu0 2
  %585 = vperm.xlu0 %584, %v76
  %v586 = vpop.permute.xlu0 %585
  %588 = vset.pattern.permute.xlu0 2
  %589 = vperm.xlu0 %588, %v77
  %v590 = vpop.permute.xlu0 %589
  %592 = vset.pattern.permute.xlu0 2
  %593 = vperm.xlu0 %592, %v78
  %v594 = vpop.permute.xlu0 %593
  %596 = vset.pattern.permute.xlu0 2
  %597 = vperm.xlu0 %596, %v79
  %v598 = vpop.permute.xlu0 %597
  %v600 = vlaneseq
  %v601 = vshrl.u32 %v600, 7
  %v602 = vsub.s32 0, %v601
  %v603 = vrot.slane %v29, %v602
  %v604 = vmul.f32 %v474, %v603
  %v605 = vmul.f32 %v478, %v603
  %v606 = vmul.f32 %v482, %v603
  %v607 = vmul.f32 %v486, %v603
  %v608 = vmul.f32 %v490, %v603
  %v609 = vmul.f32 %v494, %v603
  %v610 = vmul.f32 %v498, %v603
  %v611 = vmul.f32 %v502, %v603
  %v612 = vmul.f32 %v506, %v603
  %v613 = vmul.f32 %v510, %v603
  %v614 = vmul.f32 %v514, %v603
  %v615 = vmul.f32 %v518, %v603
  %v616 = vmul.f32 %v522, %v603
  %v617 = vmul.f32 %v526, %v603
  %v618 = vmul.f32 %v530, %v603
  %v619 = vmul.f32 %v534, %v603
  %v620 = vmul.f32 %v538, %v603
  %v621 = vmul.f32 %v542, %v603
  %v622 = vmul.f32 %v546, %v603
  %v623 = vmul.f32 %v550, %v603
  %v624 = vmul.f32 %v554, %v603
  %v625 = vmul.f32 %v558, %v603
  %v626 = vmul.f32 %v562, %v603
  %v627 = vmul.f32 %v566, %v603
  %v628 = vmul.f32 %v570, %v603
  %v629 = vmul.f32 %v574, %v603
  %v630 = vmul.f32 %v578, %v603
  %v631 = vmul.f32 %v582, %v603
  %v632 = vmul.f32 %v586, %v603
  %v633 = vmul.f32 %v590, %v603
  %v634 = vmul.f32 %v594, %v603
  %v635 = vmul.f32 %v598, %v603
  %v636 = vadd.f32 %v440, %v604
  %v637 = vadd.f32 %v441, %v605
  %v638 = vadd.f32 %v442, %v606
  %v639 = vadd.f32 %v443, %v607
  %v640 = vadd.f32 %v444, %v608
  %v641 = vadd.f32 %v445, %v609
  %v642 = vadd.f32 %v446, %v610
  %v643 = vadd.f32 %v447, %v611
  %v644 = vadd.f32 %v448, %v612
  %v645 = vadd.f32 %v449, %v613
  %v646 = vadd.f32 %v450, %v614
  %v647 = vadd.f32 %v451, %v615
  %v648 = vadd.f32 %v452, %v616
  %v649 = vadd.f32 %v453, %v617
  %v650 = vadd.f32 %v454, %v618
  %v651 = vadd.f32 %v455, %v619
  %v652 = vadd.f32 %v456, %v620
  %v653 = vadd.f32 %v457, %v621
  %v654 = vadd.f32 %v458, %v622
  %v655 = vadd.f32 %v459, %v623
  %v656 = vadd.f32 %v460, %v624
  %v657 = vadd.f32 %v461, %v625
  %v658 = vadd.f32 %v462, %v626
  %v659 = vadd.f32 %v463, %v627
  %v660 = vadd.f32 %v464, %v628
  %v661 = vadd.f32 %v465, %v629
  %v662 = vadd.f32 %v466, %v630
  %v663 = vadd.f32 %v467, %v631
  %v664 = vadd.f32 %v468, %v632
  %v665 = vadd.f32 %v469, %v633
  %v666 = vadd.f32 %v470, %v634
  %v667 = vadd.f32 %v471, %v635
  %v669 = vlaneseq
  %v670 = vshrl.u32 %v669, 7
  %v671 = vsub.s32 0, %v670
  %v672 = vrot.slane %v30, %v671
  %v674 = vadd.f32 %v636, %v672
  %v675 = vadd.f32 %v637, %v672
  %v676 = vadd.f32 %v638, %v672
  %v677 = vadd.f32 %v639, %v672
  %v678 = vadd.f32 %v640, %v672
  %v679 = vadd.f32 %v641, %v672
  %v680 = vadd.f32 %v642, %v672
  %v681 = vadd.f32 %v643, %v672
  %v682 = vadd.f32 %v644, %v672
  %v683 = vadd.f32 %v645, %v672
  %v684 = vadd.f32 %v646, %v672
  %v685 = vadd.f32 %v647, %v672
  %v686 = vadd.f32 %v648, %v672
  %v687 = vadd.f32 %v649, %v672
  %v688 = vadd.f32 %v650, %v672
  %v689 = vadd.f32 %v651, %v672
  %v690 = vadd.f32 %v652, %v672
  %v691 = vadd.f32 %v653, %v672
  %v692 = vadd.f32 %v654, %v672
  %v693 = vadd.f32 %v655, %v672
  %v694 = vadd.f32 %v656, %v672
  %v695 = vadd.f32 %v657, %v672
  %v696 = vadd.f32 %v658, %v672
  %v697 = vadd.f32 %v659, %v672
  %v698 = vadd.f32 %v660, %v672
  %v699 = vadd.f32 %v661, %v672
  %v700 = vadd.f32 %v662, %v672
  %v701 = vadd.f32 %v663, %v672
  %v702 = vadd.f32 %v664, %v672
  %v703 = vadd.f32 %v665, %v672
  %v704 = vadd.f32 %v666, %v672
  %v705 = vadd.f32 %v667, %v672
  %v706 = vmax.f32 %v674, 0.0
  %v707 = vmax.f32 %v675, 0.0
  %v708 = vmax.f32 %v676, 0.0
  %v709 = vmax.f32 %v677, 0.0
  %v710 = vmax.f32 %v678, 0.0
  %v711 = vmax.f32 %v679, 0.0
  %v712 = vmax.f32 %v680, 0.0
  %v713 = vmax.f32 %v681, 0.0
  %v714 = vmax.f32 %v682, 0.0
  %v715 = vmax.f32 %v683, 0.0
  %v716 = vmax.f32 %v684, 0.0
  %v717 = vmax.f32 %v685, 0.0
  %v718 = vmax.f32 %v686, 0.0
  %v719 = vmax.f32 %v687, 0.0
  %v720 = vmax.f32 %v688, 0.0
  %v721 = vmax.f32 %v689, 0.0
  %v722 = vmax.f32 %v690, 0.0
  %v723 = vmax.f32 %v691, 0.0
  %v724 = vmax.f32 %v692, 0.0
  %v725 = vmax.f32 %v693, 0.0
  %v726 = vmax.f32 %v694, 0.0
  %v727 = vmax.f32 %v695, 0.0
  %v728 = vmax.f32 %v696, 0.0
  %v729 = vmax.f32 %v697, 0.0
  %v730 = vmax.f32 %v698, 0.0
  %v731 = vmax.f32 %v699, 0.0
  %v732 = vmax.f32 %v700, 0.0
  %v733 = vmax.f32 %v701, 0.0
  %v734 = vmax.f32 %v702, 0.0
  %v735 = vmax.f32 %v703, 0.0
  %v736 = vmax.f32 %v704, 0.0
  %v737 = vmax.f32 %v705, 0.0
  %v738 = vpack.c.bf16 %v707, %v706
  %v739 = vpack.c.bf16 %v709, %v708
  %v740 = vpack.c.bf16 %v711, %v710
  %v741 = vpack.c.bf16 %v713, %v712
  %v742 = vpack.c.bf16 %v715, %v714
  %v743 = vpack.c.bf16 %v717, %v716
  %v744 = vpack.c.bf16 %v719, %v718
  %v745 = vpack.c.bf16 %v721, %v720
  %v746 = vpack.c.bf16 %v723, %v722
  %v747 = vpack.c.bf16 %v725, %v724
  %v748 = vpack.c.bf16 %v727, %v726
  %v749 = vpack.c.bf16 %v729, %v728
  %v750 = vpack.c.bf16 %v731, %v730
  %v751 = vpack.c.bf16 %v733, %v732
  %v752 = vpack.c.bf16 %v735, %v734
  %v753 = vpack.c.bf16 %v737, %v736
  %v754 = vld [vmem:[%s3] sm:$0xf]
  %v755 = vld [vmem:[%s3 + $0x4] sm:$0xf]
  %v756 = vld [vmem:[%s3 + $0x8] sm:$0xf]
  %v757 = vld [vmem:[%s3 + $0xc] sm:$0xf]
  %v758 = vld [vmem:[%s3 + $0x10] sm:$0xf]
  %v759 = vld [vmem:[%s3 + $0x14] sm:$0xf]
  %v760 = vld [vmem:[%s3 + $0x18] sm:$0xf]
  %v761 = vld [vmem:[%s3 + $0x1c] sm:$0xf]
  %v762 = vld [vmem:[%s3 + $0x20] sm:$0xf]
  %v763 = vld [vmem:[%s3 + $0x24] sm:$0xf]
  %v764 = vld [vmem:[%s3 + $0x28] sm:$0xf]
  %v765 = vld [vmem:[%s3 + $0x2c] sm:$0xf]
  %v766 = vld [vmem:[%s3 + $0x30] sm:$0xf]
  %v767 = vld [vmem:[%s3 + $0x34] sm:$0xf]
  %v768 = vld [vmem:[%s3 + $0x38] sm:$0xf]
  %v769 = vld [vmem:[%s3 + $0x3c] sm:$0xf]
  %v770 = vld [vmem:[%s4] sm:$0x1]
  %v772 = vlaneseq
  %v773 = vshrl.u32 %v772, 7
  %v774 = vsub.s32 0, %v773
  %v775 = vrot.slane %v770, %v774
  %v793 = vunpack.c.l.b16 %v754
  %v794 = vunpack.c.l.b16 %v755
  %v795 = vunpack.c.l.b16 %v756
  %v796 = vunpack.c.l.b16 %v757
  %v797 = vunpack.c.l.b16 %v758
  %v798 = vunpack.c.l.b16 %v759
  %v799 = vunpack.c.l.b16 %v760
  %v800 = vunpack.c.l.b16 %v761
  %v801 = vunpack.c.l.b16 %v762
  %v802 = vunpack.c.l.b16 %v763
  %v803 = vunpack.c.l.b16 %v764
  %v804 = vunpack.c.l.b16 %v765
  %v805 = vunpack.c.l.b16 %v766
  %v806 = vunpack.c.l.b16 %v767
  %v807 = vunpack.c.l.b16 %v768
  %v808 = vunpack.c.l.b16 %v769
  %v809 = vpack.c.b16 %v794, %v793
  %v810 = vpack.c.b16 %v796, %v795
  %v811 = vpack.c.b16 %v798, %v797
  %v812 = vpack.c.b16 %v800, %v799
  %v813 = vpack.c.b16 %v802, %v801
  %v814 = vpack.c.b16 %v804, %v803
  %v815 = vpack.c.b16 %v806, %v805
  %v816 = vpack.c.b16 %v808, %v807
  %825 = vmatprep.subr.bf16.mxu0 0
  %826 = vmatpush1.bf16.msra.mxu0 %v809
  %827 = vmatprep.subr.bf16.mxu0 0
  %828 = vmatpush1.bf16.msra.mxu0 %v810
  %829 = vmatprep.subr.bf16.mxu0 0
  %830 = vmatpush1.bf16.msra.mxu0 %v811
  %831 = vmatprep.subr.bf16.mxu0 0
  %832 = vmatpush1.bf16.msra.mxu0 %v812
  %833 = vmatprep.subr.bf16.mxu0 0
  %834 = vmatpush1.bf16.msra.mxu0 %v813
  %835 = vmatprep.subr.bf16.mxu0 0
  %836 = vmatpush1.bf16.msra.mxu0 %v814
  %837 = vmatprep.subr.bf16.mxu0 0
  %838 = vmatpush1.bf16.msra.mxu0 %v815
  %839 = vmatprep.subr.bf16.mxu0 0
  %840 = vmatpush1.bf16.msra.mxu0 %v816
  %841 = vmatprep.subr.bf16.mxu0 0
  %842 = vmatpush1.bf16.msra.mxu0 0
  %843 = vmatprep.subr.bf16.mxu0 0
  %844 = vmatpush1.bf16.msra.mxu0 0
  %845 = vmatprep.subr.bf16.mxu0 0
  %846 = vmatpush1.bf16.msra.mxu0 0
  %847 = vmatprep.subr.bf16.mxu0 0
  %848 = vmatpush1.bf16.msra.mxu0 0
  %849 = vmatprep.subr.bf16.mxu0 0
  %850 = vmatpush1.bf16.msra.mxu0 0
  %851 = vmatprep.subr.bf16.mxu0 0
  %852 = vmatpush1.bf16.msra.mxu0 0
  %853 = vmatprep.subr.bf16.mxu0 0
  %854 = vmatpush1.bf16.msra.mxu0 0
  %855 = vmatprep.subr.bf16.mxu0 0
  %856 = vmatpush1.bf16.msra.mxu0 0
  %857 = vmatprep.mubr.bf16.mxu0 0
  %858 = vmatmul.mubr.bf16.gmra.mrb[0].mxu0 %v738
  %v859 = vpop.f32.mrb[0].mxu0
  %v860 = vadd.f32 %v775, %v859
  %v861 = vpop.f32.mrb[0].mxu0
  %v862 = vpop.f32.mrb[0].mxu0
  %v863 = vadd.f32 %v775, %v862
  %v864 = vpop.f32.mrb[0].mxu0
  %865 = vmatprep.mubr.bf16.mxu0 0
  %866 = vmatmul.mubr.bf16.gmra.mrb[0].mxu0 %v739
  %v867 = vpop.f32.mrb[0].mxu0
  %v868 = vadd.f32 %v775, %v867
  %v869 = vpop.f32.mrb[0].mxu0
  %v870 = vpop.f32.mrb[0].mxu0
  %v871 = vadd.f32 %v775, %v870
  %v872 = vpop.f32.mrb[0].mxu0
  %873 = vmatprep.mubr.bf16.mxu0 0
  %874 = vmatmul.mubr.bf16.gmra.mrb[0].mxu0 %v740
  %v875 = vpop.f32.mrb[0].mxu0
  %v876 = vadd.f32 %v775, %v875
  %v877 = vpop.f32.mrb[0].mxu0
  %v878 = vpop.f32.mrb[0].mxu0
  %v879 = vadd.f32 %v775, %v878
  %v880 = vpop.f32.mrb[0].mxu0
  %881 = vmatprep.mubr.bf16.mxu0 0
  %882 = vmatmul.mubr.bf16.gmra.mrb[0].mxu0 %v741
  %v883 = vpop.f32.mrb[0].mxu0
  %v884 = vadd.f32 %v775, %v883
  %v885 = vpop.f32.mrb[0].mxu0
  %v886 = vpop.f32.mrb[0].mxu0
  %v887 = vadd.f32 %v775, %v886
  %v888 = vpop.f32.mrb[0].mxu0
  %889 = vmatprep.mubr.bf16.mxu0 0
  %890 = vmatmul.mubr.bf16.gmra.mrb[0].mxu0 %v742
  %v891 = vpop.f32.mrb[0].mxu0
  %v892 = vadd.f32 %v775, %v891
  %v893 = vpop.f32.mrb[0].mxu0
  %v894 = vpop.f32.mrb[0].mxu0
  %v895 = vadd.f32 %v775, %v894
  %v896 = vpop.f32.mrb[0].mxu0
  %897 = vmatprep.mubr.bf16.mxu0 0
  %898 = vmatmul.mubr.bf16.gmra.mrb[0].mxu0 %v743
  %v899 = vpop.f32.mrb[0].mxu0
  %v900 = vadd.f32 %v775, %v899
  %v901 = vpop.f32.mrb[0].mxu0
  %v902 = vpop.f32.mrb[0].mxu0
  %v903 = vadd.f32 %v775, %v902
  %v904 = vpop.f32.mrb[0].mxu0
  %905 = vmatprep.mubr.bf16.mxu0 0
  %906 = vmatmul.mubr.bf16.gmra.mrb[0].mxu0 %v744
  %v907 = vpop.f32.mrb[0].mxu0
  %v908 = vadd.f32 %v775, %v907
  %v909 = vpop.f32.mrb[0].mxu0
  %v910 = vpop.f32.mrb[0].mxu0
  %v911 = vadd.f32 %v775, %v910
  %v912 = vpop.f32.mrb[0].mxu0
  %913 = vmatprep.mubr.bf16.mxu0 0
  %914 = vmatmul.mubr.bf16.gmra.mrb[0].mxu0 %v745
  %v915 = vpop.f32.mrb[0].mxu0
  %v916 = vadd.f32 %v775, %v915
  %v917 = vpop.f32.mrb[0].mxu0
  %v918 = vpop.f32.mrb[0].mxu0
  %v919 = vadd.f32 %v775, %v918
  %v920 = vpop.f32.mrb[0].mxu0
  %921 = vmatprep.mubr.bf16.mxu0 0
  %922 = vmatmul.mubr.bf16.gmra.mrb[0].mxu0 %v746
  %v923 = vpop.f32.mrb[0].mxu0
  %v924 = vadd.f32 %v775, %v923
  %v925 = vpop.f32.mrb[0].mxu0
  %v926 = vpop.f32.mrb[0].mxu0
  %v927 = vadd.f32 %v775, %v926
  %v928 = vpop.f32.mrb[0].mxu0
  %929 = vmatprep.mubr.bf16.mxu0 0
  %930 = vmatmul.mubr.bf16.gmra.mrb[0].mxu0 %v747
  %v931 = vpop.f32.mrb[0].mxu0
  %v932 = vadd.f32 %v775, %v931
  %v933 = vpop.f32.mrb[0].mxu0
  %v934 = vpop.f32.mrb[0].mxu0
  %v935 = vadd.f32 %v775, %v934
  %v936 = vpop.f32.mrb[0].mxu0
  %937 = vmatprep.mubr.bf16.mxu0 0
  %938 = vmatmul.mubr.bf16.gmra.mrb[0].mxu0 %v748
  %v939 = vpop.f32.mrb[0].mxu0
  %v940 = vadd.f32 %v775, %v939
  %v941 = vpop.f32.mrb[0].mxu0
  %v942 = vpop.f32.mrb[0].mxu0
  %v943 = vadd.f32 %v775, %v942
  %v944 = vpop.f32.mrb[0].mxu0
  %945 = vmatprep.mubr.bf16.mxu0 0
  %946 = vmatmul.mubr.bf16.gmra.mrb[0].mxu0 %v749
  %v947 = vpop.f32.mrb[0].mxu0
  %v948 = vadd.f32 %v775, %v947
  %v949 = vpop.f32.mrb[0].mxu0
  %v950 = vpop.f32.mrb[0].mxu0
  %v951 = vadd.f32 %v775, %v950
  %v952 = vpop.f32.mrb[0].mxu0
  %953 = vmatprep.mubr.bf16.mxu0 0
  %954 = vmatmul.mubr.bf16.gmra.mrb[0].mxu0 %v750
  %v955 = vpop.f32.mrb[0].mxu0
  %v956 = vadd.f32 %v775, %v955
  %v957 = vpop.f32.mrb[0].mxu0
  %v958 = vpop.f32.mrb[0].mxu0
  %v959 = vadd.f32 %v775, %v958
  %v960 = vpop.f32.mrb[0].mxu0
  %961 = vmatprep.mubr.bf16.mxu0 0
  %962 = vmatmul.mubr.bf16.gmra.mrb[0].mxu0 %v751
  %v963 = vpop.f32.mrb[0].mxu0
  %v964 = vadd.f32 %v775, %v963
  %v965 = vpop.f32.mrb[0].mxu0
  %v966 = vpop.f32.mrb[0].mxu0
  %v967 = vadd.f32 %v775, %v966
  %v968 = vpop.f32.mrb[0].mxu0
  %969 = vmatprep.mubr.bf16.mxu0 0
  %970 = vmatmul.mubr.bf16.gmra.mrb[0].mxu0 %v752
  %v971 = vpop.f32.mrb[0].mxu0
  %v972 = vadd.f32 %v775, %v971
  %v973 = vpop.f32.mrb[0].mxu0
  %v974 = vpop.f32.mrb[0].mxu0
  %v975 = vadd.f32 %v775, %v974
  %v976 = vpop.f32.mrb[0].mxu0
  %977 = vmatprep.mubr.bf16.mxu0 0
  %978 = vmatmul.mubr.bf16.gmra.mrb[0].mxu0 %v753
  %v979 = vpop.f32.mrb[0].mxu0
  %v980 = vadd.f32 %v775, %v979
  %v981 = vpop.f32.mrb[0].mxu0
  %v982 = vpop.f32.mrb[0].mxu0
  %v983 = vadd.f32 %v775, %v982
  %v984 = vpop.f32.mrb[0].mxu0
  %985 = vdwg.mxu0
  %v986 = vmax.f32 %v860, 0.0
  %v987 = vmax.f32 %v863, 0.0
  %v988 = vmax.f32 %v868, 0.0
  %v989 = vmax.f32 %v871, 0.0
  %v990 = vmax.f32 %v876, 0.0
  %v991 = vmax.f32 %v879, 0.0
  %v992 = vmax.f32 %v884, 0.0
  %v993 = vmax.f32 %v887, 0.0
  %v994 = vmax.f32 %v892, 0.0
  %v995 = vmax.f32 %v895, 0.0
  %v996 = vmax.f32 %v900, 0.0
  %v997 = vmax.f32 %v903, 0.0
  %v998 = vmax.f32 %v908, 0.0
  %v999 = vmax.f32 %v911, 0.0
  %v1000 = vmax.f32 %v916, 0.0
  %v1001 = vmax.f32 %v919, 0.0
  %v1002 = vmax.f32 %v924, 0.0
  %v1003 = vmax.f32 %v927, 0.0
  %v1004 = vmax.f32 %v932, 0.0
  %v1005 = vmax.f32 %v935, 0.0
  %v1006 = vmax.f32 %v940, 0.0
  %v1007 = vmax.f32 %v943, 0.0
  %v1008 = vmax.f32 %v948, 0.0
  %v1009 = vmax.f32 %v951, 0.0
  %v1010 = vmax.f32 %v956, 0.0
  %v1011 = vmax.f32 %v959, 0.0
  %v1012 = vmax.f32 %v964, 0.0
  %v1013 = vmax.f32 %v967, 0.0
  %v1014 = vmax.f32 %v972, 0.0
  %v1015 = vmax.f32 %v975, 0.0
  %v1016 = vmax.f32 %v980, 0.0
  %v1017 = vmax.f32 %v983, 0.0
  %v1018 = vpack.c.bf16 %v987, %v986
  %v1019 = vpack.c.bf16 %v989, %v988
  %v1020 = vpack.c.bf16 %v991, %v990
  %v1021 = vpack.c.bf16 %v993, %v992
  %v1022 = vpack.c.bf16 %v995, %v994
  %v1023 = vpack.c.bf16 %v997, %v996
  %v1024 = vpack.c.bf16 %v999, %v998
  %v1025 = vpack.c.bf16 %v1001, %v1000
  %v1026 = vpack.c.bf16 %v1003, %v1002
  %v1027 = vpack.c.bf16 %v1005, %v1004
  %v1028 = vpack.c.bf16 %v1007, %v1006
  %v1029 = vpack.c.bf16 %v1009, %v1008
  %v1030 = vpack.c.bf16 %v1011, %v1010
  %v1031 = vpack.c.bf16 %v1013, %v1012
  %v1032 = vpack.c.bf16 %v1015, %v1014
  %v1033 = vpack.c.bf16 %v1017, %v1016
  %s1034 = scalar_lea.vmem %s3, 64
  %v1035 = vld [vmem:[%s1034] sm:$0xf]
  %v1036 = vld [vmem:[%s1034 + $0x4] sm:$0xf]
  %v1037 = vld [vmem:[%s1034 + $0x8] sm:$0xf]
  %v1038 = vld [vmem:[%s1034 + $0xc] sm:$0xf]
  %v1039 = vld [vmem:[%s1034 + $0x10] sm:$0xf]
  %v1040 = vld [vmem:[%s1034 + $0x14] sm:$0xf]
  %v1041 = vld [vmem:[%s1034 + $0x18] sm:$0xf]
  %v1042 = vld [vmem:[%s1034 + $0x1c] sm:$0xf]
  %v1043 = vld [vmem:[%s1034 + $0x20] sm:$0xf]
  %v1044 = vld [vmem:[%s1034 + $0x24] sm:$0xf]
  %v1045 = vld [vmem:[%s1034 + $0x28] sm:$0xf]
  %v1046 = vld [vmem:[%s1034 + $0x2c] sm:$0xf]
  %v1047 = vld [vmem:[%s1034 + $0x30] sm:$0xf]
  %v1048 = vld [vmem:[%s1034 + $0x34] sm:$0xf]
  %v1049 = vld [vmem:[%s1034 + $0x38] sm:$0xf]
  %v1050 = vld [vmem:[%s1034 + $0x3c] sm:$0xf]
  %s1051 = scalar_lea.vmem %s4, 1
  %v1052 = vld [vmem:[%s1051] sm:$0x1]
  %v1054 = vlaneseq
  %v1055 = vshrl.u32 %v1054, 7
  %v1056 = vsub.s32 0, %v1055
  %v1057 = vrot.slane %v1052, %v1056
  %v1075 = vunpack.c.l.b16 %v1035
  %v1076 = vunpack.c.l.b16 %v1036
  %v1077 = vunpack.c.l.b16 %v1037
  %v1078 = vunpack.c.l.b16 %v1038
  %v1079 = vunpack.c.l.b16 %v1039
  %v1080 = vunpack.c.l.b16 %v1040
  %v1081 = vunpack.c.l.b16 %v1041
  %v1082 = vunpack.c.l.b16 %v1042
  %v1083 = vunpack.c.l.b16 %v1043
  %v1084 = vunpack.c.l.b16 %v1044
  %v1085 = vunpack.c.l.b16 %v1045
  %v1086 = vunpack.c.l.b16 %v1046
  %v1087 = vunpack.c.l.b16 %v1047
  %v1088 = vunpack.c.l.b16 %v1048
  %v1089 = vunpack.c.l.b16 %v1049
  %v1090 = vunpack.c.l.b16 %v1050
  %v1091 = vpack.c.b16 %v1076, %v1075
  %v1092 = vpack.c.b16 %v1078, %v1077
  %v1093 = vpack.c.b16 %v1080, %v1079
  %v1094 = vpack.c.b16 %v1082, %v1081
  %v1095 = vpack.c.b16 %v1084, %v1083
  %v1096 = vpack.c.b16 %v1086, %v1085
  %v1097 = vpack.c.b16 %v1088, %v1087
  %v1098 = vpack.c.b16 %v1090, %v1089
  %1107 = vmatprep.subr.bf16.mxu0 0
  %1108 = vmatpush1.bf16.msra.mxu0 %v1091
  %1109 = vmatprep.subr.bf16.mxu0 0
  %1110 = vmatpush1.bf16.msra.mxu0 %v1092
  %1111 = vmatprep.subr.bf16.mxu0 0
  %1112 = vmatpush1.bf16.msra.mxu0 %v1093
  %1113 = vmatprep.subr.bf16.mxu0 0
  %1114 = vmatpush1.bf16.msra.mxu0 %v1094
  %1115 = vmatprep.subr.bf16.mxu0 0
  %1116 = vmatpush1.bf16.msra.mxu0 %v1095
  %1117 = vmatprep.subr.bf16.mxu0 0
  %1118 = vmatpush1.bf16.msra.mxu0 %v1096
  %1119 = vmatprep.subr.bf16.mxu0 0
  %1120 = vmatpush1.bf16.msra.mxu0 %v1097
  %1121 = vmatprep.subr.bf16.mxu0 0
  %1122 = vmatpush1.bf16.msra.mxu0 %v1098
  %1123 = vmatprep.subr.bf16.mxu0 0
  %1124 = vmatpush1.bf16.msra.mxu0 0
  %1125 = vmatprep.subr.bf16.mxu0 0
  %1126 = vmatpush1.bf16.msra.mxu0 0
  %1127 = vmatprep.subr.bf16.mxu0 0
  %1128 = vmatpush1.bf16.msra.mxu0 0
  %1129 = vmatprep.subr.bf16.mxu0 0
  %1130 = vmatpush1.bf16.msra.mxu0 0
  %1131 = vmatprep.subr.bf16.mxu0 0
  %1132 = vmatpush1.bf16.msra.mxu0 0
  %1133 = vmatprep.subr.bf16.mxu0 0
  %1134 = vmatpush1.bf16.msra.mxu0 0
  %1135 = vmatprep.subr.bf16.mxu0 0
  %1136 = vmatpush1.bf16.msra.mxu0 0
  %1137 = vmatprep.subr.bf16.mxu0 0
  %1138 = vmatpush1.bf16.msra.mxu0 0
  %1139 = vmatprep.mubr.bf16.mxu0 0
  %1140 = vmatmul.mubr.bf16.gmra.mrb[0].mxu0 %v1018
  %v1141 = vpop.f32.mrb[0].mxu0
  %v1142 = vadd.f32 %v1057, %v1141
  %v1143 = vpop.f32.mrb[0].mxu0
  %v1144 = vpop.f32.mrb[0].mxu0
  %v1145 = vadd.f32 %v1057, %v1144
  %v1146 = vpop.f32.mrb[0].mxu0
  %1147 = vmatprep.mubr.bf16.mxu0 0
  %1148 = vmatmul.mubr.bf16.gmra.mrb[0].mxu0 %v1019
  %v1149 = vpop.f32.mrb[0].mxu0
  %v1150 = vadd.f32 %v1057, %v1149
  %v1151 = vpop.f32.mrb[0].mxu0
  %v1152 = vpop.f32.mrb[0].mxu0
  %v1153 = vadd.f32 %v1057, %v1152
  %v1154 = vpop.f32.mrb[0].mxu0
  %1155 = vmatprep.mubr.bf16.mxu0 0
  %1156 = vmatmul.mubr.bf16.gmra.mrb[0].mxu0 %v1020
  %v1157 = vpop.f32.mrb[0].mxu0
  %v1158 = vadd.f32 %v1057, %v1157
  %v1159 = vpop.f32.mrb[0].mxu0
  %v1160 = vpop.f32.mrb[0].mxu0
  %v1161 = vadd.f32 %v1057, %v1160
  %v1162 = vpop.f32.mrb[0].mxu0
  %1163 = vmatprep.mubr.bf16.mxu0 0
  %1164 = vmatmul.mubr.bf16.gmra.mrb[0].mxu0 %v1021
  %v1165 = vpop.f32.mrb[0].mxu0
  %v1166 = vadd.f32 %v1057, %v1165
  %v1167 = vpop.f32.mrb[0].mxu0
  %v1168 = vpop.f32.mrb[0].mxu0
  %v1169 = vadd.f32 %v1057, %v1168
  %v1170 = vpop.f32.mrb[0].mxu0
  %1171 = vmatprep.mubr.bf16.mxu0 0
  %1172 = vmatmul.mubr.bf16.gmra.mrb[0].mxu0 %v1022
  %v1173 = vpop.f32.mrb[0].mxu0
  %v1174 = vadd.f32 %v1057, %v1173
  %v1175 = vpop.f32.mrb[0].mxu0
  %v1176 = vpop.f32.mrb[0].mxu0
  %v1177 = vadd.f32 %v1057, %v1176
  %v1178 = vpop.f32.mrb[0].mxu0
  %1179 = vmatprep.mubr.bf16.mxu0 0
  %1180 = vmatmul.mubr.bf16.gmra.mrb[0].mxu0 %v1023
  %v1181 = vpop.f32.mrb[0].mxu0
  %v1182 = vadd.f32 %v1057, %v1181
  %v1183 = vpop.f32.mrb[0].mxu0
  %v1184 = vpop.f32.mrb[0].mxu0
  %v1185 = vadd.f32 %v1057, %v1184
  %v1186 = vpop.f32.mrb[0].mxu0
  %1187 = vmatprep.mubr.bf16.mxu0 0
  %1188 = vmatmul.mubr.bf16.gmra.mrb[0].mxu0 %v1024
  %v1189 = vpop.f32.mrb[0].mxu0
  %v1190 = vadd.f32 %v1057, %v1189
  %v1191 = vpop.f32.mrb[0].mxu0
  %v1192 = vpop.f32.mrb[0].mxu0
  %v1193 = vadd.f32 %v1057, %v1192
  %v1194 = vpop.f32.mrb[0].mxu0
  %1195 = vmatprep.mubr.bf16.mxu0 0
  %1196 = vmatmul.mubr.bf16.gmra.mrb[0].mxu0 %v1025
  %v1197 = vpop.f32.mrb[0].mxu0
  %v1198 = vadd.f32 %v1057, %v1197
  %v1199 = vpop.f32.mrb[0].mxu0
  %v1200 = vpop.f32.mrb[0].mxu0
  %v1201 = vadd.f32 %v1057, %v1200
  %v1202 = vpop.f32.mrb[0].mxu0
  %1203 = vmatprep.mubr.bf16.mxu0 0
  %1204 = vmatmul.mubr.bf16.gmra.mrb[0].mxu0 %v1026
  %v1205 = vpop.f32.mrb[0].mxu0
  %v1206 = vadd.f32 %v1057, %v1205
  %v1207 = vpop.f32.mrb[0].mxu0
  %v1208 = vpop.f32.mrb[0].mxu0
  %v1209 = vadd.f32 %v1057, %v1208
  %v1210 = vpop.f32.mrb[0].mxu0
  %1211 = vmatprep.mubr.bf16.mxu0 0
  %1212 = vmatmul.mubr.bf16.gmra.mrb[0].mxu0 %v1027
  %v1213 = vpop.f32.mrb[0].mxu0
  %v1214 = vadd.f32 %v1057, %v1213
  %v1215 = vpop.f32.mrb[0].mxu0
  %v1216 = vpop.f32.mrb[0].mxu0
  %v1217 = vadd.f32 %v1057, %v1216
  %v1218 = vpop.f32.mrb[0].mxu0
  %1219 = vmatprep.mubr.bf16.mxu0 0
  %1220 = vmatmul.mubr.bf16.gmra.mrb[0].mxu0 %v1028
  %v1221 = vpop.f32.mrb[0].mxu0
  %v1222 = vadd.f32 %v1057, %v1221
  %v1223 = vpop.f32.mrb[0].mxu0
  %v1224 = vpop.f32.mrb[0].mxu0
  %v1225 = vadd.f32 %v1057, %v1224
  %v1226 = vpop.f32.mrb[0].mxu0
  %1227 = vmatprep.mubr.bf16.mxu0 0
  %1228 = vmatmul.mubr.bf16.gmra.mrb[0].mxu0 %v1029
  %v1229 = vpop.f32.mrb[0].mxu0
  %v1230 = vadd.f32 %v1057, %v1229
  %v1231 = vpop.f32.mrb[0].mxu0
  %v1232 = vpop.f32.mrb[0].mxu0
  %v1233 = vadd.f32 %v1057, %v1232
  %v1234 = vpop.f32.mrb[0].mxu0
  %1235 = vmatprep.mubr.bf16.mxu0 0
  %1236 = vmatmul.mubr.bf16.gmra.mrb[0].mxu0 %v1030
  %v1237 = vpop.f32.mrb[0].mxu0
  %v1238 = vadd.f32 %v1057, %v1237
  %v1239 = vpop.f32.mrb[0].mxu0
  %v1240 = vpop.f32.mrb[0].mxu0
  %v1241 = vadd.f32 %v1057, %v1240
  %v1242 = vpop.f32.mrb[0].mxu0
  %1243 = vmatprep.mubr.bf16.mxu0 0
  %1244 = vmatmul.mubr.bf16.gmra.mrb[0].mxu0 %v1031
  %v1245 = vpop.f32.mrb[0].mxu0
  %v1246 = vadd.f32 %v1057, %v1245
  %v1247 = vpop.f32.mrb[0].mxu0
  %v1248 = vpop.f32.mrb[0].mxu0
  %v1249 = vadd.f32 %v1057, %v1248
  %v1250 = vpop.f32.mrb[0].mxu0
  %1251 = vmatprep.mubr.bf16.mxu0 0
  %1252 = vmatmul.mubr.bf16.gmra.mrb[0].mxu0 %v1032
  %v1253 = vpop.f32.mrb[0].mxu0
  %v1254 = vadd.f32 %v1057, %v1253
  %v1255 = vpop.f32.mrb[0].mxu0
  %v1256 = vpop.f32.mrb[0].mxu0
  %v1257 = vadd.f32 %v1057, %v1256
  %v1258 = vpop.f32.mrb[0].mxu0
  %1259 = vmatprep.mubr.bf16.mxu0 0
  %1260 = vmatmul.mubr.bf16.gmra.mrb[0].mxu0 %v1033
  %v1261 = vpop.f32.mrb[0].mxu0
  %v1262 = vadd.f32 %v1057, %v1261
  %v1263 = vpop.f32.mrb[0].mxu0
  %v1264 = vpop.f32.mrb[0].mxu0
  %v1265 = vadd.f32 %v1057, %v1264
  %v1266 = vpop.f32.mrb[0].mxu0
  %1267 = vdwg.mxu0
  %v1268 = vmax.f32 %v1142, 0.0
  %v1269 = vmax.f32 %v1145, 0.0
  %v1270 = vmax.f32 %v1150, 0.0
  %v1271 = vmax.f32 %v1153, 0.0
  %v1272 = vmax.f32 %v1158, 0.0
  %v1273 = vmax.f32 %v1161, 0.0
  %v1274 = vmax.f32 %v1166, 0.0
  %v1275 = vmax.f32 %v1169, 0.0
  %v1276 = vmax.f32 %v1174, 0.0
  %v1277 = vmax.f32 %v1177, 0.0
  %v1278 = vmax.f32 %v1182, 0.0
  %v1279 = vmax.f32 %v1185, 0.0
  %v1280 = vmax.f32 %v1190, 0.0
  %v1281 = vmax.f32 %v1193, 0.0
  %v1282 = vmax.f32 %v1198, 0.0
  %v1283 = vmax.f32 %v1201, 0.0
  %v1284 = vmax.f32 %v1206, 0.0
  %v1285 = vmax.f32 %v1209, 0.0
  %v1286 = vmax.f32 %v1214, 0.0
  %v1287 = vmax.f32 %v1217, 0.0
  %v1288 = vmax.f32 %v1222, 0.0
  %v1289 = vmax.f32 %v1225, 0.0
  %v1290 = vmax.f32 %v1230, 0.0
  %v1291 = vmax.f32 %v1233, 0.0
  %v1292 = vmax.f32 %v1238, 0.0
  %v1293 = vmax.f32 %v1241, 0.0
  %v1294 = vmax.f32 %v1246, 0.0
  %v1295 = vmax.f32 %v1249, 0.0
  %v1296 = vmax.f32 %v1254, 0.0
  %v1297 = vmax.f32 %v1257, 0.0
  %v1298 = vmax.f32 %v1262, 0.0
  %v1299 = vmax.f32 %v1265, 0.0
  %v1300 = vpack.c.bf16 %v1269, %v1268
  %v1301 = vpack.c.bf16 %v1271, %v1270
  %v1302 = vpack.c.bf16 %v1273, %v1272
  %v1303 = vpack.c.bf16 %v1275, %v1274
  %v1304 = vpack.c.bf16 %v1277, %v1276
  %v1305 = vpack.c.bf16 %v1279, %v1278
  %v1306 = vpack.c.bf16 %v1281, %v1280
  %v1307 = vpack.c.bf16 %v1283, %v1282
  %v1308 = vpack.c.bf16 %v1285, %v1284
  %v1309 = vpack.c.bf16 %v1287, %v1286
  %v1310 = vpack.c.bf16 %v1289, %v1288
  %v1311 = vpack.c.bf16 %v1291, %v1290
  %v1312 = vpack.c.bf16 %v1293, %v1292
  %v1313 = vpack.c.bf16 %v1295, %v1294
  %v1314 = vpack.c.bf16 %v1297, %v1296
  %v1315 = vpack.c.bf16 %v1299, %v1298
  %s1316 = scalar_lea.vmem %s3, 128
  %v1317 = vld [vmem:[%s1316] sm:$0xf]
  %v1318 = vld [vmem:[%s1316 + $0x4] sm:$0xf]
  %v1319 = vld [vmem:[%s1316 + $0x8] sm:$0xf]
  %v1320 = vld [vmem:[%s1316 + $0xc] sm:$0xf]
  %v1321 = vld [vmem:[%s1316 + $0x10] sm:$0xf]
  %v1322 = vld [vmem:[%s1316 + $0x14] sm:$0xf]
  %v1323 = vld [vmem:[%s1316 + $0x18] sm:$0xf]
  %v1324 = vld [vmem:[%s1316 + $0x1c] sm:$0xf]
  %v1325 = vld [vmem:[%s1316 + $0x20] sm:$0xf]
  %v1326 = vld [vmem:[%s1316 + $0x24] sm:$0xf]
  %v1327 = vld [vmem:[%s1316 + $0x28] sm:$0xf]
  %v1328 = vld [vmem:[%s1316 + $0x2c] sm:$0xf]
  %v1329 = vld [vmem:[%s1316 + $0x30] sm:$0xf]
  %v1330 = vld [vmem:[%s1316 + $0x34] sm:$0xf]
  %v1331 = vld [vmem:[%s1316 + $0x38] sm:$0xf]
  %v1332 = vld [vmem:[%s1316 + $0x3c] sm:$0xf]
  %s1333 = scalar_lea.vmem %s4, 2
  %v1334 = vld [vmem:[%s1333] sm:$0x1]
  %v1336 = vlaneseq
  %v1337 = vshrl.u32 %v1336, 7
  %v1338 = vsub.s32 0, %v1337
  %v1339 = vrot.slane %v1334, %v1338
  %v1357 = vunpack.c.l.b16 %v1317
  %v1358 = vunpack.c.l.b16 %v1318
  %v1359 = vunpack.c.l.b16 %v1319
  %v1360 = vunpack.c.l.b16 %v1320
  %v1361 = vunpack.c.l.b16 %v1321
  %v1362 = vunpack.c.l.b16 %v1322
  %v1363 = vunpack.c.l.b16 %v1323
  %v1364 = vunpack.c.l.b16 %v1324
  %v1365 = vunpack.c.l.b16 %v1325
  %v1366 = vunpack.c.l.b16 %v1326
  %v1367 = vunpack.c.l.b16 %v1327
  %v1368 = vunpack.c.l.b16 %v1328
  %v1369 = vunpack.c.l.b16 %v1329
  %v1370 = vunpack.c.l.b16 %v1330
  %v1371 = vunpack.c.l.b16 %v1331
  %v1372 = vunpack.c.l.b16 %v1332
  %v1373 = vpack.c.b16 %v1358, %v1357
  %v1374 = vpack.c.b16 %v1360, %v1359
  %v1375 = vpack.c.b16 %v1362, %v1361
  %v1376 = vpack.c.b16 %v1364, %v1363
  %v1377 = vpack.c.b16 %v1366, %v1365
  %v1378 = vpack.c.b16 %v1368, %v1367
  %v1379 = vpack.c.b16 %v1370, %v1369
  %v1380 = vpack.c.b16 %v1372, %v1371
  %1389 = vmatprep.subr.bf16.mxu0 0
  %1390 = vmatpush1.bf16.msra.mxu0 %v1373
  %1391 = vmatprep.subr.bf16.mxu0 0
  %1392 = vmatpush1.bf16.msra.mxu0 %v1374
  %1393 = vmatprep.subr.bf16.mxu0 0
  %1394 = vmatpush1.bf16.msra.mxu0 %v1375
  %1395 = vmatprep.subr.bf16.mxu0 0
  %1396 = vmatpush1.bf16.msra.mxu0 %v1376
  %1397 = vmatprep.subr.bf16.mxu0 0
  %1398 = vmatpush1.bf16.msra.mxu0 %v1377
  %1399 = vmatprep.subr.bf16.mxu0 0
  %1400 = vmatpush1.bf16.msra.mxu0 %v1378
  %1401 = vmatprep.subr.bf16.mxu0 0
  %1402 = vmatpush1.bf16.msra.mxu0 %v1379
  %1403 = vmatprep.subr.bf16.mxu0 0
  %1404 = vmatpush1.bf16.msra.mxu0 %v1380
  %1405 = vmatprep.subr.bf16.mxu0 0
  %1406 = vmatpush1.bf16.msra.mxu0 0
  %1407 = vmatprep.subr.bf16.mxu0 0
  %1408 = vmatpush1.bf16.msra.mxu0 0
  %1409 = vmatprep.subr.bf16.mxu0 0
  %1410 = vmatpush1.bf16.msra.mxu0 0
  %1411 = vmatprep.subr.bf16.mxu0 0
  %1412 = vmatpush1.bf16.msra.mxu0 0
  %1413 = vmatprep.subr.bf16.mxu0 0
  %1414 = vmatpush1.bf16.msra.mxu0 0
  %1415 = vmatprep.subr.bf16.mxu0 0
  %1416 = vmatpush1.bf16.msra.mxu0 0
  %1417 = vmatprep.subr.bf16.mxu0 0
  %1418 = vmatpush1.bf16.msra.mxu0 0
  %1419 = vmatprep.subr.bf16.mxu0 0
  %1420 = vmatpush1.bf16.msra.mxu0 0
  %1421 = vmatprep.mubr.bf16.mxu0 0
  %1422 = vmatmul.mubr.bf16.gmra.mrb[0].mxu0 %v1300
  %v1423 = vpop.f32.mrb[0].mxu0
  %v1424 = vadd.f32 %v1339, %v1423
  %v1425 = vpop.f32.mrb[0].mxu0
  %v1426 = vpop.f32.mrb[0].mxu0
  %v1427 = vadd.f32 %v1339, %v1426
  %v1428 = vpop.f32.mrb[0].mxu0
  %1429 = vmatprep.mubr.bf16.mxu0 0
  %1430 = vmatmul.mubr.bf16.gmra.mrb[0].mxu0 %v1301
  %v1431 = vpop.f32.mrb[0].mxu0
  %v1432 = vadd.f32 %v1339, %v1431
  %v1433 = vpop.f32.mrb[0].mxu0
  %v1434 = vpop.f32.mrb[0].mxu0
  %v1435 = vadd.f32 %v1339, %v1434
  %v1436 = vpop.f32.mrb[0].mxu0
  %1437 = vmatprep.mubr.bf16.mxu0 0
  %1438 = vmatmul.mubr.bf16.gmra.mrb[0].mxu0 %v1302
  %v1439 = vpop.f32.mrb[0].mxu0
  %v1440 = vadd.f32 %v1339, %v1439
  %v1441 = vpop.f32.mrb[0].mxu0
  %v1442 = vpop.f32.mrb[0].mxu0
  %v1443 = vadd.f32 %v1339, %v1442
  %v1444 = vpop.f32.mrb[0].mxu0
  %1445 = vmatprep.mubr.bf16.mxu0 0
  %1446 = vmatmul.mubr.bf16.gmra.mrb[0].mxu0 %v1303
  %v1447 = vpop.f32.mrb[0].mxu0
  %v1448 = vadd.f32 %v1339, %v1447
  %v1449 = vpop.f32.mrb[0].mxu0
  %v1450 = vpop.f32.mrb[0].mxu0
  %v1451 = vadd.f32 %v1339, %v1450
  %v1452 = vpop.f32.mrb[0].mxu0
  %1453 = vmatprep.mubr.bf16.mxu0 0
  %1454 = vmatmul.mubr.bf16.gmra.mrb[0].mxu0 %v1304
  %v1455 = vpop.f32.mrb[0].mxu0
  %v1456 = vadd.f32 %v1339, %v1455
  %v1457 = vpop.f32.mrb[0].mxu0
  %v1458 = vpop.f32.mrb[0].mxu0
  %v1459 = vadd.f32 %v1339, %v1458
  %v1460 = vpop.f32.mrb[0].mxu0
  %1461 = vmatprep.mubr.bf16.mxu0 0
  %1462 = vmatmul.mubr.bf16.gmra.mrb[0].mxu0 %v1305
  %v1463 = vpop.f32.mrb[0].mxu0
  %v1464 = vadd.f32 %v1339, %v1463
  %v1465 = vpop.f32.mrb[0].mxu0
  %v1466 = vpop.f32.mrb[0].mxu0
  %v1467 = vadd.f32 %v1339, %v1466
  %v1468 = vpop.f32.mrb[0].mxu0
  %1469 = vmatprep.mubr.bf16.mxu0 0
  %1470 = vmatmul.mubr.bf16.gmra.mrb[0].mxu0 %v1306
  %v1471 = vpop.f32.mrb[0].mxu0
  %v1472 = vadd.f32 %v1339, %v1471
  %v1473 = vpop.f32.mrb[0].mxu0
  %v1474 = vpop.f32.mrb[0].mxu0
  %v1475 = vadd.f32 %v1339, %v1474
  %v1476 = vpop.f32.mrb[0].mxu0
  %1477 = vmatprep.mubr.bf16.mxu0 0
  %1478 = vmatmul.mubr.bf16.gmra.mrb[0].mxu0 %v1307
  %v1479 = vpop.f32.mrb[0].mxu0
  %v1480 = vadd.f32 %v1339, %v1479
  %v1481 = vpop.f32.mrb[0].mxu0
  %v1482 = vpop.f32.mrb[0].mxu0
  %v1483 = vadd.f32 %v1339, %v1482
  %v1484 = vpop.f32.mrb[0].mxu0
  %1485 = vmatprep.mubr.bf16.mxu0 0
  %1486 = vmatmul.mubr.bf16.gmra.mrb[0].mxu0 %v1308
  %v1487 = vpop.f32.mrb[0].mxu0
  %v1488 = vadd.f32 %v1339, %v1487
  %v1489 = vpop.f32.mrb[0].mxu0
  %v1490 = vpop.f32.mrb[0].mxu0
  %v1491 = vadd.f32 %v1339, %v1490
  %v1492 = vpop.f32.mrb[0].mxu0
  %1493 = vmatprep.mubr.bf16.mxu0 0
  %1494 = vmatmul.mubr.bf16.gmra.mrb[0].mxu0 %v1309
  %v1495 = vpop.f32.mrb[0].mxu0
  %v1496 = vadd.f32 %v1339, %v1495
  %v1497 = vpop.f32.mrb[0].mxu0
  %v1498 = vpop.f32.mrb[0].mxu0
  %v1499 = vadd.f32 %v1339, %v1498
  %v1500 = vpop.f32.mrb[0].mxu0
  %1501 = vmatprep.mubr.bf16.mxu0 0
  %1502 = vmatmul.mubr.bf16.gmra.mrb[0].mxu0 %v1310
  %v1503 = vpop.f32.mrb[0].mxu0
  %v1504 = vadd.f32 %v1339, %v1503
  %v1505 = vpop.f32.mrb[0].mxu0
  %v1506 = vpop.f32.mrb[0].mxu0
  %v1507 = vadd.f32 %v1339, %v1506
  %v1508 = vpop.f32.mrb[0].mxu0
  %1509 = vmatprep.mubr.bf16.mxu0 0
  %1510 = vmatmul.mubr.bf16.gmra.mrb[0].mxu0 %v1311
  %v1511 = vpop.f32.mrb[0].mxu0
  %v1512 = vadd.f32 %v1339, %v1511
  %v1513 = vpop.f32.mrb[0].mxu0
  %v1514 = vpop.f32.mrb[0].mxu0
  %v1515 = vadd.f32 %v1339, %v1514
  %v1516 = vpop.f32.mrb[0].mxu0
  %1517 = vmatprep.mubr.bf16.mxu0 0
  %1518 = vmatmul.mubr.bf16.gmra.mrb[0].mxu0 %v1312
  %v1519 = vpop.f32.mrb[0].mxu0
  %v1520 = vadd.f32 %v1339, %v1519
  %v1521 = vpop.f32.mrb[0].mxu0
  %v1522 = vpop.f32.mrb[0].mxu0
  %v1523 = vadd.f32 %v1339, %v1522
  %v1524 = vpop.f32.mrb[0].mxu0
  %1525 = vmatprep.mubr.bf16.mxu0 0
  %1526 = vmatmul.mubr.bf16.gmra.mrb[0].mxu0 %v1313
  %v1527 = vpop.f32.mrb[0].mxu0
  %v1528 = vadd.f32 %v1339, %v1527
  %v1529 = vpop.f32.mrb[0].mxu0
  %v1530 = vpop.f32.mrb[0].mxu0
  %v1531 = vadd.f32 %v1339, %v1530
  %v1532 = vpop.f32.mrb[0].mxu0
  %1533 = vmatprep.mubr.bf16.mxu0 0
  %1534 = vmatmul.mubr.bf16.gmra.mrb[0].mxu0 %v1314
  %v1535 = vpop.f32.mrb[0].mxu0
  %v1536 = vadd.f32 %v1339, %v1535
  %v1537 = vpop.f32.mrb[0].mxu0
  %v1538 = vpop.f32.mrb[0].mxu0
  %v1539 = vadd.f32 %v1339, %v1538
  %v1540 = vpop.f32.mrb[0].mxu0
  %1541 = vmatprep.mubr.bf16.mxu0 0
  %1542 = vmatmul.mubr.bf16.gmra.mrb[0].mxu0 %v1315
  %v1543 = vpop.f32.mrb[0].mxu0
  %v1544 = vadd.f32 %v1339, %v1543
  %v1545 = vpop.f32.mrb[0].mxu0
  %v1546 = vpop.f32.mrb[0].mxu0
  %v1547 = vadd.f32 %v1339, %v1546
  %v1548 = vpop.f32.mrb[0].mxu0
  %1549 = vdwg.mxu0
  %v1550 = vmax.f32 %v1424, 0.0
  %v1551 = vmax.f32 %v1427, 0.0
  %v1552 = vmax.f32 %v1432, 0.0
  %v1553 = vmax.f32 %v1435, 0.0
  %v1554 = vmax.f32 %v1440, 0.0
  %v1555 = vmax.f32 %v1443, 0.0
  %v1556 = vmax.f32 %v1448, 0.0
  %v1557 = vmax.f32 %v1451, 0.0
  %v1558 = vmax.f32 %v1456, 0.0
  %v1559 = vmax.f32 %v1459, 0.0
  %v1560 = vmax.f32 %v1464, 0.0
  %v1561 = vmax.f32 %v1467, 0.0
  %v1562 = vmax.f32 %v1472, 0.0
  %v1563 = vmax.f32 %v1475, 0.0
  %v1564 = vmax.f32 %v1480, 0.0
  %v1565 = vmax.f32 %v1483, 0.0
  %v1566 = vmax.f32 %v1488, 0.0
  %v1567 = vmax.f32 %v1491, 0.0
  %v1568 = vmax.f32 %v1496, 0.0
  %v1569 = vmax.f32 %v1499, 0.0
  %v1570 = vmax.f32 %v1504, 0.0
  %v1571 = vmax.f32 %v1507, 0.0
  %v1572 = vmax.f32 %v1512, 0.0
  %v1573 = vmax.f32 %v1515, 0.0
  %v1574 = vmax.f32 %v1520, 0.0
  %v1575 = vmax.f32 %v1523, 0.0
  %v1576 = vmax.f32 %v1528, 0.0
  %v1577 = vmax.f32 %v1531, 0.0
  %v1578 = vmax.f32 %v1536, 0.0
  %v1579 = vmax.f32 %v1539, 0.0
  %v1580 = vmax.f32 %v1544, 0.0
  %v1581 = vmax.f32 %v1547, 0.0
  %v1582 = vpack.c.bf16 %v1551, %v1550
  %v1583 = vpack.c.bf16 %v1553, %v1552
  %v1584 = vpack.c.bf16 %v1555, %v1554
  %v1585 = vpack.c.bf16 %v1557, %v1556
  %v1586 = vpack.c.bf16 %v1559, %v1558
  %v1587 = vpack.c.bf16 %v1561, %v1560
  %v1588 = vpack.c.bf16 %v1563, %v1562
  %v1589 = vpack.c.bf16 %v1565, %v1564
  %v1590 = vpack.c.bf16 %v1567, %v1566
  %v1591 = vpack.c.bf16 %v1569, %v1568
  %v1592 = vpack.c.bf16 %v1571, %v1570
  %v1593 = vpack.c.bf16 %v1573, %v1572
  %v1594 = vpack.c.bf16 %v1575, %v1574
  %v1595 = vpack.c.bf16 %v1577, %v1576
  %v1596 = vpack.c.bf16 %v1579, %v1578
  %v1597 = vpack.c.bf16 %v1581, %v1580
  %s1598 = scalar_lea.vmem %s3, 192
  %v1599 = vld [vmem:[%s1598] sm:$0xf]
  %v1600 = vld [vmem:[%s1598 + $0x4] sm:$0xf]
  %v1601 = vld [vmem:[%s1598 + $0x8] sm:$0xf]
  %v1602 = vld [vmem:[%s1598 + $0xc] sm:$0xf]
  %v1603 = vld [vmem:[%s1598 + $0x10] sm:$0xf]
  %v1604 = vld [vmem:[%s1598 + $0x14] sm:$0xf]
  %v1605 = vld [vmem:[%s1598 + $0x18] sm:$0xf]
  %v1606 = vld [vmem:[%s1598 + $0x1c] sm:$0xf]
  %v1607 = vld [vmem:[%s1598 + $0x20] sm:$0xf]
  %v1608 = vld [vmem:[%s1598 + $0x24] sm:$0xf]
  %v1609 = vld [vmem:[%s1598 + $0x28] sm:$0xf]
  %v1610 = vld [vmem:[%s1598 + $0x2c] sm:$0xf]
  %v1611 = vld [vmem:[%s1598 + $0x30] sm:$0xf]
  %v1612 = vld [vmem:[%s1598 + $0x34] sm:$0xf]
  %v1613 = vld [vmem:[%s1598 + $0x38] sm:$0xf]
  %v1614 = vld [vmem:[%s1598 + $0x3c] sm:$0xf]
  %s1615 = scalar_lea.vmem %s4, 3
  %v1616 = vld [vmem:[%s1615] sm:$0x1]
  %v1618 = vlaneseq
  %v1619 = vshrl.u32 %v1618, 7
  %v1620 = vsub.s32 0, %v1619
  %v1621 = vrot.slane %v1616, %v1620
  %v1639 = vunpack.c.l.b16 %v1599
  %v1640 = vunpack.c.l.b16 %v1600
  %v1641 = vunpack.c.l.b16 %v1601
  %v1642 = vunpack.c.l.b16 %v1602
  %v1643 = vunpack.c.l.b16 %v1603
  %v1644 = vunpack.c.l.b16 %v1604
  %v1645 = vunpack.c.l.b16 %v1605
  %v1646 = vunpack.c.l.b16 %v1606
  %v1647 = vunpack.c.l.b16 %v1607
  %v1648 = vunpack.c.l.b16 %v1608
  %v1649 = vunpack.c.l.b16 %v1609
  %v1650 = vunpack.c.l.b16 %v1610
  %v1651 = vunpack.c.l.b16 %v1611
  %v1652 = vunpack.c.l.b16 %v1612
  %v1653 = vunpack.c.l.b16 %v1613
  %v1654 = vunpack.c.l.b16 %v1614
  %v1655 = vpack.c.b16 %v1640, %v1639
  %v1656 = vpack.c.b16 %v1642, %v1641
  %v1657 = vpack.c.b16 %v1644, %v1643
  %v1658 = vpack.c.b16 %v1646, %v1645
  %v1659 = vpack.c.b16 %v1648, %v1647
  %v1660 = vpack.c.b16 %v1650, %v1649
  %v1661 = vpack.c.b16 %v1652, %v1651
  %v1662 = vpack.c.b16 %v1654, %v1653
  %1671 = vmatprep.subr.bf16.mxu0 0
  %1672 = vmatpush1.bf16.msra.mxu0 %v1655
  %1673 = vmatprep.subr.bf16.mxu0 0
  %1674 = vmatpush1.bf16.msra.mxu0 %v1656
  %1675 = vmatprep.subr.bf16.mxu0 0
  %1676 = vmatpush1.bf16.msra.mxu0 %v1657
  %1677 = vmatprep.subr.bf16.mxu0 0
  %1678 = vmatpush1.bf16.msra.mxu0 %v1658
  %1679 = vmatprep.subr.bf16.mxu0 0
  %1680 = vmatpush1.bf16.msra.mxu0 %v1659
  %1681 = vmatprep.subr.bf16.mxu0 0
  %1682 = vmatpush1.bf16.msra.mxu0 %v1660
  %1683 = vmatprep.subr.bf16.mxu0 0
  %1684 = vmatpush1.bf16.msra.mxu0 %v1661
  %1685 = vmatprep.subr.bf16.mxu0 0
  %1686 = vmatpush1.bf16.msra.mxu0 %v1662
  %1687 = vmatprep.subr.bf16.mxu0 0
  %1688 = vmatpush1.bf16.msra.mxu0 0
  %1689 = vmatprep.subr.bf16.mxu0 0
  %1690 = vmatpush1.bf16.msra.mxu0 0
  %1691 = vmatprep.subr.bf16.mxu0 0
  %1692 = vmatpush1.bf16.msra.mxu0 0
  %1693 = vmatprep.subr.bf16.mxu0 0
  %1694 = vmatpush1.bf16.msra.mxu0 0
  %1695 = vmatprep.subr.bf16.mxu0 0
  %1696 = vmatpush1.bf16.msra.mxu0 0
  %1697 = vmatprep.subr.bf16.mxu0 0
  %1698 = vmatpush1.bf16.msra.mxu0 0
  %1699 = vmatprep.subr.bf16.mxu0 0
  %1700 = vmatpush1.bf16.msra.mxu0 0
  %1701 = vmatprep.subr.bf16.mxu0 0
  %1702 = vmatpush1.bf16.msra.mxu0 0
  %1703 = vmatprep.mubr.bf16.mxu0 0
  %1704 = vmatmul.mubr.bf16.gmra.mrb[0].mxu0 %v1582
  %v1705 = vpop.f32.mrb[0].mxu0
  %v1706 = vadd.f32 %v1621, %v1705
  %v1707 = vpop.f32.mrb[0].mxu0
  %v1708 = vpop.f32.mrb[0].mxu0
  %v1709 = vadd.f32 %v1621, %v1708
  %v1710 = vpop.f32.mrb[0].mxu0
  %1711 = vmatprep.mubr.bf16.mxu0 0
  %1712 = vmatmul.mubr.bf16.gmra.mrb[0].mxu0 %v1583
  %v1713 = vpop.f32.mrb[0].mxu0
  %v1714 = vadd.f32 %v1621, %v1713
  %v1715 = vpop.f32.mrb[0].mxu0
  %v1716 = vpop.f32.mrb[0].mxu0
  %v1717 = vadd.f32 %v1621, %v1716
  %v1718 = vpop.f32.mrb[0].mxu0
  %1719 = vmatprep.mubr.bf16.mxu0 0
  %1720 = vmatmul.mubr.bf16.gmra.mrb[0].mxu0 %v1584
  %v1721 = vpop.f32.mrb[0].mxu0
  %v1722 = vadd.f32 %v1621, %v1721
  %v1723 = vpop.f32.mrb[0].mxu0
  %v1724 = vpop.f32.mrb[0].mxu0
  %v1725 = vadd.f32 %v1621, %v1724
  %v1726 = vpop.f32.mrb[0].mxu0
  %1727 = vmatprep.mubr.bf16.mxu0 0
  %1728 = vmatmul.mubr.bf16.gmra.mrb[0].mxu0 %v1585
  %v1729 = vpop.f32.mrb[0].mxu0
  %v1730 = vadd.f32 %v1621, %v1729
  %v1731 = vpop.f32.mrb[0].mxu0
  %v1732 = vpop.f32.mrb[0].mxu0
  %v1733 = vadd.f32 %v1621, %v1732
  %v1734 = vpop.f32.mrb[0].mxu0
  %1735 = vmatprep.mubr.bf16.mxu0 0
  %1736 = vmatmul.mubr.bf16.gmra.mrb[0].mxu0 %v1586
  %v1737 = vpop.f32.mrb[0].mxu0
  %v1738 = vadd.f32 %v1621, %v1737
  %v1739 = vpop.f32.mrb[0].mxu0
  %v1740 = vpop.f32.mrb[0].mxu0
  %v1741 = vadd.f32 %v1621, %v1740
  %v1742 = vpop.f32.mrb[0].mxu0
  %1743 = vmatprep.mubr.bf16.mxu0 0
  %1744 = vmatmul.mubr.bf16.gmra.mrb[0].mxu0 %v1587
  %v1745 = vpop.f32.mrb[0].mxu0
  %v1746 = vadd.f32 %v1621, %v1745
  %v1747 = vpop.f32.mrb[0].mxu0
  %v1748 = vpop.f32.mrb[0].mxu0
  %v1749 = vadd.f32 %v1621, %v1748
  %v1750 = vpop.f32.mrb[0].mxu0
  %1751 = vmatprep.mubr.bf16.mxu0 0
  %1752 = vmatmul.mubr.bf16.gmra.mrb[0].mxu0 %v1588
  %v1753 = vpop.f32.mrb[0].mxu0
  %v1754 = vadd.f32 %v1621, %v1753
  %v1755 = vpop.f32.mrb[0].mxu0
  %v1756 = vpop.f32.mrb[0].mxu0
  %v1757 = vadd.f32 %v1621, %v1756
  %v1758 = vpop.f32.mrb[0].mxu0
  %1759 = vmatprep.mubr.bf16.mxu0 0
  %1760 = vmatmul.mubr.bf16.gmra.mrb[0].mxu0 %v1589
  %v1761 = vpop.f32.mrb[0].mxu0
  %v1762 = vadd.f32 %v1621, %v1761
  %v1763 = vpop.f32.mrb[0].mxu0
  %v1764 = vpop.f32.mrb[0].mxu0
  %v1765 = vadd.f32 %v1621, %v1764
  %v1766 = vpop.f32.mrb[0].mxu0
  %1767 = vmatprep.mubr.bf16.mxu0 0
  %1768 = vmatmul.mubr.bf16.gmra.mrb[0].mxu0 %v1590
  %v1769 = vpop.f32.mrb[0].mxu0
  %v1770 = vadd.f32 %v1621, %v1769
  %v1771 = vpop.f32.mrb[0].mxu0
  %v1772 = vpop.f32.mrb[0].mxu0
  %v1773 = vadd.f32 %v1621, %v1772
  %v1774 = vpop.f32.mrb[0].mxu0
  %1775 = vmatprep.mubr.bf16.mxu0 0
  %1776 = vmatmul.mubr.bf16.gmra.mrb[0].mxu0 %v1591
  %v1777 = vpop.f32.mrb[0].mxu0
  %v1778 = vadd.f32 %v1621, %v1777
  %v1779 = vpop.f32.mrb[0].mxu0
  %v1780 = vpop.f32.mrb[0].mxu0
  %v1781 = vadd.f32 %v1621, %v1780
  %v1782 = vpop.f32.mrb[0].mxu0
  %1783 = vmatprep.mubr.bf16.mxu0 0
  %1784 = vmatmul.mubr.bf16.gmra.mrb[0].mxu0 %v1592
  %v1785 = vpop.f32.mrb[0].mxu0
  %v1786 = vadd.f32 %v1621, %v1785
  %v1787 = vpop.f32.mrb[0].mxu0
  %v1788 = vpop.f32.mrb[0].mxu0
  %v1789 = vadd.f32 %v1621, %v1788
  %v1790 = vpop.f32.mrb[0].mxu0
  %1791 = vmatprep.mubr.bf16.mxu0 0
  %1792 = vmatmul.mubr.bf16.gmra.mrb[0].mxu0 %v1593
  %v1793 = vpop.f32.mrb[0].mxu0
  %v1794 = vadd.f32 %v1621, %v1793
  %v1795 = vpop.f32.mrb[0].mxu0
  %v1796 = vpop.f32.mrb[0].mxu0
  %v1797 = vadd.f32 %v1621, %v1796
  %v1798 = vpop.f32.mrb[0].mxu0
  %1799 = vmatprep.mubr.bf16.mxu0 0
  %1800 = vmatmul.mubr.bf16.gmra.mrb[0].mxu0 %v1594
  %v1801 = vpop.f32.mrb[0].mxu0
  %v1802 = vadd.f32 %v1621, %v1801
  %v1803 = vpop.f32.mrb[0].mxu0
  %v1804 = vpop.f32.mrb[0].mxu0
  %v1805 = vadd.f32 %v1621, %v1804
  %v1806 = vpop.f32.mrb[0].mxu0
  %1807 = vmatprep.mubr.bf16.mxu0 0
  %1808 = vmatmul.mubr.bf16.gmra.mrb[0].mxu0 %v1595
  %v1809 = vpop.f32.mrb[0].mxu0
  %v1810 = vadd.f32 %v1621, %v1809
  %v1811 = vpop.f32.mrb[0].mxu0
  %v1812 = vpop.f32.mrb[0].mxu0
  %v1813 = vadd.f32 %v1621, %v1812
  %v1814 = vpop.f32.mrb[0].mxu0
  %1815 = vmatprep.mubr.bf16.mxu0 0
  %1816 = vmatmul.mubr.bf16.gmra.mrb[0].mxu0 %v1596
  %v1817 = vpop.f32.mrb[0].mxu0
  %v1818 = vadd.f32 %v1621, %v1817
  %v1819 = vpop.f32.mrb[0].mxu0
  %v1820 = vpop.f32.mrb[0].mxu0
  %v1821 = vadd.f32 %v1621, %v1820
  %v1822 = vpop.f32.mrb[0].mxu0
  %1823 = vmatprep.mubr.bf16.mxu0 0
  %1824 = vmatmul.mubr.bf16.gmra.mrb[0].mxu0 %v1597
  %v1825 = vpop.f32.mrb[0].mxu0
  %v1826 = vadd.f32 %v1621, %v1825
  %v1827 = vpop.f32.mrb[0].mxu0
  %v1828 = vpop.f32.mrb[0].mxu0
  %v1829 = vadd.f32 %v1621, %v1828
  %v1830 = vpop.f32.mrb[0].mxu0
  %1831 = vdwg.mxu0
  %v1832 = vmax.f32 %v1706, 0.0
  %v1833 = vmax.f32 %v1709, 0.0
  %v1834 = vmax.f32 %v1714, 0.0
  %v1835 = vmax.f32 %v1717, 0.0
  %v1836 = vmax.f32 %v1722, 0.0
  %v1837 = vmax.f32 %v1725, 0.0
  %v1838 = vmax.f32 %v1730, 0.0
  %v1839 = vmax.f32 %v1733, 0.0
  %v1840 = vmax.f32 %v1738, 0.0
  %v1841 = vmax.f32 %v1741, 0.0
  %v1842 = vmax.f32 %v1746, 0.0
  %v1843 = vmax.f32 %v1749, 0.0
  %v1844 = vmax.f32 %v1754, 0.0
  %v1845 = vmax.f32 %v1757, 0.0
  %v1846 = vmax.f32 %v1762, 0.0
  %v1847 = vmax.f32 %v1765, 0.0
  %v1848 = vmax.f32 %v1770, 0.0
  %v1849 = vmax.f32 %v1773, 0.0
  %v1850 = vmax.f32 %v1778, 0.0
  %v1851 = vmax.f32 %v1781, 0.0
  %v1852 = vmax.f32 %v1786, 0.0
  %v1853 = vmax.f32 %v1789, 0.0
  %v1854 = vmax.f32 %v1794, 0.0
  %v1855 = vmax.f32 %v1797, 0.0
  %v1856 = vmax.f32 %v1802, 0.0
  %v1857 = vmax.f32 %v1805, 0.0
  %v1858 = vmax.f32 %v1810, 0.0
  %v1859 = vmax.f32 %v1813, 0.0
  %v1860 = vmax.f32 %v1818, 0.0
  %v1861 = vmax.f32 %v1821, 0.0
  %v1862 = vmax.f32 %v1826, 0.0
  %v1863 = vmax.f32 %v1829, 0.0
  %v1864 = vpack.c.bf16 %v1833, %v1832
  %v1865 = vpack.c.bf16 %v1835, %v1834
  %v1866 = vpack.c.bf16 %v1837, %v1836
  %v1867 = vpack.c.bf16 %v1839, %v1838
  %v1868 = vpack.c.bf16 %v1841, %v1840
  %v1869 = vpack.c.bf16 %v1843, %v1842
  %v1870 = vpack.c.bf16 %v1845, %v1844
  %v1871 = vpack.c.bf16 %v1847, %v1846
  %v1872 = vpack.c.bf16 %v1849, %v1848
  %v1873 = vpack.c.bf16 %v1851, %v1850
  %v1874 = vpack.c.bf16 %v1853, %v1852
  %v1875 = vpack.c.bf16 %v1855, %v1854
  %v1876 = vpack.c.bf16 %v1857, %v1856
  %v1877 = vpack.c.bf16 %v1859, %v1858
  %v1878 = vpack.c.bf16 %v1861, %v1860
  %v1879 = vpack.c.bf16 %v1863, %v1862
  %s1880 = scalar_lea.vmem %s3, 256
  %v1881 = vld [vmem:[%s1880] sm:$0xf]
  %v1882 = vld [vmem:[%s1880 + $0x4] sm:$0xf]
  %v1883 = vld [vmem:[%s1880 + $0x8] sm:$0xf]
  %v1884 = vld [vmem:[%s1880 + $0xc] sm:$0xf]
  %v1885 = vld [vmem:[%s1880 + $0x10] sm:$0xf]
  %v1886 = vld [vmem:[%s1880 + $0x14] sm:$0xf]
  %v1887 = vld [vmem:[%s1880 + $0x18] sm:$0xf]
  %v1888 = vld [vmem:[%s1880 + $0x1c] sm:$0xf]
  %v1889 = vld [vmem:[%s1880 + $0x20] sm:$0xf]
  %v1890 = vld [vmem:[%s1880 + $0x24] sm:$0xf]
  %v1891 = vld [vmem:[%s1880 + $0x28] sm:$0xf]
  %v1892 = vld [vmem:[%s1880 + $0x2c] sm:$0xf]
  %v1893 = vld [vmem:[%s1880 + $0x30] sm:$0xf]
  %v1894 = vld [vmem:[%s1880 + $0x34] sm:$0xf]
  %v1895 = vld [vmem:[%s1880 + $0x38] sm:$0xf]
  %v1896 = vld [vmem:[%s1880 + $0x3c] sm:$0xf]
  %s1897 = scalar_lea.vmem %s4, 4
  %v1898 = vld [vmem:[%s1897] sm:$0x1]
  %v1900 = vlaneseq
  %v1901 = vshrl.u32 %v1900, 7
  %v1902 = vsub.s32 0, %v1901
  %v1903 = vrot.slane %v1898, %v1902
  %v1921 = vunpack.c.l.b16 %v1881
  %v1922 = vunpack.c.l.b16 %v1882
  %v1923 = vunpack.c.l.b16 %v1883
  %v1924 = vunpack.c.l.b16 %v1884
  %v1925 = vunpack.c.l.b16 %v1885
  %v1926 = vunpack.c.l.b16 %v1886
  %v1927 = vunpack.c.l.b16 %v1887
  %v1928 = vunpack.c.l.b16 %v1888
  %v1929 = vunpack.c.l.b16 %v1889
  %v1930 = vunpack.c.l.b16 %v1890
  %v1931 = vunpack.c.l.b16 %v1891
  %v1932 = vunpack.c.l.b16 %v1892
  %v1933 = vunpack.c.l.b16 %v1893
  %v1934 = vunpack.c.l.b16 %v1894
  %v1935 = vunpack.c.l.b16 %v1895
  %v1936 = vunpack.c.l.b16 %v1896
  %v1937 = vpack.c.b16 %v1922, %v1921
  %v1938 = vpack.c.b16 %v1924, %v1923
  %v1939 = vpack.c.b16 %v1926, %v1925
  %v1940 = vpack.c.b16 %v1928, %v1927
  %v1941 = vpack.c.b16 %v1930, %v1929
  %v1942 = vpack.c.b16 %v1932, %v1931
  %v1943 = vpack.c.b16 %v1934, %v1933
  %v1944 = vpack.c.b16 %v1936, %v1935
  %1953 = vmatprep.subr.bf16.mxu0 0
  %1954 = vmatpush1.bf16.msra.mxu0 %v1937
  %1955 = vmatprep.subr.bf16.mxu0 0
  %1956 = vmatpush1.bf16.msra.mxu0 %v1938
  %1957 = vmatprep.subr.bf16.mxu0 0
  %1958 = vmatpush1.bf16.msra.mxu0 %v1939
  %1959 = vmatprep.subr.bf16.mxu0 0
  %1960 = vmatpush1.bf16.msra.mxu0 %v1940
  %1961 = vmatprep.subr.bf16.mxu0 0
  %1962 = vmatpush1.bf16.msra.mxu0 %v1941
  %1963 = vmatprep.subr.bf16.mxu0 0
  %1964 = vmatpush1.bf16.msra.mxu0 %v1942
  %1965 = vmatprep.subr.bf16.mxu0 0
  %1966 = vmatpush1.bf16.msra.mxu0 %v1943
  %1967 = vmatprep.subr.bf16.mxu0 0
  %1968 = vmatpush1.bf16.msra.mxu0 %v1944
  %1969 = vmatprep.subr.bf16.mxu0 0
  %1970 = vmatpush1.bf16.msra.mxu0 0
  %1971 = vmatprep.subr.bf16.mxu0 0
  %1972 = vmatpush1.bf16.msra.mxu0 0
  %1973 = vmatprep.subr.bf16.mxu0 0
  %1974 = vmatpush1.bf16.msra.mxu0 0
  %1975 = vmatprep.subr.bf16.mxu0 0
  %1976 = vmatpush1.bf16.msra.mxu0 0
  %1977 = vmatprep.subr.bf16.mxu0 0
  %1978 = vmatpush1.bf16.msra.mxu0 0
  %1979 = vmatprep.subr.bf16.mxu0 0
  %1980 = vmatpush1.bf16.msra.mxu0 0
  %1981 = vmatprep.subr.bf16.mxu0 0
  %1982 = vmatpush1.bf16.msra.mxu0 0
  %1983 = vmatprep.subr.bf16.mxu0 0
  %1984 = vmatpush1.bf16.msra.mxu0 0
  %1985 = vmatprep.mubr.bf16.mxu0 0
  %1986 = vmatmul.mubr.bf16.gmra.mrb[0].mxu0 %v1864
  %v1987 = vpop.f32.mrb[0].mxu0
  %v1988 = vadd.f32 %v1903, %v1987
  %v1989 = vpop.f32.mrb[0].mxu0
  %v1990 = vpop.f32.mrb[0].mxu0
  %v1991 = vadd.f32 %v1903, %v1990
  %v1992 = vpop.f32.mrb[0].mxu0
  %1993 = vmatprep.mubr.bf16.mxu0 0
  %1994 = vmatmul.mubr.bf16.gmra.mrb[0].mxu0 %v1865
  %v1995 = vpop.f32.mrb[0].mxu0
  %v1996 = vadd.f32 %v1903, %v1995
  %v1997 = vpop.f32.mrb[0].mxu0
  %v1998 = vpop.f32.mrb[0].mxu0
  %v1999 = vadd.f32 %v1903, %v1998
  %v2000 = vpop.f32.mrb[0].mxu0
  %2001 = vmatprep.mubr.bf16.mxu0 0
  %2002 = vmatmul.mubr.bf16.gmra.mrb[0].mxu0 %v1866
  %v2003 = vpop.f32.mrb[0].mxu0
  %v2004 = vadd.f32 %v1903, %v2003
  %v2005 = vpop.f32.mrb[0].mxu0
  %v2006 = vpop.f32.mrb[0].mxu0
  %v2007 = vadd.f32 %v1903, %v2006
  %v2008 = vpop.f32.mrb[0].mxu0
  %2009 = vmatprep.mubr.bf16.mxu0 0
  %2010 = vmatmul.mubr.bf16.gmra.mrb[0].mxu0 %v1867
  %v2011 = vpop.f32.mrb[0].mxu0
  %v2012 = vadd.f32 %v1903, %v2011
  %v2013 = vpop.f32.mrb[0].mxu0
  %v2014 = vpop.f32.mrb[0].mxu0
  %v2015 = vadd.f32 %v1903, %v2014
  %v2016 = vpop.f32.mrb[0].mxu0
  %2017 = vmatprep.mubr.bf16.mxu0 0
  %2018 = vmatmul.mubr.bf16.gmra.mrb[0].mxu0 %v1868
  %v2019 = vpop.f32.mrb[0].mxu0
  %v2020 = vadd.f32 %v1903, %v2019
  %v2021 = vpop.f32.mrb[0].mxu0
  %v2022 = vpop.f32.mrb[0].mxu0
  %v2023 = vadd.f32 %v1903, %v2022
  %v2024 = vpop.f32.mrb[0].mxu0
  %2025 = vmatprep.mubr.bf16.mxu0 0
  %2026 = vmatmul.mubr.bf16.gmra.mrb[0].mxu0 %v1869
  %v2027 = vpop.f32.mrb[0].mxu0
  %v2028 = vadd.f32 %v1903, %v2027
  %v2029 = vpop.f32.mrb[0].mxu0
  %v2030 = vpop.f32.mrb[0].mxu0
  %v2031 = vadd.f32 %v1903, %v2030
  %v2032 = vpop.f32.mrb[0].mxu0
  %2033 = vmatprep.mubr.bf16.mxu0 0
  %2034 = vmatmul.mubr.bf16.gmra.mrb[0].mxu0 %v1870
  %v2035 = vpop.f32.mrb[0].mxu0
  %v2036 = vadd.f32 %v1903, %v2035
  %v2037 = vpop.f32.mrb[0].mxu0
  %v2038 = vpop.f32.mrb[0].mxu0
  %v2039 = vadd.f32 %v1903, %v2038
  %v2040 = vpop.f32.mrb[0].mxu0
  %2041 = vmatprep.mubr.bf16.mxu0 0
  %2042 = vmatmul.mubr.bf16.gmra.mrb[0].mxu0 %v1871
  %v2043 = vpop.f32.mrb[0].mxu0
  %v2044 = vadd.f32 %v1903, %v2043
  %v2045 = vpop.f32.mrb[0].mxu0
  %v2046 = vpop.f32.mrb[0].mxu0
  %v2047 = vadd.f32 %v1903, %v2046
  %v2048 = vpop.f32.mrb[0].mxu0
  %2049 = vmatprep.mubr.bf16.mxu0 0
  %2050 = vmatmul.mubr.bf16.gmra.mrb[0].mxu0 %v1872
  %v2051 = vpop.f32.mrb[0].mxu0
  %v2052 = vadd.f32 %v1903, %v2051
  %v2053 = vpop.f32.mrb[0].mxu0
  %v2054 = vpop.f32.mrb[0].mxu0
  %v2055 = vadd.f32 %v1903, %v2054
  %v2056 = vpop.f32.mrb[0].mxu0
  %2057 = vmatprep.mubr.bf16.mxu0 0
  %2058 = vmatmul.mubr.bf16.gmra.mrb[0].mxu0 %v1873
  %v2059 = vpop.f32.mrb[0].mxu0
  %v2060 = vadd.f32 %v1903, %v2059
  %v2061 = vpop.f32.mrb[0].mxu0
  %v2062 = vpop.f32.mrb[0].mxu0
  %v2063 = vadd.f32 %v1903, %v2062
  %v2064 = vpop.f32.mrb[0].mxu0
  %2065 = vmatprep.mubr.bf16.mxu0 0
  %2066 = vmatmul.mubr.bf16.gmra.mrb[0].mxu0 %v1874
  %v2067 = vpop.f32.mrb[0].mxu0
  %v2068 = vadd.f32 %v1903, %v2067
  %v2069 = vpop.f32.mrb[0].mxu0
  %v2070 = vpop.f32.mrb[0].mxu0
  %v2071 = vadd.f32 %v1903, %v2070
  %v2072 = vpop.f32.mrb[0].mxu0
  %2073 = vmatprep.mubr.bf16.mxu0 0
  %2074 = vmatmul.mubr.bf16.gmra.mrb[0].mxu0 %v1875
  %v2075 = vpop.f32.mrb[0].mxu0
  %v2076 = vadd.f32 %v1903, %v2075
  %v2077 = vpop.f32.mrb[0].mxu0
  %v2078 = vpop.f32.mrb[0].mxu0
  %v2079 = vadd.f32 %v1903, %v2078
  %v2080 = vpop.f32.mrb[0].mxu0
  %2081 = vmatprep.mubr.bf16.mxu0 0
  %2082 = vmatmul.mubr.bf16.gmra.mrb[0].mxu0 %v1876
  %v2083 = vpop.f32.mrb[0].mxu0
  %v2084 = vadd.f32 %v1903, %v2083
  %v2085 = vpop.f32.mrb[0].mxu0
  %v2086 = vpop.f32.mrb[0].mxu0
  %v2087 = vadd.f32 %v1903, %v2086
  %v2088 = vpop.f32.mrb[0].mxu0
  %2089 = vmatprep.mubr.bf16.mxu0 0
  %2090 = vmatmul.mubr.bf16.gmra.mrb[0].mxu0 %v1877
  %v2091 = vpop.f32.mrb[0].mxu0
  %v2092 = vadd.f32 %v1903, %v2091
  %v2093 = vpop.f32.mrb[0].mxu0
  %v2094 = vpop.f32.mrb[0].mxu0
  %v2095 = vadd.f32 %v1903, %v2094
  %v2096 = vpop.f32.mrb[0].mxu0
  %2097 = vmatprep.mubr.bf16.mxu0 0
  %2098 = vmatmul.mubr.bf16.gmra.mrb[0].mxu0 %v1878
  %v2099 = vpop.f32.mrb[0].mxu0
  %v2100 = vadd.f32 %v1903, %v2099
  %v2101 = vpop.f32.mrb[0].mxu0
  %v2102 = vpop.f32.mrb[0].mxu0
  %v2103 = vadd.f32 %v1903, %v2102
  %v2104 = vpop.f32.mrb[0].mxu0
  %2105 = vmatprep.mubr.bf16.mxu0 0
  %2106 = vmatmul.mubr.bf16.gmra.mrb[0].mxu0 %v1879
  %v2107 = vpop.f32.mrb[0].mxu0
  %v2108 = vadd.f32 %v1903, %v2107
  %v2109 = vpop.f32.mrb[0].mxu0
  %v2110 = vpop.f32.mrb[0].mxu0
  %v2111 = vadd.f32 %v1903, %v2110
  %v2112 = vpop.f32.mrb[0].mxu0
  %2113 = vdwg.mxu0
  %v2114 = vmax.f32 %v1988, 0.0
  %v2115 = vmax.f32 %v1991, 0.0
  %v2116 = vmax.f32 %v1996, 0.0
  %v2117 = vmax.f32 %v1999, 0.0
  %v2118 = vmax.f32 %v2004, 0.0
  %v2119 = vmax.f32 %v2007, 0.0
  %v2120 = vmax.f32 %v2012, 0.0
  %v2121 = vmax.f32 %v2015, 0.0
  %v2122 = vmax.f32 %v2020, 0.0
  %v2123 = vmax.f32 %v2023, 0.0
  %v2124 = vmax.f32 %v2028, 0.0
  %v2125 = vmax.f32 %v2031, 0.0
  %v2126 = vmax.f32 %v2036, 0.0
  %v2127 = vmax.f32 %v2039, 0.0
  %v2128 = vmax.f32 %v2044, 0.0
  %v2129 = vmax.f32 %v2047, 0.0
  %v2130 = vmax.f32 %v2052, 0.0
  %v2131 = vmax.f32 %v2055, 0.0
  %v2132 = vmax.f32 %v2060, 0.0
  %v2133 = vmax.f32 %v2063, 0.0
  %v2134 = vmax.f32 %v2068, 0.0
  %v2135 = vmax.f32 %v2071, 0.0
  %v2136 = vmax.f32 %v2076, 0.0
  %v2137 = vmax.f32 %v2079, 0.0
  %v2138 = vmax.f32 %v2084, 0.0
  %v2139 = vmax.f32 %v2087, 0.0
  %v2140 = vmax.f32 %v2092, 0.0
  %v2141 = vmax.f32 %v2095, 0.0
  %v2142 = vmax.f32 %v2100, 0.0
  %v2143 = vmax.f32 %v2103, 0.0
  %v2144 = vmax.f32 %v2108, 0.0
  %v2145 = vmax.f32 %v2111, 0.0
  %v2146 = vpack.c.bf16 %v2115, %v2114
  %v2147 = vpack.c.bf16 %v2117, %v2116
  %v2148 = vpack.c.bf16 %v2119, %v2118
  %v2149 = vpack.c.bf16 %v2121, %v2120
  %v2150 = vpack.c.bf16 %v2123, %v2122
  %v2151 = vpack.c.bf16 %v2125, %v2124
  %v2152 = vpack.c.bf16 %v2127, %v2126
  %v2153 = vpack.c.bf16 %v2129, %v2128
  %v2154 = vpack.c.bf16 %v2131, %v2130
  %v2155 = vpack.c.bf16 %v2133, %v2132
  %v2156 = vpack.c.bf16 %v2135, %v2134
  %v2157 = vpack.c.bf16 %v2137, %v2136
  %v2158 = vpack.c.bf16 %v2139, %v2138
  %v2159 = vpack.c.bf16 %v2141, %v2140
  %v2160 = vpack.c.bf16 %v2143, %v2142
  %v2161 = vpack.c.bf16 %v2145, %v2144
  %s2162 = scalar_lea.vmem %s3, 320
  %v2163 = vld [vmem:[%s2162] sm:$0xf]
  %v2164 = vld [vmem:[%s2162 + $0x4] sm:$0xf]
  %v2165 = vld [vmem:[%s2162 + $0x8] sm:$0xf]
  %v2166 = vld [vmem:[%s2162 + $0xc] sm:$0xf]
  %v2167 = vld [vmem:[%s2162 + $0x10] sm:$0xf]
  %v2168 = vld [vmem:[%s2162 + $0x14] sm:$0xf]
  %v2169 = vld [vmem:[%s2162 + $0x18] sm:$0xf]
  %v2170 = vld [vmem:[%s2162 + $0x1c] sm:$0xf]
  %v2171 = vld [vmem:[%s2162 + $0x20] sm:$0xf]
  %v2172 = vld [vmem:[%s2162 + $0x24] sm:$0xf]
  %v2173 = vld [vmem:[%s2162 + $0x28] sm:$0xf]
  %v2174 = vld [vmem:[%s2162 + $0x2c] sm:$0xf]
  %v2175 = vld [vmem:[%s2162 + $0x30] sm:$0xf]
  %v2176 = vld [vmem:[%s2162 + $0x34] sm:$0xf]
  %v2177 = vld [vmem:[%s2162 + $0x38] sm:$0xf]
  %v2178 = vld [vmem:[%s2162 + $0x3c] sm:$0xf]
  %s2179 = scalar_lea.vmem %s4, 5
  %v2180 = vld [vmem:[%s2179] sm:$0x1]
  %v2182 = vlaneseq
  %v2183 = vshrl.u32 %v2182, 7
  %v2184 = vsub.s32 0, %v2183
  %v2185 = vrot.slane %v2180, %v2184
  %v2203 = vunpack.c.l.b16 %v2163
  %v2204 = vunpack.c.l.b16 %v2164
  %v2205 = vunpack.c.l.b16 %v2165
  %v2206 = vunpack.c.l.b16 %v2166
  %v2207 = vunpack.c.l.b16 %v2167
  %v2208 = vunpack.c.l.b16 %v2168
  %v2209 = vunpack.c.l.b16 %v2169
  %v2210 = vunpack.c.l.b16 %v2170
  %v2211 = vunpack.c.l.b16 %v2171
  %v2212 = vunpack.c.l.b16 %v2172
  %v2213 = vunpack.c.l.b16 %v2173
  %v2214 = vunpack.c.l.b16 %v2174
  %v2215 = vunpack.c.l.b16 %v2175
  %v2216 = vunpack.c.l.b16 %v2176
  %v2217 = vunpack.c.l.b16 %v2177
  %v2218 = vunpack.c.l.b16 %v2178
  %v2219 = vpack.c.b16 %v2204, %v2203
  %v2220 = vpack.c.b16 %v2206, %v2205
  %v2221 = vpack.c.b16 %v2208, %v2207
  %v2222 = vpack.c.b16 %v2210, %v2209
  %v2223 = vpack.c.b16 %v2212, %v2211
  %v2224 = vpack.c.b16 %v2214, %v2213
  %v2225 = vpack.c.b16 %v2216, %v2215
  %v2226 = vpack.c.b16 %v2218, %v2217
  %2235 = vmatprep.subr.bf16.mxu0 0
  %2236 = vmatpush1.bf16.msra.mxu0 %v2219
  %2237 = vmatprep.subr.bf16.mxu0 0
  %2238 = vmatpush1.bf16.msra.mxu0 %v2220
  %2239 = vmatprep.subr.bf16.mxu0 0
  %2240 = vmatpush1.bf16.msra.mxu0 %v2221
  %2241 = vmatprep.subr.bf16.mxu0 0
  %2242 = vmatpush1.bf16.msra.mxu0 %v2222
  %2243 = vmatprep.subr.bf16.mxu0 0
  %2244 = vmatpush1.bf16.msra.mxu0 %v2223
  %2245 = vmatprep.subr.bf16.mxu0 0
  %2246 = vmatpush1.bf16.msra.mxu0 %v2224
  %2247 = vmatprep.subr.bf16.mxu0 0
  %2248 = vmatpush1.bf16.msra.mxu0 %v2225
  %2249 = vmatprep.subr.bf16.mxu0 0
  %2250 = vmatpush1.bf16.msra.mxu0 %v2226
  %2251 = vmatprep.subr.bf16.mxu0 0
  %2252 = vmatpush1.bf16.msra.mxu0 0
  %2253 = vmatprep.subr.bf16.mxu0 0
  %2254 = vmatpush1.bf16.msra.mxu0 0
  %2255 = vmatprep.subr.bf16.mxu0 0
  %2256 = vmatpush1.bf16.msra.mxu0 0
  %2257 = vmatprep.subr.bf16.mxu0 0
  %2258 = vmatpush1.bf16.msra.mxu0 0
  %2259 = vmatprep.subr.bf16.mxu0 0
  %2260 = vmatpush1.bf16.msra.mxu0 0
  %2261 = vmatprep.subr.bf16.mxu0 0
  %2262 = vmatpush1.bf16.msra.mxu0 0
  %2263 = vmatprep.subr.bf16.mxu0 0
  %2264 = vmatpush1.bf16.msra.mxu0 0
  %2265 = vmatprep.subr.bf16.mxu0 0
  %2266 = vmatpush1.bf16.msra.mxu0 0
  %2267 = vmatprep.mubr.bf16.mxu0 0
  %2268 = vmatmul.mubr.bf16.gmra.mrb[0].mxu0 %v2146
  %v2269 = vpop.f32.mrb[0].mxu0
  %v2270 = vadd.f32 %v2185, %v2269
  %v2271 = vpop.f32.mrb[0].mxu0
  %v2272 = vpop.f32.mrb[0].mxu0
  %v2273 = vadd.f32 %v2185, %v2272
  %v2274 = vpop.f32.mrb[0].mxu0
  %2275 = vmatprep.mubr.bf16.mxu0 0
  %2276 = vmatmul.mubr.bf16.gmra.mrb[0].mxu0 %v2147
  %v2277 = vpop.f32.mrb[0].mxu0
  %v2278 = vadd.f32 %v2185, %v2277
  %v2279 = vpop.f32.mrb[0].mxu0
  %v2280 = vpop.f32.mrb[0].mxu0
  %v2281 = vadd.f32 %v2185, %v2280
  %v2282 = vpop.f32.mrb[0].mxu0
  %2283 = vmatprep.mubr.bf16.mxu0 0
  %2284 = vmatmul.mubr.bf16.gmra.mrb[0].mxu0 %v2148
  %v2285 = vpop.f32.mrb[0].mxu0
  %v2286 = vadd.f32 %v2185, %v2285
  %v2287 = vpop.f32.mrb[0].mxu0
  %v2288 = vpop.f32.mrb[0].mxu0
  %v2289 = vadd.f32 %v2185, %v2288
  %v2290 = vpop.f32.mrb[0].mxu0
  %2291 = vmatprep.mubr.bf16.mxu0 0
  %2292 = vmatmul.mubr.bf16.gmra.mrb[0].mxu0 %v2149
  %v2293 = vpop.f32.mrb[0].mxu0
  %v2294 = vadd.f32 %v2185, %v2293
  %v2295 = vpop.f32.mrb[0].mxu0
  %v2296 = vpop.f32.mrb[0].mxu0
  %v2297 = vadd.f32 %v2185, %v2296
  %v2298 = vpop.f32.mrb[0].mxu0
  %2299 = vmatprep.mubr.bf16.mxu0 0
  %2300 = vmatmul.mubr.bf16.gmra.mrb[0].mxu0 %v2150
  %v2301 = vpop.f32.mrb[0].mxu0
  %v2302 = vadd.f32 %v2185, %v2301
  %v2303 = vpop.f32.mrb[0].mxu0
  %v2304 = vpop.f32.mrb[0].mxu0
  %v2305 = vadd.f32 %v2185, %v2304
  %v2306 = vpop.f32.mrb[0].mxu0
  %2307 = vmatprep.mubr.bf16.mxu0 0
  %2308 = vmatmul.mubr.bf16.gmra.mrb[0].mxu0 %v2151
  %v2309 = vpop.f32.mrb[0].mxu0
  %v2310 = vadd.f32 %v2185, %v2309
  %v2311 = vpop.f32.mrb[0].mxu0
  %v2312 = vpop.f32.mrb[0].mxu0
  %v2313 = vadd.f32 %v2185, %v2312
  %v2314 = vpop.f32.mrb[0].mxu0
  %2315 = vmatprep.mubr.bf16.mxu0 0
  %2316 = vmatmul.mubr.bf16.gmra.mrb[0].mxu0 %v2152
  %v2317 = vpop.f32.mrb[0].mxu0
  %v2318 = vadd.f32 %v2185, %v2317
  %v2319 = vpop.f32.mrb[0].mxu0
  %v2320 = vpop.f32.mrb[0].mxu0
  %v2321 = vadd.f32 %v2185, %v2320
  %v2322 = vpop.f32.mrb[0].mxu0
  %2323 = vmatprep.mubr.bf16.mxu0 0
  %2324 = vmatmul.mubr.bf16.gmra.mrb[0].mxu0 %v2153
  %v2325 = vpop.f32.mrb[0].mxu0
  %v2326 = vadd.f32 %v2185, %v2325
  %v2327 = vpop.f32.mrb[0].mxu0
  %v2328 = vpop.f32.mrb[0].mxu0
  %v2329 = vadd.f32 %v2185, %v2328
  %v2330 = vpop.f32.mrb[0].mxu0
  %2331 = vmatprep.mubr.bf16.mxu0 0
  %2332 = vmatmul.mubr.bf16.gmra.mrb[0].mxu0 %v2154
  %v2333 = vpop.f32.mrb[0].mxu0
  %v2334 = vadd.f32 %v2185, %v2333
  %v2335 = vpop.f32.mrb[0].mxu0
  %v2336 = vpop.f32.mrb[0].mxu0
  %v2337 = vadd.f32 %v2185, %v2336
  %v2338 = vpop.f32.mrb[0].mxu0
  %2339 = vmatprep.mubr.bf16.mxu0 0
  %2340 = vmatmul.mubr.bf16.gmra.mrb[0].mxu0 %v2155
  %v2341 = vpop.f32.mrb[0].mxu0
  %v2342 = vadd.f32 %v2185, %v2341
  %v2343 = vpop.f32.mrb[0].mxu0
  %v2344 = vpop.f32.mrb[0].mxu0
  %v2345 = vadd.f32 %v2185, %v2344
  %v2346 = vpop.f32.mrb[0].mxu0
  %2347 = vmatprep.mubr.bf16.mxu0 0
  %2348 = vmatmul.mubr.bf16.gmra.mrb[0].mxu0 %v2156
  %v2349 = vpop.f32.mrb[0].mxu0
  %v2350 = vadd.f32 %v2185, %v2349
  %v2351 = vpop.f32.mrb[0].mxu0
  %v2352 = vpop.f32.mrb[0].mxu0
  %v2353 = vadd.f32 %v2185, %v2352
  %v2354 = vpop.f32.mrb[0].mxu0
  %2355 = vmatprep.mubr.bf16.mxu0 0
  %2356 = vmatmul.mubr.bf16.gmra.mrb[0].mxu0 %v2157
  %v2357 = vpop.f32.mrb[0].mxu0
  %v2358 = vadd.f32 %v2185, %v2357
  %v2359 = vpop.f32.mrb[0].mxu0
  %v2360 = vpop.f32.mrb[0].mxu0
  %v2361 = vadd.f32 %v2185, %v2360
  %v2362 = vpop.f32.mrb[0].mxu0
  %2363 = vmatprep.mubr.bf16.mxu0 0
  %2364 = vmatmul.mubr.bf16.gmra.mrb[0].mxu0 %v2158
  %v2365 = vpop.f32.mrb[0].mxu0
  %v2366 = vadd.f32 %v2185, %v2365
  %v2367 = vpop.f32.mrb[0].mxu0
  %v2368 = vpop.f32.mrb[0].mxu0
  %v2369 = vadd.f32 %v2185, %v2368
  %v2370 = vpop.f32.mrb[0].mxu0
  %2371 = vmatprep.mubr.bf16.mxu0 0
  %2372 = vmatmul.mubr.bf16.gmra.mrb[0].mxu0 %v2159
  %v2373 = vpop.f32.mrb[0].mxu0
  %v2374 = vadd.f32 %v2185, %v2373
  %v2375 = vpop.f32.mrb[0].mxu0
  %v2376 = vpop.f32.mrb[0].mxu0
  %v2377 = vadd.f32 %v2185, %v2376
  %v2378 = vpop.f32.mrb[0].mxu0
  %2379 = vmatprep.mubr.bf16.mxu0 0
  %2380 = vmatmul.mubr.bf16.gmra.mrb[0].mxu0 %v2160
  %v2381 = vpop.f32.mrb[0].mxu0
  %v2382 = vadd.f32 %v2185, %v2381
  %v2383 = vpop.f32.mrb[0].mxu0
  %v2384 = vpop.f32.mrb[0].mxu0
  %v2385 = vadd.f32 %v2185, %v2384
  %v2386 = vpop.f32.mrb[0].mxu0
  %2387 = vmatprep.mubr.bf16.mxu0 0
  %2388 = vmatmul.mubr.bf16.gmra.mrb[0].mxu0 %v2161
  %v2389 = vpop.f32.mrb[0].mxu0
  %v2390 = vadd.f32 %v2185, %v2389
  %v2391 = vpop.f32.mrb[0].mxu0
  %v2392 = vpop.f32.mrb[0].mxu0
  %v2393 = vadd.f32 %v2185, %v2392
  %v2394 = vpop.f32.mrb[0].mxu0
  %2395 = vdwg.mxu0
  %v2396 = vmax.f32 %v2270, 0.0
  %v2397 = vmax.f32 %v2273, 0.0
  %v2398 = vmax.f32 %v2278, 0.0
  %v2399 = vmax.f32 %v2281, 0.0
  %v2400 = vmax.f32 %v2286, 0.0
  %v2401 = vmax.f32 %v2289, 0.0
  %v2402 = vmax.f32 %v2294, 0.0
  %v2403 = vmax.f32 %v2297, 0.0
  %v2404 = vmax.f32 %v2302, 0.0
  %v2405 = vmax.f32 %v2305, 0.0
  %v2406 = vmax.f32 %v2310, 0.0
  %v2407 = vmax.f32 %v2313, 0.0
  %v2408 = vmax.f32 %v2318, 0.0
  %v2409 = vmax.f32 %v2321, 0.0
  %v2410 = vmax.f32 %v2326, 0.0
  %v2411 = vmax.f32 %v2329, 0.0
  %v2412 = vmax.f32 %v2334, 0.0
  %v2413 = vmax.f32 %v2337, 0.0
  %v2414 = vmax.f32 %v2342, 0.0
  %v2415 = vmax.f32 %v2345, 0.0
  %v2416 = vmax.f32 %v2350, 0.0
  %v2417 = vmax.f32 %v2353, 0.0
  %v2418 = vmax.f32 %v2358, 0.0
  %v2419 = vmax.f32 %v2361, 0.0
  %v2420 = vmax.f32 %v2366, 0.0
  %v2421 = vmax.f32 %v2369, 0.0
  %v2422 = vmax.f32 %v2374, 0.0
  %v2423 = vmax.f32 %v2377, 0.0
  %v2424 = vmax.f32 %v2382, 0.0
  %v2425 = vmax.f32 %v2385, 0.0
  %v2426 = vmax.f32 %v2390, 0.0
  %v2427 = vmax.f32 %v2393, 0.0
  %v2428 = vpack.c.bf16 %v2397, %v2396
  %v2429 = vpack.c.bf16 %v2399, %v2398
  %v2430 = vpack.c.bf16 %v2401, %v2400
  %v2431 = vpack.c.bf16 %v2403, %v2402
  %v2432 = vpack.c.bf16 %v2405, %v2404
  %v2433 = vpack.c.bf16 %v2407, %v2406
  %v2434 = vpack.c.bf16 %v2409, %v2408
  %v2435 = vpack.c.bf16 %v2411, %v2410
  %v2436 = vpack.c.bf16 %v2413, %v2412
  %v2437 = vpack.c.bf16 %v2415, %v2414
  %v2438 = vpack.c.bf16 %v2417, %v2416
  %v2439 = vpack.c.bf16 %v2419, %v2418
  %v2440 = vpack.c.bf16 %v2421, %v2420
  %v2441 = vpack.c.bf16 %v2423, %v2422
  %v2442 = vpack.c.bf16 %v2425, %v2424
  %v2443 = vpack.c.bf16 %v2427, %v2426
  %s2444 = scalar_lea.vmem %s3, 384
  %v2445 = vld [vmem:[%s2444] sm:$0xf]
  %v2446 = vld [vmem:[%s2444 + $0x4] sm:$0xf]
  %v2447 = vld [vmem:[%s2444 + $0x8] sm:$0xf]
  %v2448 = vld [vmem:[%s2444 + $0xc] sm:$0xf]
  %v2449 = vld [vmem:[%s2444 + $0x10] sm:$0xf]
  %v2450 = vld [vmem:[%s2444 + $0x14] sm:$0xf]
  %v2451 = vld [vmem:[%s2444 + $0x18] sm:$0xf]
  %v2452 = vld [vmem:[%s2444 + $0x1c] sm:$0xf]
  %v2453 = vld [vmem:[%s2444 + $0x20] sm:$0xf]
  %v2454 = vld [vmem:[%s2444 + $0x24] sm:$0xf]
  %v2455 = vld [vmem:[%s2444 + $0x28] sm:$0xf]
  %v2456 = vld [vmem:[%s2444 + $0x2c] sm:$0xf]
  %v2457 = vld [vmem:[%s2444 + $0x30] sm:$0xf]
  %v2458 = vld [vmem:[%s2444 + $0x34] sm:$0xf]
  %v2459 = vld [vmem:[%s2444 + $0x38] sm:$0xf]
  %v2460 = vld [vmem:[%s2444 + $0x3c] sm:$0xf]
  %s2461 = scalar_lea.vmem %s4, 6
  %v2462 = vld [vmem:[%s2461] sm:$0x1]
  %v2464 = vlaneseq
  %v2465 = vshrl.u32 %v2464, 7
  %v2466 = vsub.s32 0, %v2465
  %v2467 = vrot.slane %v2462, %v2466
  %v2485 = vunpack.c.l.b16 %v2445
  %v2486 = vunpack.c.l.b16 %v2446
  %v2487 = vunpack.c.l.b16 %v2447
  %v2488 = vunpack.c.l.b16 %v2448
  %v2489 = vunpack.c.l.b16 %v2449
  %v2490 = vunpack.c.l.b16 %v2450
  %v2491 = vunpack.c.l.b16 %v2451
  %v2492 = vunpack.c.l.b16 %v2452
  %v2493 = vunpack.c.l.b16 %v2453
  %v2494 = vunpack.c.l.b16 %v2454
  %v2495 = vunpack.c.l.b16 %v2455
  %v2496 = vunpack.c.l.b16 %v2456
  %v2497 = vunpack.c.l.b16 %v2457
  %v2498 = vunpack.c.l.b16 %v2458
  %v2499 = vunpack.c.l.b16 %v2459
  %v2500 = vunpack.c.l.b16 %v2460
  %v2501 = vpack.c.b16 %v2486, %v2485
  %v2502 = vpack.c.b16 %v2488, %v2487
  %v2503 = vpack.c.b16 %v2490, %v2489
  %v2504 = vpack.c.b16 %v2492, %v2491
  %v2505 = vpack.c.b16 %v2494, %v2493
  %v2506 = vpack.c.b16 %v2496, %v2495
  %v2507 = vpack.c.b16 %v2498, %v2497
  %v2508 = vpack.c.b16 %v2500, %v2499
  %2517 = vmatprep.subr.bf16.mxu0 0
  %2518 = vmatpush1.bf16.msra.mxu0 %v2501
  %2519 = vmatprep.subr.bf16.mxu0 0
  %2520 = vmatpush1.bf16.msra.mxu0 %v2502
  %2521 = vmatprep.subr.bf16.mxu0 0
  %2522 = vmatpush1.bf16.msra.mxu0 %v2503
  %2523 = vmatprep.subr.bf16.mxu0 0
  %2524 = vmatpush1.bf16.msra.mxu0 %v2504
  %2525 = vmatprep.subr.bf16.mxu0 0
  %2526 = vmatpush1.bf16.msra.mxu0 %v2505
  %2527 = vmatprep.subr.bf16.mxu0 0
  %2528 = vmatpush1.bf16.msra.mxu0 %v2506
  %2529 = vmatprep.subr.bf16.mxu0 0
  %2530 = vmatpush1.bf16.msra.mxu0 %v2507
  %2531 = vmatprep.subr.bf16.mxu0 0
  %2532 = vmatpush1.bf16.msra.mxu0 %v2508
  %2533 = vmatprep.subr.bf16.mxu0 0
  %2534 = vmatpush1.bf16.msra.mxu0 0
  %2535 = vmatprep.subr.bf16.mxu0 0
  %2536 = vmatpush1.bf16.msra.mxu0 0
  %2537 = vmatprep.subr.bf16.mxu0 0
  %2538 = vmatpush1.bf16.msra.mxu0 0
  %2539 = vmatprep.subr.bf16.mxu0 0
  %2540 = vmatpush1.bf16.msra.mxu0 0
  %2541 = vmatprep.subr.bf16.mxu0 0
  %2542 = vmatpush1.bf16.msra.mxu0 0
  %2543 = vmatprep.subr.bf16.mxu0 0
  %2544 = vmatpush1.bf16.msra.mxu0 0
  %2545 = vmatprep.subr.bf16.mxu0 0
  %2546 = vmatpush1.bf16.msra.mxu0 0
  %2547 = vmatprep.subr.bf16.mxu0 0
  %2548 = vmatpush1.bf16.msra.mxu0 0
  %2549 = vmatprep.mubr.bf16.mxu0 0
  %2550 = vmatmul.mubr.bf16.gmra.mrb[0].mxu0 %v2428
  %v2551 = vpop.f32.mrb[0].mxu0
  %v2552 = vadd.f32 %v2467, %v2551
  %v2553 = vpop.f32.mrb[0].mxu0
  %v2554 = vpop.f32.mrb[0].mxu0
  %v2555 = vadd.f32 %v2467, %v2554
  %v2556 = vpop.f32.mrb[0].mxu0
  %2557 = vmatprep.mubr.bf16.mxu0 0
  %2558 = vmatmul.mubr.bf16.gmra.mrb[0].mxu0 %v2429
  %v2559 = vpop.f32.mrb[0].mxu0
  %v2560 = vadd.f32 %v2467, %v2559
  %v2561 = vpop.f32.mrb[0].mxu0
  %v2562 = vpop.f32.mrb[0].mxu0
  %v2563 = vadd.f32 %v2467, %v2562
  %v2564 = vpop.f32.mrb[0].mxu0
  %2565 = vmatprep.mubr.bf16.mxu0 0
  %2566 = vmatmul.mubr.bf16.gmra.mrb[0].mxu0 %v2430
  %v2567 = vpop.f32.mrb[0].mxu0
  %v2568 = vadd.f32 %v2467, %v2567
  %v2569 = vpop.f32.mrb[0].mxu0
  %v2570 = vpop.f32.mrb[0].mxu0
  %v2571 = vadd.f32 %v2467, %v2570
  %v2572 = vpop.f32.mrb[0].mxu0
  %2573 = vmatprep.mubr.bf16.mxu0 0
  %2574 = vmatmul.mubr.bf16.gmra.mrb[0].mxu0 %v2431
  %v2575 = vpop.f32.mrb[0].mxu0
  %v2576 = vadd.f32 %v2467, %v2575
  %v2577 = vpop.f32.mrb[0].mxu0
  %v2578 = vpop.f32.mrb[0].mxu0
  %v2579 = vadd.f32 %v2467, %v2578
  %v2580 = vpop.f32.mrb[0].mxu0
  %2581 = vmatprep.mubr.bf16.mxu0 0
  %2582 = vmatmul.mubr.bf16.gmra.mrb[0].mxu0 %v2432
  %v2583 = vpop.f32.mrb[0].mxu0
  %v2584 = vadd.f32 %v2467, %v2583
  %v2585 = vpop.f32.mrb[0].mxu0
  %v2586 = vpop.f32.mrb[0].mxu0
  %v2587 = vadd.f32 %v2467, %v2586
  %v2588 = vpop.f32.mrb[0].mxu0
  %2589 = vmatprep.mubr.bf16.mxu0 0
  %2590 = vmatmul.mubr.bf16.gmra.mrb[0].mxu0 %v2433
  %v2591 = vpop.f32.mrb[0].mxu0
  %v2592 = vadd.f32 %v2467, %v2591
  %v2593 = vpop.f32.mrb[0].mxu0
  %v2594 = vpop.f32.mrb[0].mxu0
  %v2595 = vadd.f32 %v2467, %v2594
  %v2596 = vpop.f32.mrb[0].mxu0
  %2597 = vmatprep.mubr.bf16.mxu0 0
  %2598 = vmatmul.mubr.bf16.gmra.mrb[0].mxu0 %v2434
  %v2599 = vpop.f32.mrb[0].mxu0
  %v2600 = vadd.f32 %v2467, %v2599
  %v2601 = vpop.f32.mrb[0].mxu0
  %v2602 = vpop.f32.mrb[0].mxu0
  %v2603 = vadd.f32 %v2467, %v2602
  %v2604 = vpop.f32.mrb[0].mxu0
  %2605 = vmatprep.mubr.bf16.mxu0 0
  %2606 = vmatmul.mubr.bf16.gmra.mrb[0].mxu0 %v2435
  %v2607 = vpop.f32.mrb[0].mxu0
  %v2608 = vadd.f32 %v2467, %v2607
  %v2609 = vpop.f32.mrb[0].mxu0
  %v2610 = vpop.f32.mrb[0].mxu0
  %v2611 = vadd.f32 %v2467, %v2610
  %v2612 = vpop.f32.mrb[0].mxu0
  %2613 = vmatprep.mubr.bf16.mxu0 0
  %2614 = vmatmul.mubr.bf16.gmra.mrb[0].mxu0 %v2436
  %v2615 = vpop.f32.mrb[0].mxu0
  %v2616 = vadd.f32 %v2467, %v2615
  %v2617 = vpop.f32.mrb[0].mxu0
  %v2618 = vpop.f32.mrb[0].mxu0
  %v2619 = vadd.f32 %v2467, %v2618
  %v2620 = vpop.f32.mrb[0].mxu0
  %2621 = vmatprep.mubr.bf16.mxu0 0
  %2622 = vmatmul.mubr.bf16.gmra.mrb[0].mxu0 %v2437
  %v2623 = vpop.f32.mrb[0].mxu0
  %v2624 = vadd.f32 %v2467, %v2623
  %v2625 = vpop.f32.mrb[0].mxu0
  %v2626 = vpop.f32.mrb[0].mxu0
  %v2627 = vadd.f32 %v2467, %v2626
  %v2628 = vpop.f32.mrb[0].mxu0
  %2629 = vmatprep.mubr.bf16.mxu0 0
  %2630 = vmatmul.mubr.bf16.gmra.mrb[0].mxu0 %v2438
  %v2631 = vpop.f32.mrb[0].mxu0
  %v2632 = vadd.f32 %v2467, %v2631
  %v2633 = vpop.f32.mrb[0].mxu0
  %v2634 = vpop.f32.mrb[0].mxu0
  %v2635 = vadd.f32 %v2467, %v2634
  %v2636 = vpop.f32.mrb[0].mxu0
  %2637 = vmatprep.mubr.bf16.mxu0 0
  %2638 = vmatmul.mubr.bf16.gmra.mrb[0].mxu0 %v2439
  %v2639 = vpop.f32.mrb[0].mxu0
  %v2640 = vadd.f32 %v2467, %v2639
  %v2641 = vpop.f32.mrb[0].mxu0
  %v2642 = vpop.f32.mrb[0].mxu0
  %v2643 = vadd.f32 %v2467, %v2642
  %v2644 = vpop.f32.mrb[0].mxu0
  %2645 = vmatprep.mubr.bf16.mxu0 0
  %2646 = vmatmul.mubr.bf16.gmra.mrb[0].mxu0 %v2440
  %v2647 = vpop.f32.mrb[0].mxu0
  %v2648 = vadd.f32 %v2467, %v2647
  %v2649 = vpop.f32.mrb[0].mxu0
  %v2650 = vpop.f32.mrb[0].mxu0
  %v2651 = vadd.f32 %v2467, %v2650
  %v2652 = vpop.f32.mrb[0].mxu0
  %2653 = vmatprep.mubr.bf16.mxu0 0
  %2654 = vmatmul.mubr.bf16.gmra.mrb[0].mxu0 %v2441
  %v2655 = vpop.f32.mrb[0].mxu0
  %v2656 = vadd.f32 %v2467, %v2655
  %v2657 = vpop.f32.mrb[0].mxu0
  %v2658 = vpop.f32.mrb[0].mxu0
  %v2659 = vadd.f32 %v2467, %v2658
  %v2660 = vpop.f32.mrb[0].mxu0
  %2661 = vmatprep.mubr.bf16.mxu0 0
  %2662 = vmatmul.mubr.bf16.gmra.mrb[0].mxu0 %v2442
  %v2663 = vpop.f32.mrb[0].mxu0
  %v2664 = vadd.f32 %v2467, %v2663
  %v2665 = vpop.f32.mrb[0].mxu0
  %v2666 = vpop.f32.mrb[0].mxu0
  %v2667 = vadd.f32 %v2467, %v2666
  %v2668 = vpop.f32.mrb[0].mxu0
  %2669 = vmatprep.mubr.bf16.mxu0 0
  %2670 = vmatmul.mubr.bf16.gmra.mrb[0].mxu0 %v2443
  %v2671 = vpop.f32.mrb[0].mxu0
  %v2672 = vadd.f32 %v2467, %v2671
  %v2673 = vpop.f32.mrb[0].mxu0
  %v2674 = vpop.f32.mrb[0].mxu0
  %v2675 = vadd.f32 %v2467, %v2674
  %v2676 = vpop.f32.mrb[0].mxu0
  %2677 = vdwg.mxu0
  %v2678 = vmax.f32 %v2552, 0.0
  %v2679 = vmax.f32 %v2555, 0.0
  %v2680 = vmax.f32 %v2560, 0.0
  %v2681 = vmax.f32 %v2563, 0.0
  %v2682 = vmax.f32 %v2568, 0.0
  %v2683 = vmax.f32 %v2571, 0.0
  %v2684 = vmax.f32 %v2576, 0.0
  %v2685 = vmax.f32 %v2579, 0.0
  %v2686 = vmax.f32 %v2584, 0.0
  %v2687 = vmax.f32 %v2587, 0.0
  %v2688 = vmax.f32 %v2592, 0.0
  %v2689 = vmax.f32 %v2595, 0.0
  %v2690 = vmax.f32 %v2600, 0.0
  %v2691 = vmax.f32 %v2603, 0.0
  %v2692 = vmax.f32 %v2608, 0.0
  %v2693 = vmax.f32 %v2611, 0.0
  %v2694 = vmax.f32 %v2616, 0.0
  %v2695 = vmax.f32 %v2619, 0.0
  %v2696 = vmax.f32 %v2624, 0.0
  %v2697 = vmax.f32 %v2627, 0.0
  %v2698 = vmax.f32 %v2632, 0.0
  %v2699 = vmax.f32 %v2635, 0.0
  %v2700 = vmax.f32 %v2640, 0.0
  %v2701 = vmax.f32 %v2643, 0.0
  %v2702 = vmax.f32 %v2648, 0.0
  %v2703 = vmax.f32 %v2651, 0.0
  %v2704 = vmax.f32 %v2656, 0.0
  %v2705 = vmax.f32 %v2659, 0.0
  %v2706 = vmax.f32 %v2664, 0.0
  %v2707 = vmax.f32 %v2667, 0.0
  %v2708 = vmax.f32 %v2672, 0.0
  %v2709 = vmax.f32 %v2675, 0.0
  %v2710 = vpack.c.bf16 %v2679, %v2678
  %v2711 = vpack.c.bf16 %v2681, %v2680
  %v2712 = vpack.c.bf16 %v2683, %v2682
  %v2713 = vpack.c.bf16 %v2685, %v2684
  %v2714 = vpack.c.bf16 %v2687, %v2686
  %v2715 = vpack.c.bf16 %v2689, %v2688
  %v2716 = vpack.c.bf16 %v2691, %v2690
  %v2717 = vpack.c.bf16 %v2693, %v2692
  %v2718 = vpack.c.bf16 %v2695, %v2694
  %v2719 = vpack.c.bf16 %v2697, %v2696
  %v2720 = vpack.c.bf16 %v2699, %v2698
  %v2721 = vpack.c.bf16 %v2701, %v2700
  %v2722 = vpack.c.bf16 %v2703, %v2702
  %v2723 = vpack.c.bf16 %v2705, %v2704
  %v2724 = vpack.c.bf16 %v2707, %v2706
  %v2725 = vpack.c.bf16 %v2709, %v2708
  %v2727 = vlaneseq
  %v2728 = vshrl.u32 %v2727, 7
  %v2729 = vsub.s32 0, %v2728
  %v2730 = vrot.slane %v47, %v2729
  %v2748 = vunpack.c.l.b16 %v31
  %v2749 = vunpack.c.l.b16 %v32
  %v2750 = vunpack.c.l.b16 %v33
  %v2751 = vunpack.c.l.b16 %v34
  %v2752 = vunpack.c.l.b16 %v35
  %v2753 = vunpack.c.l.b16 %v36
  %v2754 = vunpack.c.l.b16 %v37
  %v2755 = vunpack.c.l.b16 %v38
  %v2756 = vunpack.c.l.b16 %v39
  %v2757 = vunpack.c.l.b16 %v40
  %v2758 = vunpack.c.l.b16 %v41
  %v2759 = vunpack.c.l.b16 %v42
  %v2760 = vunpack.c.l.b16 %v43
  %v2761 = vunpack.c.l.b16 %v44
  %v2762 = vunpack.c.l.b16 %v45
  %v2763 = vunpack.c.l.b16 %v46
  %v2764 = vpack.c.b16 %v2749, %v2748
  %v2765 = vpack.c.b16 %v2751, %v2750
  %v2766 = vpack.c.b16 %v2753, %v2752
  %v2767 = vpack.c.b16 %v2755, %v2754
  %v2768 = vpack.c.b16 %v2757, %v2756
  %v2769 = vpack.c.b16 %v2759, %v2758
  %v2770 = vpack.c.b16 %v2761, %v2760
  %v2771 = vpack.c.b16 %v2763, %v2762
  %2780 = vmatprep.subr.bf16.mxu0 0
  %2781 = vmatpush1.bf16.msra.mxu0 %v2764
  %2782 = vmatprep.subr.bf16.mxu0 0
  %2783 = vmatpush1.bf16.msra.mxu0 %v2765
  %2784 = vmatprep.subr.bf16.mxu0 0
  %2785 = vmatpush1.bf16.msra.mxu0 %v2766
  %2786 = vmatprep.subr.bf16.mxu0 0
  %2787 = vmatpush1.bf16.msra.mxu0 %v2767
  %2788 = vmatprep.subr.bf16.mxu0 0
  %2789 = vmatpush1.bf16.msra.mxu0 %v2768
  %2790 = vmatprep.subr.bf16.mxu0 0
  %2791 = vmatpush1.bf16.msra.mxu0 %v2769
  %2792 = vmatprep.subr.bf16.mxu0 0
  %2793 = vmatpush1.bf16.msra.mxu0 %v2770
  %2794 = vmatprep.subr.bf16.mxu0 0
  %2795 = vmatpush1.bf16.msra.mxu0 %v2771
  %2796 = vmatprep.subr.bf16.mxu0 0
  %2797 = vmatpush1.bf16.msra.mxu0 0
  %2798 = vmatprep.subr.bf16.mxu0 0
  %2799 = vmatpush1.bf16.msra.mxu0 0
  %2800 = vmatprep.subr.bf16.mxu0 0
  %2801 = vmatpush1.bf16.msra.mxu0 0
  %2802 = vmatprep.subr.bf16.mxu0 0
  %2803 = vmatpush1.bf16.msra.mxu0 0
  %2804 = vmatprep.subr.bf16.mxu0 0
  %2805 = vmatpush1.bf16.msra.mxu0 0
  %2806 = vmatprep.subr.bf16.mxu0 0
  %2807 = vmatpush1.bf16.msra.mxu0 0
  %2808 = vmatprep.subr.bf16.mxu0 0
  %2809 = vmatpush1.bf16.msra.mxu0 0
  %2810 = vmatprep.subr.bf16.mxu0 0
  %2811 = vmatpush1.bf16.msra.mxu0 0
  %2812 = vmatprep.mubr.bf16.mxu0 0
  %2813 = vmatmul.mubr.bf16.gmra.mrb[0].mxu0 %v2710
  %v2814 = vpop.f32.mrb[0].mxu0
  %v2815 = vadd.f32 %v2730, %v2814
  %v2816 = vpop.f32.mrb[0].mxu0
  %v2817 = vpop.f32.mrb[0].mxu0
  %v2818 = vadd.f32 %v2730, %v2817
  %v2819 = vpop.f32.mrb[0].mxu0
  %2820 = vmatprep.mubr.bf16.mxu0 0
  %2821 = vmatmul.mubr.bf16.gmra.mrb[0].mxu0 %v2711
  %v2822 = vpop.f32.mrb[0].mxu0
  %v2823 = vadd.f32 %v2730, %v2822
  %v2824 = vpop.f32.mrb[0].mxu0
  %v2825 = vpop.f32.mrb[0].mxu0
  %v2826 = vadd.f32 %v2730, %v2825
  %v2827 = vpop.f32.mrb[0].mxu0
  %2828 = vmatprep.mubr.bf16.mxu0 0
  %2829 = vmatmul.mubr.bf16.gmra.mrb[0].mxu0 %v2712
  %v2830 = vpop.f32.mrb[0].mxu0
  %v2831 = vadd.f32 %v2730, %v2830
  %v2832 = vpop.f32.mrb[0].mxu0
  %v2833 = vpop.f32.mrb[0].mxu0
  %v2834 = vadd.f32 %v2730, %v2833
  %v2835 = vpop.f32.mrb[0].mxu0
  %2836 = vmatprep.mubr.bf16.mxu0 0
  %2837 = vmatmul.mubr.bf16.gmra.mrb[0].mxu0 %v2713
  %v2838 = vpop.f32.mrb[0].mxu0
  %v2839 = vadd.f32 %v2730, %v2838
  %v2840 = vpop.f32.mrb[0].mxu0
  %v2841 = vpop.f32.mrb[0].mxu0
  %v2842 = vadd.f32 %v2730, %v2841
  %v2843 = vpop.f32.mrb[0].mxu0
  %2844 = vmatprep.mubr.bf16.mxu0 0
  %2845 = vmatmul.mubr.bf16.gmra.mrb[0].mxu0 %v2714
  %v2846 = vpop.f32.mrb[0].mxu0
  %v2847 = vadd.f32 %v2730, %v2846
  %v2848 = vpop.f32.mrb[0].mxu0
  %v2849 = vpop.f32.mrb[0].mxu0
  %v2850 = vadd.f32 %v2730, %v2849
  %v2851 = vpop.f32.mrb[0].mxu0
  %2852 = vmatprep.mubr.bf16.mxu0 0
  %2853 = vmatmul.mubr.bf16.gmra.mrb[0].mxu0 %v2715
  %v2854 = vpop.f32.mrb[0].mxu0
  %v2855 = vadd.f32 %v2730, %v2854
  %v2856 = vpop.f32.mrb[0].mxu0
  %v2857 = vpop.f32.mrb[0].mxu0
  %v2858 = vadd.f32 %v2730, %v2857
  %v2859 = vpop.f32.mrb[0].mxu0
  %2860 = vmatprep.mubr.bf16.mxu0 0
  %2861 = vmatmul.mubr.bf16.gmra.mrb[0].mxu0 %v2716
  %v2862 = vpop.f32.mrb[0].mxu0
  %v2863 = vadd.f32 %v2730, %v2862
  %v2864 = vpop.f32.mrb[0].mxu0
  %v2865 = vpop.f32.mrb[0].mxu0
  %v2866 = vadd.f32 %v2730, %v2865
  %v2867 = vpop.f32.mrb[0].mxu0
  %2868 = vmatprep.mubr.bf16.mxu0 0
  %2869 = vmatmul.mubr.bf16.gmra.mrb[0].mxu0 %v2717
  %v2870 = vpop.f32.mrb[0].mxu0
  %v2871 = vadd.f32 %v2730, %v2870
  %v2872 = vpop.f32.mrb[0].mxu0
  %v2873 = vpop.f32.mrb[0].mxu0
  %v2874 = vadd.f32 %v2730, %v2873
  %v2875 = vpop.f32.mrb[0].mxu0
  %2876 = vmatprep.mubr.bf16.mxu0 0
  %2877 = vmatmul.mubr.bf16.gmra.mrb[0].mxu0 %v2718
  %v2878 = vpop.f32.mrb[0].mxu0
  %v2879 = vadd.f32 %v2730, %v2878
  %v2880 = vpop.f32.mrb[0].mxu0
  %v2881 = vpop.f32.mrb[0].mxu0
  %v2882 = vadd.f32 %v2730, %v2881
  %v2883 = vpop.f32.mrb[0].mxu0
  %2884 = vmatprep.mubr.bf16.mxu0 0
  %2885 = vmatmul.mubr.bf16.gmra.mrb[0].mxu0 %v2719
  %v2886 = vpop.f32.mrb[0].mxu0
  %v2887 = vadd.f32 %v2730, %v2886
  %v2888 = vpop.f32.mrb[0].mxu0
  %v2889 = vpop.f32.mrb[0].mxu0
  %v2890 = vadd.f32 %v2730, %v2889
  %v2891 = vpop.f32.mrb[0].mxu0
  %2892 = vmatprep.mubr.bf16.mxu0 0
  %2893 = vmatmul.mubr.bf16.gmra.mrb[0].mxu0 %v2720
  %v2894 = vpop.f32.mrb[0].mxu0
  %v2895 = vadd.f32 %v2730, %v2894
  %v2896 = vpop.f32.mrb[0].mxu0
  %v2897 = vpop.f32.mrb[0].mxu0
  %v2898 = vadd.f32 %v2730, %v2897
  %v2899 = vpop.f32.mrb[0].mxu0
  %2900 = vmatprep.mubr.bf16.mxu0 0
  %2901 = vmatmul.mubr.bf16.gmra.mrb[0].mxu0 %v2721
  %v2902 = vpop.f32.mrb[0].mxu0
  %v2903 = vadd.f32 %v2730, %v2902
  %v2904 = vpop.f32.mrb[0].mxu0
  %v2905 = vpop.f32.mrb[0].mxu0
  %v2906 = vadd.f32 %v2730, %v2905
  %v2907 = vpop.f32.mrb[0].mxu0
  %2908 = vmatprep.mubr.bf16.mxu0 0
  %2909 = vmatmul.mubr.bf16.gmra.mrb[0].mxu0 %v2722
  %v2910 = vpop.f32.mrb[0].mxu0
  %v2911 = vadd.f32 %v2730, %v2910
  %v2912 = vpop.f32.mrb[0].mxu0
  %v2913 = vpop.f32.mrb[0].mxu0
  %v2914 = vadd.f32 %v2730, %v2913
  %v2915 = vpop.f32.mrb[0].mxu0
  %2916 = vmatprep.mubr.bf16.mxu0 0
  %2917 = vmatmul.mubr.bf16.gmra.mrb[0].mxu0 %v2723
  %v2918 = vpop.f32.mrb[0].mxu0
  %v2919 = vadd.f32 %v2730, %v2918
  %v2920 = vpop.f32.mrb[0].mxu0
  %v2921 = vpop.f32.mrb[0].mxu0
  %v2922 = vadd.f32 %v2730, %v2921
  %v2923 = vpop.f32.mrb[0].mxu0
  %2924 = vmatprep.mubr.bf16.mxu0 0
  %2925 = vmatmul.mubr.bf16.gmra.mrb[0].mxu0 %v2724
  %v2926 = vpop.f32.mrb[0].mxu0
  %v2927 = vadd.f32 %v2730, %v2926
  %v2928 = vpop.f32.mrb[0].mxu0
  %v2929 = vpop.f32.mrb[0].mxu0
  %v2930 = vadd.f32 %v2730, %v2929
  %v2931 = vpop.f32.mrb[0].mxu0
  %2932 = vmatprep.mubr.bf16.mxu0 0
  %2933 = vmatmul.mubr.bf16.gmra.mrb[0].mxu0 %v2725
  %v2934 = vpop.f32.mrb[0].mxu0
  %v2935 = vadd.f32 %v2730, %v2934
  %v2936 = vpop.f32.mrb[0].mxu0
  %v2937 = vpop.f32.mrb[0].mxu0
  %v2938 = vadd.f32 %v2730, %v2937
  %v2939 = vpop.f32.mrb[0].mxu0
  %2940 = vdwg.mxu0
  %2941 = vst [vmem:[%s7] sm:$0xff] %v2815
  %2942 = vst [vmem:[%s7 + $0x8] sm:$0xff] %v2818
  %2943 = vst [vmem:[%s7 + $0x10] sm:$0xff] %v2823
  %2944 = vst [vmem:[%s7 + $0x18] sm:$0xff] %v2826
  %2945 = vst [vmem:[%s7 + $0x20] sm:$0xff] %v2831
  %2946 = vst [vmem:[%s7 + $0x28] sm:$0xff] %v2834
  %2947 = vst [vmem:[%s7 + $0x30] sm:$0xff] %v2839
  %2948 = vst [vmem:[%s7 + $0x38] sm:$0xff] %v2842
  %2949 = vst [vmem:[%s7 + $0x40] sm:$0xff] %v2847
  %2950 = vst [vmem:[%s7 + $0x48] sm:$0xff] %v2850
  %2951 = vst [vmem:[%s7 + $0x50] sm:$0xff] %v2855
  %2952 = vst [vmem:[%s7 + $0x58] sm:$0xff] %v2858
  %2953 = vst [vmem:[%s7 + $0x60] sm:$0xff] %v2863
  %2954 = vst [vmem:[%s7 + $0x68] sm:$0xff] %v2866
  %2955 = vst [vmem:[%s7 + $0x70] sm:$0xff] %v2871
  %2956 = vst [vmem:[%s7 + $0x78] sm:$0xff] %v2874
  %2957 = vst [vmem:[%s7 + $0x80] sm:$0xff] %v2879
  %2958 = vst [vmem:[%s7 + $0x88] sm:$0xff] %v2882
  %2959 = vst [vmem:[%s7 + $0x90] sm:$0xff] %v2887
  %2960 = vst [vmem:[%s7 + $0x98] sm:$0xff] %v2890
  %2961 = vst [vmem:[%s7 + $0xa0] sm:$0xff] %v2895
  %2962 = vst [vmem:[%s7 + $0xa8] sm:$0xff] %v2898
  %2963 = vst [vmem:[%s7 + $0xb0] sm:$0xff] %v2903
  %2964 = vst [vmem:[%s7 + $0xb8] sm:$0xff] %v2906
  %2965 = vst [vmem:[%s7 + $0xc0] sm:$0xff] %v2911
  %2966 = vst [vmem:[%s7 + $0xc8] sm:$0xff] %v2914
  %2967 = vst [vmem:[%s7 + $0xd0] sm:$0xff] %v2919
  %2968 = vst [vmem:[%s7 + $0xd8] sm:$0xff] %v2922
  %2969 = vst [vmem:[%s7 + $0xe0] sm:$0xff] %v2927
  %2970 = vst [vmem:[%s7 + $0xe8] sm:$0xff] %v2930
  %2971 = vst [vmem:[%s7 + $0xf0] sm:$0xff] %v2935
  %2972 = vst [vmem:[%s7 + $0xf8] sm:$0xff] %v2938
  %v2973 = vld [vmem:[%s0 + $0x100] sm:$0xff]
  %v2974 = vld [vmem:[%s0 + $0x108] sm:$0xff]
  %v2975 = vld [vmem:[%s0 + $0x110] sm:$0xff]
  %v2976 = vld [vmem:[%s0 + $0x118] sm:$0xff]
  %v2977 = vld [vmem:[%s0 + $0x120] sm:$0xff]
  %v2978 = vld [vmem:[%s0 + $0x128] sm:$0xff]
  %v2979 = vld [vmem:[%s0 + $0x130] sm:$0xff]
  %v2980 = vld [vmem:[%s0 + $0x138] sm:$0xff]
  %v2981 = vld [vmem:[%s0 + $0x140] sm:$0xff]
  %v2982 = vld [vmem:[%s0 + $0x148] sm:$0xff]
  %v2983 = vld [vmem:[%s0 + $0x150] sm:$0xff]
  %v2984 = vld [vmem:[%s0 + $0x158] sm:$0xff]
  %v2985 = vld [vmem:[%s0 + $0x160] sm:$0xff]
  %v2986 = vld [vmem:[%s0 + $0x168] sm:$0xff]
  %v2987 = vld [vmem:[%s0 + $0x170] sm:$0xff]
  %v2988 = vld [vmem:[%s0 + $0x178] sm:$0xff]
  %v2989 = vld [vmem:[%s0 + $0x180] sm:$0xff]
  %v2990 = vld [vmem:[%s0 + $0x188] sm:$0xff]
  %v2991 = vld [vmem:[%s0 + $0x190] sm:$0xff]
  %v2992 = vld [vmem:[%s0 + $0x198] sm:$0xff]
  %v2993 = vld [vmem:[%s0 + $0x1a0] sm:$0xff]
  %v2994 = vld [vmem:[%s0 + $0x1a8] sm:$0xff]
  %v2995 = vld [vmem:[%s0 + $0x1b0] sm:$0xff]
  %v2996 = vld [vmem:[%s0 + $0x1b8] sm:$0xff]
  %v2997 = vld [vmem:[%s0 + $0x1c0] sm:$0xff]
  %v2998 = vld [vmem:[%s0 + $0x1c8] sm:$0xff]
  %v2999 = vld [vmem:[%s0 + $0x1d0] sm:$0xff]
  %v3000 = vld [vmem:[%s0 + $0x1d8] sm:$0xff]
  %v3001 = vld [vmem:[%s0 + $0x1e0] sm:$0xff]
  %v3002 = vld [vmem:[%s0 + $0x1e8] sm:$0xff]
  %v3003 = vld [vmem:[%s0 + $0x1f0] sm:$0xff]
  %v3004 = vld [vmem:[%s0 + $0x1f8] sm:$0xff]
  %3006 = vset.pattern.permute.xlu0 0
  %3007 = vperm.xlu0 %3006, %v2973
  %v3008 = vpop.permute.xlu0 %3007
  %3011 = vset.pattern.permute.xlu0 0
  %3012 = vperm.xlu0 %3011, %v2974
  %v3013 = vpop.permute.xlu0 %3012
  %3016 = vset.pattern.permute.xlu0 0
  %3017 = vperm.xlu0 %3016, %v2975
  %v3018 = vpop.permute.xlu0 %3017
  %3021 = vset.pattern.permute.xlu0 0
  %3022 = vperm.xlu0 %3021, %v2976
  %v3023 = vpop.permute.xlu0 %3022
  %3026 = vset.pattern.permute.xlu0 0
  %3027 = vperm.xlu0 %3026, %v2977
  %v3028 = vpop.permute.xlu0 %3027
  %3031 = vset.pattern.permute.xlu0 0
  %3032 = vperm.xlu0 %3031, %v2978
  %v3033 = vpop.permute.xlu0 %3032
  %3036 = vset.pattern.permute.xlu0 0
  %3037 = vperm.xlu0 %3036, %v2979
  %v3038 = vpop.permute.xlu0 %3037
  %3041 = vset.pattern.permute.xlu0 0
  %3042 = vperm.xlu0 %3041, %v2980
  %v3043 = vpop.permute.xlu0 %3042
  %3046 = vset.pattern.permute.xlu0 0
  %3047 = vperm.xlu0 %3046, %v2981
  %v3048 = vpop.permute.xlu0 %3047
  %3051 = vset.pattern.permute.xlu0 0
  %3052 = vperm.xlu0 %3051, %v2982
  %v3053 = vpop.permute.xlu0 %3052
  %3056 = vset.pattern.permute.xlu0 0
  %3057 = vperm.xlu0 %3056, %v2983
  %v3058 = vpop.permute.xlu0 %3057
  %3061 = vset.pattern.permute.xlu0 0
  %3062 = vperm.xlu0 %3061, %v2984
  %v3063 = vpop.permute.xlu0 %3062
  %3066 = vset.pattern.permute.xlu0 0
  %3067 = vperm.xlu0 %3066, %v2985
  %v3068 = vpop.permute.xlu0 %3067
  %3071 = vset.pattern.permute.xlu0 0
  %3072 = vperm.xlu0 %3071, %v2986
  %v3073 = vpop.permute.xlu0 %3072
  %3076 = vset.pattern.permute.xlu0 0
  %3077 = vperm.xlu0 %3076, %v2987
  %v3078 = vpop.permute.xlu0 %3077
  %3081 = vset.pattern.permute.xlu0 0
  %3082 = vperm.xlu0 %3081, %v2988
  %v3083 = vpop.permute.xlu0 %3082
  %3086 = vset.pattern.permute.xlu0 0
  %3087 = vperm.xlu0 %3086, %v2989
  %v3088 = vpop.permute.xlu0 %3087
  %3091 = vset.pattern.permute.xlu0 0
  %3092 = vperm.xlu0 %3091, %v2990
  %v3093 = vpop.permute.xlu0 %3092
  %3096 = vset.pattern.permute.xlu0 0
  %3097 = vperm.xlu0 %3096, %v2991
  %v3098 = vpop.permute.xlu0 %3097
  %3101 = vset.pattern.permute.xlu0 0
  %3102 = vperm.xlu0 %3101, %v2992
  %v3103 = vpop.permute.xlu0 %3102
  %3106 = vset.pattern.permute.xlu0 0
  %3107 = vperm.xlu0 %3106, %v2993
  %v3108 = vpop.permute.xlu0 %3107
  %3111 = vset.pattern.permute.xlu0 0
  %3112 = vperm.xlu0 %3111, %v2994
  %v3113 = vpop.permute.xlu0 %3112
  %3116 = vset.pattern.permute.xlu0 0
  %3117 = vperm.xlu0 %3116, %v2995
  %v3118 = vpop.permute.xlu0 %3117
  %3121 = vset.pattern.permute.xlu0 0
  %3122 = vperm.xlu0 %3121, %v2996
  %v3123 = vpop.permute.xlu0 %3122
  %3126 = vset.pattern.permute.xlu0 0
  %3127 = vperm.xlu0 %3126, %v2997
  %v3128 = vpop.permute.xlu0 %3127
  %3131 = vset.pattern.permute.xlu0 0
  %3132 = vperm.xlu0 %3131, %v2998
  %v3133 = vpop.permute.xlu0 %3132
  %3136 = vset.pattern.permute.xlu0 0
  %3137 = vperm.xlu0 %3136, %v2999
  %v3138 = vpop.permute.xlu0 %3137
  %3141 = vset.pattern.permute.xlu0 0
  %3142 = vperm.xlu0 %3141, %v3000
  %v3143 = vpop.permute.xlu0 %3142
  %3146 = vset.pattern.permute.xlu0 0
  %3147 = vperm.xlu0 %3146, %v3001
  %v3148 = vpop.permute.xlu0 %3147
  %3151 = vset.pattern.permute.xlu0 0
  %3152 = vperm.xlu0 %3151, %v3002
  %v3153 = vpop.permute.xlu0 %3152
  %3156 = vset.pattern.permute.xlu0 0
  %3157 = vperm.xlu0 %3156, %v3003
  %v3158 = vpop.permute.xlu0 %3157
  %3161 = vset.pattern.permute.xlu0 0
  %3162 = vperm.xlu0 %3161, %v3004
  %v3163 = vpop.permute.xlu0 %3162
  %v3165 = vmul.f32 %v3008, %v243
  %v3166 = vmul.f32 %v3013, %v243
  %v3167 = vmul.f32 %v3018, %v243
  %v3168 = vmul.f32 %v3023, %v243
  %v3169 = vmul.f32 %v3028, %v243
  %v3170 = vmul.f32 %v3033, %v243
  %v3171 = vmul.f32 %v3038, %v243
  %v3172 = vmul.f32 %v3043, %v243
  %v3173 = vmul.f32 %v3048, %v243
  %v3174 = vmul.f32 %v3053, %v243
  %v3175 = vmul.f32 %v3058, %v243
  %v3176 = vmul.f32 %v3063, %v243
  %v3177 = vmul.f32 %v3068, %v243
  %v3178 = vmul.f32 %v3073, %v243
  %v3179 = vmul.f32 %v3078, %v243
  %v3180 = vmul.f32 %v3083, %v243
  %v3181 = vmul.f32 %v3088, %v243
  %v3182 = vmul.f32 %v3093, %v243
  %v3183 = vmul.f32 %v3098, %v243
  %v3184 = vmul.f32 %v3103, %v243
  %v3185 = vmul.f32 %v3108, %v243
  %v3186 = vmul.f32 %v3113, %v243
  %v3187 = vmul.f32 %v3118, %v243
  %v3188 = vmul.f32 %v3123, %v243
  %v3189 = vmul.f32 %v3128, %v243
  %v3190 = vmul.f32 %v3133, %v243
  %v3191 = vmul.f32 %v3138, %v243
  %v3192 = vmul.f32 %v3143, %v243
  %v3193 = vmul.f32 %v3148, %v243
  %v3194 = vmul.f32 %v3153, %v243
  %v3195 = vmul.f32 %v3158, %v243
  %v3196 = vmul.f32 %v3163, %v243
  %3197 = vset.pattern.permute.xlu0 1
  %3198 = vperm.xlu0 %3197, %v2973
  %v3199 = vpop.permute.xlu0 %3198
  %3201 = vset.pattern.permute.xlu0 1
  %3202 = vperm.xlu0 %3201, %v2974
  %v3203 = vpop.permute.xlu0 %3202
  %3205 = vset.pattern.permute.xlu0 1
  %3206 = vperm.xlu0 %3205, %v2975
  %v3207 = vpop.permute.xlu0 %3206
  %3209 = vset.pattern.permute.xlu0 1
  %3210 = vperm.xlu0 %3209, %v2976
  %v3211 = vpop.permute.xlu0 %3210
  %3213 = vset.pattern.permute.xlu0 1
  %3214 = vperm.xlu0 %3213, %v2977
  %v3215 = vpop.permute.xlu0 %3214
  %3217 = vset.pattern.permute.xlu0 1
  %3218 = vperm.xlu0 %3217, %v2978
  %v3219 = vpop.permute.xlu0 %3218
  %3221 = vset.pattern.permute.xlu0 1
  %3222 = vperm.xlu0 %3221, %v2979
  %v3223 = vpop.permute.xlu0 %3222
  %3225 = vset.pattern.permute.xlu0 1
  %3226 = vperm.xlu0 %3225, %v2980
  %v3227 = vpop.permute.xlu0 %3226
  %3229 = vset.pattern.permute.xlu0 1
  %3230 = vperm.xlu0 %3229, %v2981
  %v3231 = vpop.permute.xlu0 %3230
  %3233 = vset.pattern.permute.xlu0 1
  %3234 = vperm.xlu0 %3233, %v2982
  %v3235 = vpop.permute.xlu0 %3234
  %3237 = vset.pattern.permute.xlu0 1
  %3238 = vperm.xlu0 %3237, %v2983
  %v3239 = vpop.permute.xlu0 %3238
  %3241 = vset.pattern.permute.xlu0 1
  %3242 = vperm.xlu0 %3241, %v2984
  %v3243 = vpop.permute.xlu0 %3242
  %3245 = vset.pattern.permute.xlu0 1
  %3246 = vperm.xlu0 %3245, %v2985
  %v3247 = vpop.permute.xlu0 %3246
  %3249 = vset.pattern.permute.xlu0 1
  %3250 = vperm.xlu0 %3249, %v2986
  %v3251 = vpop.permute.xlu0 %3250
  %3253 = vset.pattern.permute.xlu0 1
  %3254 = vperm.xlu0 %3253, %v2987
  %v3255 = vpop.permute.xlu0 %3254
  %3257 = vset.pattern.permute.xlu0 1
  %3258 = vperm.xlu0 %3257, %v2988
  %v3259 = vpop.permute.xlu0 %3258
  %3261 = vset.pattern.permute.xlu0 1
  %3262 = vperm.xlu0 %3261, %v2989
  %v3263 = vpop.permute.xlu0 %3262
  %3265 = vset.pattern.permute.xlu0 1
  %3266 = vperm.xlu0 %3265, %v2990
  %v3267 = vpop.permute.xlu0 %3266
  %3269 = vset.pattern.permute.xlu0 1
  %3270 = vperm.xlu0 %3269, %v2991
  %v3271 = vpop.permute.xlu0 %3270
  %3273 = vset.pattern.permute.xlu0 1
  %3274 = vperm.xlu0 %3273, %v2992
  %v3275 = vpop.permute.xlu0 %3274
  %3277 = vset.pattern.permute.xlu0 1
  %3278 = vperm.xlu0 %3277, %v2993
  %v3279 = vpop.permute.xlu0 %3278
  %3281 = vset.pattern.permute.xlu0 1
  %3282 = vperm.xlu0 %3281, %v2994
  %v3283 = vpop.permute.xlu0 %3282
  %3285 = vset.pattern.permute.xlu0 1
  %3286 = vperm.xlu0 %3285, %v2995
  %v3287 = vpop.permute.xlu0 %3286
  %3289 = vset.pattern.permute.xlu0 1
  %3290 = vperm.xlu0 %3289, %v2996
  %v3291 = vpop.permute.xlu0 %3290
  %3293 = vset.pattern.permute.xlu0 1
  %3294 = vperm.xlu0 %3293, %v2997
  %v3295 = vpop.permute.xlu0 %3294
  %3297 = vset.pattern.permute.xlu0 1
  %3298 = vperm.xlu0 %3297, %v2998
  %v3299 = vpop.permute.xlu0 %3298
  %3301 = vset.pattern.permute.xlu0 1
  %3302 = vperm.xlu0 %3301, %v2999
  %v3303 = vpop.permute.xlu0 %3302
  %3305 = vset.pattern.permute.xlu0 1
  %3306 = vperm.xlu0 %3305, %v3000
  %v3307 = vpop.permute.xlu0 %3306
  %3309 = vset.pattern.permute.xlu0 1
  %3310 = vperm.xlu0 %3309, %v3001
  %v3311 = vpop.permute.xlu0 %3310
  %3313 = vset.pattern.permute.xlu0 1
  %3314 = vperm.xlu0 %3313, %v3002
  %v3315 = vpop.permute.xlu0 %3314
  %3317 = vset.pattern.permute.xlu0 1
  %3318 = vperm.xlu0 %3317, %v3003
  %v3319 = vpop.permute.xlu0 %3318
  %3321 = vset.pattern.permute.xlu0 1
  %3322 = vperm.xlu0 %3321, %v3004
  %v3323 = vpop.permute.xlu0 %3322
  %v3325 = vmul.f32 %v3199, %v407
  %v3326 = vmul.f32 %v3203, %v407
  %v3327 = vmul.f32 %v3207, %v407
  %v3328 = vmul.f32 %v3211, %v407
  %v3329 = vmul.f32 %v3215, %v407
  %v3330 = vmul.f32 %v3219, %v407
  %v3331 = vmul.f32 %v3223, %v407
  %v3332 = vmul.f32 %v3227, %v407
  %v3333 = vmul.f32 %v3231, %v407
  %v3334 = vmul.f32 %v3235, %v407
  %v3335 = vmul.f32 %v3239, %v407
  %v3336 = vmul.f32 %v3243, %v407
  %v3337 = vmul.f32 %v3247, %v407
  %v3338 = vmul.f32 %v3251, %v407
  %v3339 = vmul.f32 %v3255, %v407
  %v3340 = vmul.f32 %v3259, %v407
  %v3341 = vmul.f32 %v3263, %v407
  %v3342 = vmul.f32 %v3267, %v407
  %v3343 = vmul.f32 %v3271, %v407
  %v3344 = vmul.f32 %v3275, %v407
  %v3345 = vmul.f32 %v3279, %v407
  %v3346 = vmul.f32 %v3283, %v407
  %v3347 = vmul.f32 %v3287, %v407
  %v3348 = vmul.f32 %v3291, %v407
  %v3349 = vmul.f32 %v3295, %v407
  %v3350 = vmul.f32 %v3299, %v407
  %v3351 = vmul.f32 %v3303, %v407
  %v3352 = vmul.f32 %v3307, %v407
  %v3353 = vmul.f32 %v3311, %v407
  %v3354 = vmul.f32 %v3315, %v407
  %v3355 = vmul.f32 %v3319, %v407
  %v3356 = vmul.f32 %v3323, %v407
  %v3357 = vadd.f32 %v3165, %v3325
  %v3358 = vadd.f32 %v3166, %v3326
  %v3359 = vadd.f32 %v3167, %v3327
  %v3360 = vadd.f32 %v3168, %v3328
  %v3361 = vadd.f32 %v3169, %v3329
  %v3362 = vadd.f32 %v3170, %v3330
  %v3363 = vadd.f32 %v3171, %v3331
  %v3364 = vadd.f32 %v3172, %v3332
  %v3365 = vadd.f32 %v3173, %v3333
  %v3366 = vadd.f32 %v3174, %v3334
  %v3367 = vadd.f32 %v3175, %v3335
  %v3368 = vadd.f32 %v3176, %v3336
  %v3369 = vadd.f32 %v3177, %v3337
  %v3370 = vadd.f32 %v3178, %v3338
  %v3371 = vadd.f32 %v3179, %v3339
  %v3372 = vadd.f32 %v3180, %v3340
  %v3373 = vadd.f32 %v3181, %v3341
  %v3374 = vadd.f32 %v3182, %v3342
  %v3375 = vadd.f32 %v3183, %v3343
  %v3376 = vadd.f32 %v3184, %v3344
  %v3377 = vadd.f32 %v3185, %v3345
  %v3378 = vadd.f32 %v3186, %v3346
  %v3379 = vadd.f32 %v3187, %v3347
  %v3380 = vadd.f32 %v3188, %v3348
  %v3381 = vadd.f32 %v3189, %v3349
  %v3382 = vadd.f32 %v3190, %v3350
  %v3383 = vadd.f32 %v3191, %v3351
  %v3384 = vadd.f32 %v3192, %v3352
  %v3385 = vadd.f32 %v3193, %v3353
  %v3386 = vadd.f32 %v3194, %v3354
  %v3387 = vadd.f32 %v3195, %v3355
  %v3388 = vadd.f32 %v3196, %v3356
  %3389 = vset.pattern.permute.xlu0 2
  %3390 = vperm.xlu0 %3389, %v2973
  %v3391 = vpop.permute.xlu0 %3390
  %3393 = vset.pattern.permute.xlu0 2
  %3394 = vperm.xlu0 %3393, %v2974
  %v3395 = vpop.permute.xlu0 %3394
  %3397 = vset.pattern.permute.xlu0 2
  %3398 = vperm.xlu0 %3397, %v2975
  %v3399 = vpop.permute.xlu0 %3398
  %3401 = vset.pattern.permute.xlu0 2
  %3402 = vperm.xlu0 %3401, %v2976
  %v3403 = vpop.permute.xlu0 %3402
  %3405 = vset.pattern.permute.xlu0 2
  %3406 = vperm.xlu0 %3405, %v2977
  %v3407 = vpop.permute.xlu0 %3406
  %3409 = vset.pattern.permute.xlu0 2
  %3410 = vperm.xlu0 %3409, %v2978
  %v3411 = vpop.permute.xlu0 %3410
  %3413 = vset.pattern.permute.xlu0 2
  %3414 = vperm.xlu0 %3413, %v2979
  %v3415 = vpop.permute.xlu0 %3414
  %3417 = vset.pattern.permute.xlu0 2
  %3418 = vperm.xlu0 %3417, %v2980
  %v3419 = vpop.permute.xlu0 %3418
  %3421 = vset.pattern.permute.xlu0 2
  %3422 = vperm.xlu0 %3421, %v2981
  %v3423 = vpop.permute.xlu0 %3422
  %3425 = vset.pattern.permute.xlu0 2
  %3426 = vperm.xlu0 %3425, %v2982
  %v3427 = vpop.permute.xlu0 %3426
  %3429 = vset.pattern.permute.xlu0 2
  %3430 = vperm.xlu0 %3429, %v2983
  %v3431 = vpop.permute.xlu0 %3430
  %3433 = vset.pattern.permute.xlu0 2
  %3434 = vperm.xlu0 %3433, %v2984
  %v3435 = vpop.permute.xlu0 %3434
  %3437 = vset.pattern.permute.xlu0 2
  %3438 = vperm.xlu0 %3437, %v2985
  %v3439 = vpop.permute.xlu0 %3438
  %3441 = vset.pattern.permute.xlu0 2
  %3442 = vperm.xlu0 %3441, %v2986
  %v3443 = vpop.permute.xlu0 %3442
  %3445 = vset.pattern.permute.xlu0 2
  %3446 = vperm.xlu0 %3445, %v2987
  %v3447 = vpop.permute.xlu0 %3446
  %3449 = vset.pattern.permute.xlu0 2
  %3450 = vperm.xlu0 %3449, %v2988
  %v3451 = vpop.permute.xlu0 %3450
  %3453 = vset.pattern.permute.xlu0 2
  %3454 = vperm.xlu0 %3453, %v2989
  %v3455 = vpop.permute.xlu0 %3454
  %3457 = vset.pattern.permute.xlu0 2
  %3458 = vperm.xlu0 %3457, %v2990
  %v3459 = vpop.permute.xlu0 %3458
  %3461 = vset.pattern.permute.xlu0 2
  %3462 = vperm.xlu0 %3461, %v2991
  %v3463 = vpop.permute.xlu0 %3462
  %3465 = vset.pattern.permute.xlu0 2
  %3466 = vperm.xlu0 %3465, %v2992
  %v3467 = vpop.permute.xlu0 %3466
  %3469 = vset.pattern.permute.xlu0 2
  %3470 = vperm.xlu0 %3469, %v2993
  %v3471 = vpop.permute.xlu0 %3470
  %3473 = vset.pattern.permute.xlu0 2
  %3474 = vperm.xlu0 %3473, %v2994
  %v3475 = vpop.permute.xlu0 %3474
  %3477 = vset.pattern.permute.xlu0 2
  %3478 = vperm.xlu0 %3477, %v2995
  %v3479 = vpop.permute.xlu0 %3478
  %3481 = vset.pattern.permute.xlu0 2
  %3482 = vperm.xlu0 %3481, %v2996
  %v3483 = vpop.permute.xlu0 %3482
  %3485 = vset.pattern.permute.xlu0 2
  %3486 = vperm.xlu0 %3485, %v2997
  %v3487 = vpop.permute.xlu0 %3486
  %3489 = vset.pattern.permute.xlu0 2
  %3490 = vperm.xlu0 %3489, %v2998
  %v3491 = vpop.permute.xlu0 %3490
  %3493 = vset.pattern.permute.xlu0 2
  %3494 = vperm.xlu0 %3493, %v2999
  %v3495 = vpop.permute.xlu0 %3494
  %3497 = vset.pattern.permute.xlu0 2
  %3498 = vperm.xlu0 %3497, %v3000
  %v3499 = vpop.permute.xlu0 %3498
  %3501 = vset.pattern.permute.xlu0 2
  %3502 = vperm.xlu0 %3501, %v3001
  %v3503 = vpop.permute.xlu0 %3502
  %3505 = vset.pattern.permute.xlu0 2
  %3506 = vperm.xlu0 %3505, %v3002
  %v3507 = vpop.permute.xlu0 %3506
  %3509 = vset.pattern.permute.xlu0 2
  %3510 = vperm.xlu0 %3509, %v3003
  %v3511 = vpop.permute.xlu0 %3510
  %3513 = vset.pattern.permute.xlu0 2
  %3514 = vperm.xlu0 %3513, %v3004
  %v3515 = vpop.permute.xlu0 %3514
  %v3517 = vmul.f32 %v3391, %v603
  %v3518 = vmul.f32 %v3395, %v603
  %v3519 = vmul.f32 %v3399, %v603
  %v3520 = vmul.f32 %v3403, %v603
  %v3521 = vmul.f32 %v3407, %v603
  %v3522 = vmul.f32 %v3411, %v603
  %v3523 = vmul.f32 %v3415, %v603
  %v3524 = vmul.f32 %v3419, %v603
  %v3525 = vmul.f32 %v3423, %v603
  %v3526 = vmul.f32 %v3427, %v603
  %v3527 = vmul.f32 %v3431, %v603
  %v3528 = vmul.f32 %v3435, %v603
  %v3529 = vmul.f32 %v3439, %v603
  %v3530 = vmul.f32 %v3443, %v603
  %v3531 = vmul.f32 %v3447, %v603
  %v3532 = vmul.f32 %v3451, %v603
  %v3533 = vmul.f32 %v3455, %v603
  %v3534 = vmul.f32 %v3459, %v603
  %v3535 = vmul.f32 %v3463, %v603
  %v3536 = vmul.f32 %v3467, %v603
  %v3537 = vmul.f32 %v3471, %v603
  %v3538 = vmul.f32 %v3475, %v603
  %v3539 = vmul.f32 %v3479, %v603
  %v3540 = vmul.f32 %v3483, %v603
  %v3541 = vmul.f32 %v3487, %v603
  %v3542 = vmul.f32 %v3491, %v603
  %v3543 = vmul.f32 %v3495, %v603
  %v3544 = vmul.f32 %v3499, %v603
  %v3545 = vmul.f32 %v3503, %v603
  %v3546 = vmul.f32 %v3507, %v603
  %v3547 = vmul.f32 %v3511, %v603
  %v3548 = vmul.f32 %v3515, %v603
  %v3549 = vadd.f32 %v3357, %v3517
  %v3550 = vadd.f32 %v3358, %v3518
  %v3551 = vadd.f32 %v3359, %v3519
  %v3552 = vadd.f32 %v3360, %v3520
  %v3553 = vadd.f32 %v3361, %v3521
  %v3554 = vadd.f32 %v3362, %v3522
  %v3555 = vadd.f32 %v3363, %v3523
  %v3556 = vadd.f32 %v3364, %v3524
  %v3557 = vadd.f32 %v3365, %v3525
  %v3558 = vadd.f32 %v3366, %v3526
  %v3559 = vadd.f32 %v3367, %v3527
  %v3560 = vadd.f32 %v3368, %v3528
  %v3561 = vadd.f32 %v3369, %v3529
  %v3562 = vadd.f32 %v3370, %v3530
  %v3563 = vadd.f32 %v3371, %v3531
  %v3564 = vadd.f32 %v3372, %v3532
  %v3565 = vadd.f32 %v3373, %v3533
  %v3566 = vadd.f32 %v3374, %v3534
  %v3567 = vadd.f32 %v3375, %v3535
  %v3568 = vadd.f32 %v3376, %v3536
  %v3569 = vadd.f32 %v3377, %v3537
  %v3570 = vadd.f32 %v3378, %v3538
  %v3571 = vadd.f32 %v3379, %v3539
  %v3572 = vadd.f32 %v3380, %v3540
  %v3573 = vadd.f32 %v3381, %v3541
  %v3574 = vadd.f32 %v3382, %v3542
  %v3575 = vadd.f32 %v3383, %v3543
  %v3576 = vadd.f32 %v3384, %v3544
  %v3577 = vadd.f32 %v3385, %v3545
  %v3578 = vadd.f32 %v3386, %v3546
  %v3579 = vadd.f32 %v3387, %v3547
  %v3580 = vadd.f32 %v3388, %v3548
  %v3581 = vadd.f32 %v3549, %v672
  %v3582 = vadd.f32 %v3550, %v672
  %v3583 = vadd.f32 %v3551, %v672
  %v3584 = vadd.f32 %v3552, %v672
  %v3585 = vadd.f32 %v3553, %v672
  %v3586 = vadd.f32 %v3554, %v672
  %v3587 = vadd.f32 %v3555, %v672
  %v3588 = vadd.f32 %v3556, %v672
  %v3589 = vadd.f32 %v3557, %v672
  %v3590 = vadd.f32 %v3558, %v672
  %v3591 = vadd.f32 %v3559, %v672
  %v3592 = vadd.f32 %v3560, %v672
  %v3593 = vadd.f32 %v3561, %v672
  %v3594 = vadd.f32 %v3562, %v672
  %v3595 = vadd.f32 %v3563, %v672
  %v3596 = vadd.f32 %v3564, %v672
  %v3597 = vadd.f32 %v3565, %v672
  %v3598 = vadd.f32 %v3566, %v672
  %v3599 = vadd.f32 %v3567, %v672
  %v3600 = vadd.f32 %v3568, %v672
  %v3601 = vadd.f32 %v3569, %v672
  %v3602 = vadd.f32 %v3570, %v672
  %v3603 = vadd.f32 %v3571, %v672
  %v3604 = vadd.f32 %v3572, %v672
  %v3605 = vadd.f32 %v3573, %v672
  %v3606 = vadd.f32 %v3574, %v672
  %v3607 = vadd.f32 %v3575, %v672
  %v3608 = vadd.f32 %v3576, %v672
  %v3609 = vadd.f32 %v3577, %v672
  %v3610 = vadd.f32 %v3578, %v672
  %v3611 = vadd.f32 %v3579, %v672
  %v3612 = vadd.f32 %v3580, %v672
  %v3613 = vmax.f32 %v3581, 0.0
  %v3614 = vmax.f32 %v3582, 0.0
  %v3615 = vmax.f32 %v3583, 0.0
  %v3616 = vmax.f32 %v3584, 0.0
  %v3617 = vmax.f32 %v3585, 0.0
  %v3618 = vmax.f32 %v3586, 0.0
  %v3619 = vmax.f32 %v3587, 0.0
  %v3620 = vmax.f32 %v3588, 0.0
  %v3621 = vmax.f32 %v3589, 0.0
  %v3622 = vmax.f32 %v3590, 0.0
  %v3623 = vmax.f32 %v3591, 0.0
  %v3624 = vmax.f32 %v3592, 0.0
  %v3625 = vmax.f32 %v3593, 0.0
  %v3626 = vmax.f32 %v3594, 0.0
  %v3627 = vmax.f32 %v3595, 0.0
  %v3628 = vmax.f32 %v3596, 0.0
  %v3629 = vmax.f32 %v3597, 0.0
  %v3630 = vmax.f32 %v3598, 0.0
  %v3631 = vmax.f32 %v3599, 0.0
  %v3632 = vmax.f32 %v3600, 0.0
  %v3633 = vmax.f32 %v3601, 0.0
  %v3634 = vmax.f32 %v3602, 0.0
  %v3635 = vmax.f32 %v3603, 0.0
  %v3636 = vmax.f32 %v3604, 0.0
  %v3637 = vmax.f32 %v3605, 0.0
  %v3638 = vmax.f32 %v3606, 0.0
  %v3639 = vmax.f32 %v3607, 0.0
  %v3640 = vmax.f32 %v3608, 0.0
  %v3641 = vmax.f32 %v3609, 0.0
  %v3642 = vmax.f32 %v3610, 0.0
  %v3643 = vmax.f32 %v3611, 0.0
  %v3644 = vmax.f32 %v3612, 0.0
  %v3645 = vpack.c.bf16 %v3614, %v3613
  %v3646 = vpack.c.bf16 %v3616, %v3615
  %v3647 = vpack.c.bf16 %v3618, %v3617
  %v3648 = vpack.c.bf16 %v3620, %v3619
  %v3649 = vpack.c.bf16 %v3622, %v3621
  %v3650 = vpack.c.bf16 %v3624, %v3623
  %v3651 = vpack.c.bf16 %v3626, %v3625
  %v3652 = vpack.c.bf16 %v3628, %v3627
  %v3653 = vpack.c.bf16 %v3630, %v3629
  %v3654 = vpack.c.bf16 %v3632, %v3631
  %v3655 = vpack.c.bf16 %v3634, %v3633
  %v3656 = vpack.c.bf16 %v3636, %v3635
  %v3657 = vpack.c.bf16 %v3638, %v3637
  %v3658 = vpack.c.bf16 %v3640, %v3639
  %v3659 = vpack.c.bf16 %v3642, %v3641
  %v3660 = vpack.c.bf16 %v3644, %v3643
  %v3661 = vld [vmem:[%s3] sm:$0xf]
  %v3662 = vld [vmem:[%s3 + $0x4] sm:$0xf]
  %v3663 = vld [vmem:[%s3 + $0x8] sm:$0xf]
  %v3664 = vld [vmem:[%s3 + $0xc] sm:$0xf]
  %v3665 = vld [vmem:[%s3 + $0x10] sm:$0xf]
  %v3666 = vld [vmem:[%s3 + $0x14] sm:$0xf]
  %v3667 = vld [vmem:[%s3 + $0x18] sm:$0xf]
  %v3668 = vld [vmem:[%s3 + $0x1c] sm:$0xf]
  %v3669 = vld [vmem:[%s3 + $0x20] sm:$0xf]
  %v3670 = vld [vmem:[%s3 + $0x24] sm:$0xf]
  %v3671 = vld [vmem:[%s3 + $0x28] sm:$0xf]
  %v3672 = vld [vmem:[%s3 + $0x2c] sm:$0xf]
  %v3673 = vld [vmem:[%s3 + $0x30] sm:$0xf]
  %v3674 = vld [vmem:[%s3 + $0x34] sm:$0xf]
  %v3675 = vld [vmem:[%s3 + $0x38] sm:$0xf]
  %v3676 = vld [vmem:[%s3 + $0x3c] sm:$0xf]
  %v3677 = vld [vmem:[%s4] sm:$0x1]
  %v3679 = vlaneseq
  %v3680 = vshrl.u32 %v3679, 7
  %v3681 = vsub.s32 0, %v3680
  %v3682 = vrot.slane %v3677, %v3681
  %v3700 = vunpack.c.l.b16 %v3661
  %v3701 = vunpack.c.l.b16 %v3662
  %v3702 = vunpack.c.l.b16 %v3663
  %v3703 = vunpack.c.l.b16 %v3664
  %v3704 = vunpack.c.l.b16 %v3665
  %v3705 = vunpack.c.l.b16 %v3666
  %v3706 = vunpack.c.l.b16 %v3667
  %v3707 = vunpack.c.l.b16 %v3668
  %v3708 = vunpack.c.l.b16 %v3669
  %v3709 = vunpack.c.l.b16 %v3670
  %v3710 = vunpack.c.l.b16 %v3671
  %v3711 = vunpack.c.l.b16 %v3672
  %v3712 = vunpack.c.l.b16 %v3673
  %v3713 = vunpack.c.l.b16 %v3674
  %v3714 = vunpack.c.l.b16 %v3675
  %v3715 = vunpack.c.l.b16 %v3676
  %v3716 = vpack.c.b16 %v3701, %v3700
  %v3717 = vpack.c.b16 %v3703, %v3702
  %v3718 = vpack.c.b16 %v3705, %v3704
  %v3719 = vpack.c.b16 %v3707, %v3706
  %v3720 = vpack.c.b16 %v3709, %v3708
  %v3721 = vpack.c.b16 %v3711, %v3710
  %v3722 = vpack.c.b16 %v3713, %v3712
  %v3723 = vpack.c.b16 %v3715, %v3714
  %3732 = vmatprep.subr.bf16.mxu0 0
  %3733 = vmatpush1.bf16.msra.mxu0 %v3716
  %3734 = vmatprep.subr.bf16.mxu0 0
  %3735 = vmatpush1.bf16.msra.mxu0 %v3717
  %3736 = vmatprep.subr.bf16.mxu0 0
  %3737 = vmatpush1.bf16.msra.mxu0 %v3718
  %3738 = vmatprep.subr.bf16.mxu0 0
  %3739 = vmatpush1.bf16.msra.mxu0 %v3719
  %3740 = vmatprep.subr.bf16.mxu0 0
  %3741 = vmatpush1.bf16.msra.mxu0 %v3720
  %3742 = vmatprep.subr.bf16.mxu0 0
  %3743 = vmatpush1.bf16.msra.mxu0 %v3721
  %3744 = vmatprep.subr.bf16.mxu0 0
  %3745 = vmatpush1.bf16.msra.mxu0 %v3722
  %3746 = vmatprep.subr.bf16.mxu0 0
  %3747 = vmatpush1.bf16.msra.mxu0 %v3723
  %3748 = vmatprep.subr.bf16.mxu0 0
  %3749 = vmatpush1.bf16.msra.mxu0 0
  %3750 = vmatprep.subr.bf16.mxu0 0
  %3751 = vmatpush1.bf16.msra.mxu0 0
  %3752 = vmatprep.subr.bf16.mxu0 0
  %3753 = vmatpush1.bf16.msra.mxu0 0
  %3754 = vmatprep.subr.bf16.mxu0 0
  %3755 = vmatpush1.bf16.msra.mxu0 0
  %3756 = vmatprep.subr.bf16.mxu0 0
  %3757 = vmatpush1.bf16.msra.mxu0 0
  %3758 = vmatprep.subr.bf16.mxu0 0
  %3759 = vmatpush1.bf16.msra.mxu0 0
  %3760 = vmatprep.subr.bf16.mxu0 0
  %3761 = vmatpush1.bf16.msra.mxu0 0
  %3762 = vmatprep.subr.bf16.mxu0 0
  %3763 = vmatpush1.bf16.msra.mxu0 0
  %3764 = vmatprep.mubr.bf16.mxu0 0
  %3765 = vmatmul.mubr.bf16.gmra.mrb[0].mxu0 %v3645
  %v3766 = vpop.f32.mrb[0].mxu0
  %v3767 = vadd.f32 %v3682, %v3766
  %v3768 = vpop.f32.mrb[0].mxu0
  %v3769 = vpop.f32.mrb[0].mxu0
  %v3770 = vadd.f32 %v3682, %v3769
  %v3771 = vpop.f32.mrb[0].mxu0
  %3772 = vmatprep.mubr.bf16.mxu0 0
  %3773 = vmatmul.mubr.bf16.gmra.mrb[0].mxu0 %v3646
  %v3774 = vpop.f32.mrb[0].mxu0
  %v3775 = vadd.f32 %v3682, %v3774
  %v3776 = vpop.f32.mrb[0].mxu0
  %v3777 = vpop.f32.mrb[0].mxu0
  %v3778 = vadd.f32 %v3682, %v3777
  %v3779 = vpop.f32.mrb[0].mxu0
  %3780 = vmatprep.mubr.bf16.mxu0 0
  %3781 = vmatmul.mubr.bf16.gmra.mrb[0].mxu0 %v3647
  %v3782 = vpop.f32.mrb[0].mxu0
  %v3783 = vadd.f32 %v3682, %v3782
  %v3784 = vpop.f32.mrb[0].mxu0
  %v3785 = vpop.f32.mrb[0].mxu0
  %v3786 = vadd.f32 %v3682, %v3785
  %v3787 = vpop.f32.mrb[0].mxu0
  %3788 = vmatprep.mubr.bf16.mxu0 0
  %3789 = vmatmul.mubr.bf16.gmra.mrb[0].mxu0 %v3648
  %v3790 = vpop.f32.mrb[0].mxu0
  %v3791 = vadd.f32 %v3682, %v3790
  %v3792 = vpop.f32.mrb[0].mxu0
  %v3793 = vpop.f32.mrb[0].mxu0
  %v3794 = vadd.f32 %v3682, %v3793
  %v3795 = vpop.f32.mrb[0].mxu0
  %3796 = vmatprep.mubr.bf16.mxu0 0
  %3797 = vmatmul.mubr.bf16.gmra.mrb[0].mxu0 %v3649
  %v3798 = vpop.f32.mrb[0].mxu0
  %v3799 = vadd.f32 %v3682, %v3798
  %v3800 = vpop.f32.mrb[0].mxu0
  %v3801 = vpop.f32.mrb[0].mxu0
  %v3802 = vadd.f32 %v3682, %v3801
  %v3803 = vpop.f32.mrb[0].mxu0
  %3804 = vmatprep.mubr.bf16.mxu0 0
  %3805 = vmatmul.mubr.bf16.gmra.mrb[0].mxu0 %v3650
  %v3806 = vpop.f32.mrb[0].mxu0
  %v3807 = vadd.f32 %v3682, %v3806
  %v3808 = vpop.f32.mrb[0].mxu0
  %v3809 = vpop.f32.mrb[0].mxu0
  %v3810 = vadd.f32 %v3682, %v3809
  %v3811 = vpop.f32.mrb[0].mxu0
  %3812 = vmatprep.mubr.bf16.mxu0 0
  %3813 = vmatmul.mubr.bf16.gmra.mrb[0].mxu0 %v3651
  %v3814 = vpop.f32.mrb[0].mxu0
  %v3815 = vadd.f32 %v3682, %v3814
  %v3816 = vpop.f32.mrb[0].mxu0
  %v3817 = vpop.f32.mrb[0].mxu0
  %v3818 = vadd.f32 %v3682, %v3817
  %v3819 = vpop.f32.mrb[0].mxu0
  %3820 = vmatprep.mubr.bf16.mxu0 0
  %3821 = vmatmul.mubr.bf16.gmra.mrb[0].mxu0 %v3652
  %v3822 = vpop.f32.mrb[0].mxu0
  %v3823 = vadd.f32 %v3682, %v3822
  %v3824 = vpop.f32.mrb[0].mxu0
  %v3825 = vpop.f32.mrb[0].mxu0
  %v3826 = vadd.f32 %v3682, %v3825
  %v3827 = vpop.f32.mrb[0].mxu0
  %3828 = vmatprep.mubr.bf16.mxu0 0
  %3829 = vmatmul.mubr.bf16.gmra.mrb[0].mxu0 %v3653
  %v3830 = vpop.f32.mrb[0].mxu0
  %v3831 = vadd.f32 %v3682, %v3830
  %v3832 = vpop.f32.mrb[0].mxu0
  %v3833 = vpop.f32.mrb[0].mxu0
  %v3834 = vadd.f32 %v3682, %v3833
  %v3835 = vpop.f32.mrb[0].mxu0
  %3836 = vmatprep.mubr.bf16.mxu0 0
  %3837 = vmatmul.mubr.bf16.gmra.mrb[0].mxu0 %v3654
  %v3838 = vpop.f32.mrb[0].mxu0
  %v3839 = vadd.f32 %v3682, %v3838
  %v3840 = vpop.f32.mrb[0].mxu0
  %v3841 = vpop.f32.mrb[0].mxu0
  %v3842 = vadd.f32 %v3682, %v3841
  %v3843 = vpop.f32.mrb[0].mxu0
  %3844 = vmatprep.mubr.bf16.mxu0 0
  %3845 = vmatmul.mubr.bf16.gmra.mrb[0].mxu0 %v3655
  %v3846 = vpop.f32.mrb[0].mxu0
  %v3847 = vadd.f32 %v3682, %v3846
  %v3848 = vpop.f32.mrb[0].mxu0
  %v3849 = vpop.f32.mrb[0].mxu0
  %v3850 = vadd.f32 %v3682, %v3849
  %v3851 = vpop.f32.mrb[0].mxu0
  %3852 = vmatprep.mubr.bf16.mxu0 0
  %3853 = vmatmul.mubr.bf16.gmra.mrb[0].mxu0 %v3656
  %v3854 = vpop.f32.mrb[0].mxu0
  %v3855 = vadd.f32 %v3682, %v3854
  %v3856 = vpop.f32.mrb[0].mxu0
  %v3857 = vpop.f32.mrb[0].mxu0
  %v3858 = vadd.f32 %v3682, %v3857
  %v3859 = vpop.f32.mrb[0].mxu0
  %3860 = vmatprep.mubr.bf16.mxu0 0
  %3861 = vmatmul.mubr.bf16.gmra.mrb[0].mxu0 %v3657
  %v3862 = vpop.f32.mrb[0].mxu0
  %v3863 = vadd.f32 %v3682, %v3862
  %v3864 = vpop.f32.mrb[0].mxu0
  %v3865 = vpop.f32.mrb[0].mxu0
  %v3866 = vadd.f32 %v3682, %v3865
  %v3867 = vpop.f32.mrb[0].mxu0
  %3868 = vmatprep.mubr.bf16.mxu0 0
  %3869 = vmatmul.mubr.bf16.gmra.mrb[0].mxu0 %v3658
  %v3870 = vpop.f32.mrb[0].mxu0
  %v3871 = vadd.f32 %v3682, %v3870
  %v3872 = vpop.f32.mrb[0].mxu0
  %v3873 = vpop.f32.mrb[0].mxu0
  %v3874 = vadd.f32 %v3682, %v3873
  %v3875 = vpop.f32.mrb[0].mxu0
  %3876 = vmatprep.mubr.bf16.mxu0 0
  %3877 = vmatmul.mubr.bf16.gmra.mrb[0].mxu0 %v3659
  %v3878 = vpop.f32.mrb[0].mxu0
  %v3879 = vadd.f32 %v3682, %v3878
  %v3880 = vpop.f32.mrb[0].mxu0
  %v3881 = vpop.f32.mrb[0].mxu0
  %v3882 = vadd.f32 %v3682, %v3881
  %v3883 = vpop.f32.mrb[0].mxu0
  %3884 = vmatprep.mubr.bf16.mxu0 0
  %3885 = vmatmul.mubr.bf16.gmra.mrb[0].mxu0 %v3660
  %v3886 = vpop.f32.mrb[0].mxu0
  %v3887 = vadd.f32 %v3682, %v3886
  %v3888 = vpop.f32.mrb[0].mxu0
  %v3889 = vpop.f32.mrb[0].mxu0
  %v3890 = vadd.f32 %v3682, %v3889
  %v3891 = vpop.f32.mrb[0].mxu0
  %3892 = vdwg.mxu0
  %v3893 = vmax.f32 %v3767, 0.0
  %v3894 = vmax.f32 %v3770, 0.0
  %v3895 = vmax.f32 %v3775, 0.0
  %v3896 = vmax.f32 %v3778, 0.0
  %v3897 = vmax.f32 %v3783, 0.0
  %v3898 = vmax.f32 %v3786, 0.0
  %v3899 = vmax.f32 %v3791, 0.0
  %v3900 = vmax.f32 %v3794, 0.0
  %v3901 = vmax.f32 %v3799, 0.0
  %v3902 = vmax.f32 %v3802, 0.0
  %v3903 = vmax.f32 %v3807, 0.0
  %v3904 = vmax.f32 %v3810, 0.0
  %v3905 = vmax.f32 %v3815, 0.0
  %v3906 = vmax.f32 %v3818, 0.0
  %v3907 = vmax.f32 %v3823, 0.0
  %v3908 = vmax.f32 %v3826, 0.0
  %v3909 = vmax.f32 %v3831, 0.0
  %v3910 = vmax.f32 %v3834, 0.0
  %v3911 = vmax.f32 %v3839, 0.0
  %v3912 = vmax.f32 %v3842, 0.0
  %v3913 = vmax.f32 %v3847, 0.0
  %v3914 = vmax.f32 %v3850, 0.0
  %v3915 = vmax.f32 %v3855, 0.0
  %v3916 = vmax.f32 %v3858, 0.0
  %v3917 = vmax.f32 %v3863, 0.0
  %v3918 = vmax.f32 %v3866, 0.0
  %v3919 = vmax.f32 %v3871, 0.0
  %v3920 = vmax.f32 %v3874, 0.0
  %v3921 = vmax.f32 %v3879, 0.0
  %v3922 = vmax.f32 %v3882, 0.0
  %v3923 = vmax.f32 %v3887, 0.0
  %v3924 = vmax.f32 %v3890, 0.0
  %v3925 = vpack.c.bf16 %v3894, %v3893
  %v3926 = vpack.c.bf16 %v3896, %v3895
  %v3927 = vpack.c.bf16 %v3898, %v3897
  %v3928 = vpack.c.bf16 %v3900, %v3899
  %v3929 = vpack.c.bf16 %v3902, %v3901
  %v3930 = vpack.c.bf16 %v3904, %v3903
  %v3931 = vpack.c.bf16 %v3906, %v3905
  %v3932 = vpack.c.bf16 %v3908, %v3907
  %v3933 = vpack.c.bf16 %v3910, %v3909
  %v3934 = vpack.c.bf16 %v3912, %v3911
  %v3935 = vpack.c.bf16 %v3914, %v3913
  %v3936 = vpack.c.bf16 %v3916, %v3915
  %v3937 = vpack.c.bf16 %v3918, %v3917
  %v3938 = vpack.c.bf16 %v3920, %v3919
  %v3939 = vpack.c.bf16 %v3922, %v3921
  %v3940 = vpack.c.bf16 %v3924, %v3923
  %v3941 = vld [vmem:[%s1034] sm:$0xf]
  %v3942 = vld [vmem:[%s1034 + $0x4] sm:$0xf]
  %v3943 = vld [vmem:[%s1034 + $0x8] sm:$0xf]
  %v3944 = vld [vmem:[%s1034 + $0xc] sm:$0xf]
  %v3945 = vld [vmem:[%s1034 + $0x10] sm:$0xf]
  %v3946 = vld [vmem:[%s1034 + $0x14] sm:$0xf]
  %v3947 = vld [vmem:[%s1034 + $0x18] sm:$0xf]
  %v3948 = vld [vmem:[%s1034 + $0x1c] sm:$0xf]
  %v3949 = vld [vmem:[%s1034 + $0x20] sm:$0xf]
  %v3950 = vld [vmem:[%s1034 + $0x24] sm:$0xf]
  %v3951 = vld [vmem:[%s1034 + $0x28] sm:$0xf]
  %v3952 = vld [vmem:[%s1034 + $0x2c] sm:$0xf]
  %v3953 = vld [vmem:[%s1034 + $0x30] sm:$0xf]
  %v3954 = vld [vmem:[%s1034 + $0x34] sm:$0xf]
  %v3955 = vld [vmem:[%s1034 + $0x38] sm:$0xf]
  %v3956 = vld [vmem:[%s1034 + $0x3c] sm:$0xf]
  %v3957 = vld [vmem:[%s1051] sm:$0x1]
  %v3959 = vlaneseq
  %v3960 = vshrl.u32 %v3959, 7
  %v3961 = vsub.s32 0, %v3960
  %v3962 = vrot.slane %v3957, %v3961
  %v3980 = vunpack.c.l.b16 %v3941
  %v3981 = vunpack.c.l.b16 %v3942
  %v3982 = vunpack.c.l.b16 %v3943
  %v3983 = vunpack.c.l.b16 %v3944
  %v3984 = vunpack.c.l.b16 %v3945
  %v3985 = vunpack.c.l.b16 %v3946
  %v3986 = vunpack.c.l.b16 %v3947
  %v3987 = vunpack.c.l.b16 %v3948
  %v3988 = vunpack.c.l.b16 %v3949
  %v3989 = vunpack.c.l.b16 %v3950
  %v3990 = vunpack.c.l.b16 %v3951
  %v3991 = vunpack.c.l.b16 %v3952
  %v3992 = vunpack.c.l.b16 %v3953
  %v3993 = vunpack.c.l.b16 %v3954
  %v3994 = vunpack.c.l.b16 %v3955
  %v3995 = vunpack.c.l.b16 %v3956
  %v3996 = vpack.c.b16 %v3981, %v3980
  %v3997 = vpack.c.b16 %v3983, %v3982
  %v3998 = vpack.c.b16 %v3985, %v3984
  %v3999 = vpack.c.b16 %v3987, %v3986
  %v4000 = vpack.c.b16 %v3989, %v3988
  %v4001 = vpack.c.b16 %v3991, %v3990
  %v4002 = vpack.c.b16 %v3993, %v3992
  %v4003 = vpack.c.b16 %v3995, %v3994
  %4012 = vmatprep.subr.bf16.mxu0 0
  %4013 = vmatpush1.bf16.msra.mxu0 %v3996
  %4014 = vmatprep.subr.bf16.mxu0 0
  %4015 = vmatpush1.bf16.msra.mxu0 %v3997
  %4016 = vmatprep.subr.bf16.mxu0 0
  %4017 = vmatpush1.bf16.msra.mxu0 %v3998
  %4018 = vmatprep.subr.bf16.mxu0 0
  %4019 = vmatpush1.bf16.msra.mxu0 %v3999
  %4020 = vmatprep.subr.bf16.mxu0 0
  %4021 = vmatpush1.bf16.msra.mxu0 %v4000
  %4022 = vmatprep.subr.bf16.mxu0 0
  %4023 = vmatpush1.bf16.msra.mxu0 %v4001
  %4024 = vmatprep.subr.bf16.mxu0 0
  %4025 = vmatpush1.bf16.msra.mxu0 %v4002
  %4026 = vmatprep.subr.bf16.mxu0 0
  %4027 = vmatpush1.bf16.msra.mxu0 %v4003
  %4028 = vmatprep.subr.bf16.mxu0 0
  %4029 = vmatpush1.bf16.msra.mxu0 0
  %4030 = vmatprep.subr.bf16.mxu0 0
  %4031 = vmatpush1.bf16.msra.mxu0 0
  %4032 = vmatprep.subr.bf16.mxu0 0
  %4033 = vmatpush1.bf16.msra.mxu0 0
  %4034 = vmatprep.subr.bf16.mxu0 0
  %4035 = vmatpush1.bf16.msra.mxu0 0
  %4036 = vmatprep.subr.bf16.mxu0 0
  %4037 = vmatpush1.bf16.msra.mxu0 0
  %4038 = vmatprep.subr.bf16.mxu0 0
  %4039 = vmatpush1.bf16.msra.mxu0 0
  %4040 = vmatprep.subr.bf16.mxu0 0
  %4041 = vmatpush1.bf16.msra.mxu0 0
  %4042 = vmatprep.subr.bf16.mxu0 0
  %4043 = vmatpush1.bf16.msra.mxu0 0
  %4044 = vmatprep.mubr.bf16.mxu0 0
  %4045 = vmatmul.mubr.bf16.gmra.mrb[0].mxu0 %v3925
  %v4046 = vpop.f32.mrb[0].mxu0
  %v4047 = vadd.f32 %v3962, %v4046
  %v4048 = vpop.f32.mrb[0].mxu0
  %v4049 = vpop.f32.mrb[0].mxu0
  %v4050 = vadd.f32 %v3962, %v4049
  %v4051 = vpop.f32.mrb[0].mxu0
  %4052 = vmatprep.mubr.bf16.mxu0 0
  %4053 = vmatmul.mubr.bf16.gmra.mrb[0].mxu0 %v3926
  %v4054 = vpop.f32.mrb[0].mxu0
  %v4055 = vadd.f32 %v3962, %v4054
  %v4056 = vpop.f32.mrb[0].mxu0
  %v4057 = vpop.f32.mrb[0].mxu0
  %v4058 = vadd.f32 %v3962, %v4057
  %v4059 = vpop.f32.mrb[0].mxu0
  %4060 = vmatprep.mubr.bf16.mxu0 0
  %4061 = vmatmul.mubr.bf16.gmra.mrb[0].mxu0 %v3927
  %v4062 = vpop.f32.mrb[0].mxu0
  %v4063 = vadd.f32 %v3962, %v4062
  %v4064 = vpop.f32.mrb[0].mxu0
  %v4065 = vpop.f32.mrb[0].mxu0
  %v4066 = vadd.f32 %v3962, %v4065
  %v4067 = vpop.f32.mrb[0].mxu0
  %4068 = vmatprep.mubr.bf16.mxu0 0
  %4069 = vmatmul.mubr.bf16.gmra.mrb[0].mxu0 %v3928
  %v4070 = vpop.f32.mrb[0].mxu0
  %v4071 = vadd.f32 %v3962, %v4070
  %v4072 = vpop.f32.mrb[0].mxu0
  %v4073 = vpop.f32.mrb[0].mxu0
  %v4074 = vadd.f32 %v3962, %v4073
  %v4075 = vpop.f32.mrb[0].mxu0
  %4076 = vmatprep.mubr.bf16.mxu0 0
  %4077 = vmatmul.mubr.bf16.gmra.mrb[0].mxu0 %v3929
  %v4078 = vpop.f32.mrb[0].mxu0
  %v4079 = vadd.f32 %v3962, %v4078
  %v4080 = vpop.f32.mrb[0].mxu0
  %v4081 = vpop.f32.mrb[0].mxu0
  %v4082 = vadd.f32 %v3962, %v4081
  %v4083 = vpop.f32.mrb[0].mxu0
  %4084 = vmatprep.mubr.bf16.mxu0 0
  %4085 = vmatmul.mubr.bf16.gmra.mrb[0].mxu0 %v3930
  %v4086 = vpop.f32.mrb[0].mxu0
  %v4087 = vadd.f32 %v3962, %v4086
  %v4088 = vpop.f32.mrb[0].mxu0
  %v4089 = vpop.f32.mrb[0].mxu0
  %v4090 = vadd.f32 %v3962, %v4089
  %v4091 = vpop.f32.mrb[0].mxu0
  %4092 = vmatprep.mubr.bf16.mxu0 0
  %4093 = vmatmul.mubr.bf16.gmra.mrb[0].mxu0 %v3931
  %v4094 = vpop.f32.mrb[0].mxu0
  %v4095 = vadd.f32 %v3962, %v4094
  %v4096 = vpop.f32.mrb[0].mxu0
  %v4097 = vpop.f32.mrb[0].mxu0
  %v4098 = vadd.f32 %v3962, %v4097
  %v4099 = vpop.f32.mrb[0].mxu0
  %4100 = vmatprep.mubr.bf16.mxu0 0
  %4101 = vmatmul.mubr.bf16.gmra.mrb[0].mxu0 %v3932
  %v4102 = vpop.f32.mrb[0].mxu0
  %v4103 = vadd.f32 %v3962, %v4102
  %v4104 = vpop.f32.mrb[0].mxu0
  %v4105 = vpop.f32.mrb[0].mxu0
  %v4106 = vadd.f32 %v3962, %v4105
  %v4107 = vpop.f32.mrb[0].mxu0
  %4108 = vmatprep.mubr.bf16.mxu0 0
  %4109 = vmatmul.mubr.bf16.gmra.mrb[0].mxu0 %v3933
  %v4110 = vpop.f32.mrb[0].mxu0
  %v4111 = vadd.f32 %v3962, %v4110
  %v4112 = vpop.f32.mrb[0].mxu0
  %v4113 = vpop.f32.mrb[0].mxu0
  %v4114 = vadd.f32 %v3962, %v4113
  %v4115 = vpop.f32.mrb[0].mxu0
  %4116 = vmatprep.mubr.bf16.mxu0 0
  %4117 = vmatmul.mubr.bf16.gmra.mrb[0].mxu0 %v3934
  %v4118 = vpop.f32.mrb[0].mxu0
  %v4119 = vadd.f32 %v3962, %v4118
  %v4120 = vpop.f32.mrb[0].mxu0
  %v4121 = vpop.f32.mrb[0].mxu0
  %v4122 = vadd.f32 %v3962, %v4121
  %v4123 = vpop.f32.mrb[0].mxu0
  %4124 = vmatprep.mubr.bf16.mxu0 0
  %4125 = vmatmul.mubr.bf16.gmra.mrb[0].mxu0 %v3935
  %v4126 = vpop.f32.mrb[0].mxu0
  %v4127 = vadd.f32 %v3962, %v4126
  %v4128 = vpop.f32.mrb[0].mxu0
  %v4129 = vpop.f32.mrb[0].mxu0
  %v4130 = vadd.f32 %v3962, %v4129
  %v4131 = vpop.f32.mrb[0].mxu0
  %4132 = vmatprep.mubr.bf16.mxu0 0
  %4133 = vmatmul.mubr.bf16.gmra.mrb[0].mxu0 %v3936
  %v4134 = vpop.f32.mrb[0].mxu0
  %v4135 = vadd.f32 %v3962, %v4134
  %v4136 = vpop.f32.mrb[0].mxu0
  %v4137 = vpop.f32.mrb[0].mxu0
  %v4138 = vadd.f32 %v3962, %v4137
  %v4139 = vpop.f32.mrb[0].mxu0
  %4140 = vmatprep.mubr.bf16.mxu0 0
  %4141 = vmatmul.mubr.bf16.gmra.mrb[0].mxu0 %v3937
  %v4142 = vpop.f32.mrb[0].mxu0
  %v4143 = vadd.f32 %v3962, %v4142
  %v4144 = vpop.f32.mrb[0].mxu0
  %v4145 = vpop.f32.mrb[0].mxu0
  %v4146 = vadd.f32 %v3962, %v4145
  %v4147 = vpop.f32.mrb[0].mxu0
  %4148 = vmatprep.mubr.bf16.mxu0 0
  %4149 = vmatmul.mubr.bf16.gmra.mrb[0].mxu0 %v3938
  %v4150 = vpop.f32.mrb[0].mxu0
  %v4151 = vadd.f32 %v3962, %v4150
  %v4152 = vpop.f32.mrb[0].mxu0
  %v4153 = vpop.f32.mrb[0].mxu0
  %v4154 = vadd.f32 %v3962, %v4153
  %v4155 = vpop.f32.mrb[0].mxu0
  %4156 = vmatprep.mubr.bf16.mxu0 0
  %4157 = vmatmul.mubr.bf16.gmra.mrb[0].mxu0 %v3939
  %v4158 = vpop.f32.mrb[0].mxu0
  %v4159 = vadd.f32 %v3962, %v4158
  %v4160 = vpop.f32.mrb[0].mxu0
  %v4161 = vpop.f32.mrb[0].mxu0
  %v4162 = vadd.f32 %v3962, %v4161
  %v4163 = vpop.f32.mrb[0].mxu0
  %4164 = vmatprep.mubr.bf16.mxu0 0
  %4165 = vmatmul.mubr.bf16.gmra.mrb[0].mxu0 %v3940
  %v4166 = vpop.f32.mrb[0].mxu0
  %v4167 = vadd.f32 %v3962, %v4166
  %v4168 = vpop.f32.mrb[0].mxu0
  %v4169 = vpop.f32.mrb[0].mxu0
  %v4170 = vadd.f32 %v3962, %v4169
  %v4171 = vpop.f32.mrb[0].mxu0
  %4172 = vdwg.mxu0
  %v4173 = vmax.f32 %v4047, 0.0
  %v4174 = vmax.f32 %v4050, 0.0
  %v4175 = vmax.f32 %v4055, 0.0
  %v4176 = vmax.f32 %v4058, 0.0
  %v4177 = vmax.f32 %v4063, 0.0
  %v4178 = vmax.f32 %v4066, 0.0
  %v4179 = vmax.f32 %v4071, 0.0
  %v4180 = vmax.f32 %v4074, 0.0
  %v4181 = vmax.f32 %v4079, 0.0
  %v4182 = vmax.f32 %v4082, 0.0
  %v4183 = vmax.f32 %v4087, 0.0
  %v4184 = vmax.f32 %v4090, 0.0
  %v4185 = vmax.f32 %v4095, 0.0
  %v4186 = vmax.f32 %v4098, 0.0
  %v4187 = vmax.f32 %v4103, 0.0
  %v4188 = vmax.f32 %v4106, 0.0
  %v4189 = vmax.f32 %v4111, 0.0
  %v4190 = vmax.f32 %v4114, 0.0
  %v4191 = vmax.f32 %v4119, 0.0
  %v4192 = vmax.f32 %v4122, 0.0
  %v4193 = vmax.f32 %v4127, 0.0
  %v4194 = vmax.f32 %v4130, 0.0
  %v4195 = vmax.f32 %v4135, 0.0
  %v4196 = vmax.f32 %v4138, 0.0
  %v4197 = vmax.f32 %v4143, 0.0
  %v4198 = vmax.f32 %v4146, 0.0
  %v4199 = vmax.f32 %v4151, 0.0
  %v4200 = vmax.f32 %v4154, 0.0
  %v4201 = vmax.f32 %v4159, 0.0
  %v4202 = vmax.f32 %v4162, 0.0
  %v4203 = vmax.f32 %v4167, 0.0
  %v4204 = vmax.f32 %v4170, 0.0
  %v4205 = vpack.c.bf16 %v4174, %v4173
  %v4206 = vpack.c.bf16 %v4176, %v4175
  %v4207 = vpack.c.bf16 %v4178, %v4177
  %v4208 = vpack.c.bf16 %v4180, %v4179
  %v4209 = vpack.c.bf16 %v4182, %v4181
  %v4210 = vpack.c.bf16 %v4184, %v4183
  %v4211 = vpack.c.bf16 %v4186, %v4185
  %v4212 = vpack.c.bf16 %v4188, %v4187
  %v4213 = vpack.c.bf16 %v4190, %v4189
  %v4214 = vpack.c.bf16 %v4192, %v4191
  %v4215 = vpack.c.bf16 %v4194, %v4193
  %v4216 = vpack.c.bf16 %v4196, %v4195
  %v4217 = vpack.c.bf16 %v4198, %v4197
  %v4218 = vpack.c.bf16 %v4200, %v4199
  %v4219 = vpack.c.bf16 %v4202, %v4201
  %v4220 = vpack.c.bf16 %v4204, %v4203
  %v4221 = vld [vmem:[%s1316] sm:$0xf]
  %v4222 = vld [vmem:[%s1316 + $0x4] sm:$0xf]
  %v4223 = vld [vmem:[%s1316 + $0x8] sm:$0xf]
  %v4224 = vld [vmem:[%s1316 + $0xc] sm:$0xf]
  %v4225 = vld [vmem:[%s1316 + $0x10] sm:$0xf]
  %v4226 = vld [vmem:[%s1316 + $0x14] sm:$0xf]
  %v4227 = vld [vmem:[%s1316 + $0x18] sm:$0xf]
  %v4228 = vld [vmem:[%s1316 + $0x1c] sm:$0xf]
  %v4229 = vld [vmem:[%s1316 + $0x20] sm:$0xf]
  %v4230 = vld [vmem:[%s1316 + $0x24] sm:$0xf]
  %v4231 = vld [vmem:[%s1316 + $0x28] sm:$0xf]
  %v4232 = vld [vmem:[%s1316 + $0x2c] sm:$0xf]
  %v4233 = vld [vmem:[%s1316 + $0x30] sm:$0xf]
  %v4234 = vld [vmem:[%s1316 + $0x34] sm:$0xf]
  %v4235 = vld [vmem:[%s1316 + $0x38] sm:$0xf]
  %v4236 = vld [vmem:[%s1316 + $0x3c] sm:$0xf]
  %v4237 = vld [vmem:[%s1333] sm:$0x1]
  %v4239 = vlaneseq
  %v4240 = vshrl.u32 %v4239, 7
  %v4241 = vsub.s32 0, %v4240
  %v4242 = vrot.slane %v4237, %v4241
  %v4260 = vunpack.c.l.b16 %v4221
  %v4261 = vunpack.c.l.b16 %v4222
  %v4262 = vunpack.c.l.b16 %v4223
  %v4263 = vunpack.c.l.b16 %v4224
  %v4264 = vunpack.c.l.b16 %v4225
  %v4265 = vunpack.c.l.b16 %v4226
  %v4266 = vunpack.c.l.b16 %v4227
  %v4267 = vunpack.c.l.b16 %v4228
  %v4268 = vunpack.c.l.b16 %v4229
  %v4269 = vunpack.c.l.b16 %v4230
  %v4270 = vunpack.c.l.b16 %v4231
  %v4271 = vunpack.c.l.b16 %v4232
  %v4272 = vunpack.c.l.b16 %v4233
  %v4273 = vunpack.c.l.b16 %v4234
  %v4274 = vunpack.c.l.b16 %v4235
  %v4275 = vunpack.c.l.b16 %v4236
  %v4276 = vpack.c.b16 %v4261, %v4260
  %v4277 = vpack.c.b16 %v4263, %v4262
  %v4278 = vpack.c.b16 %v4265, %v4264
  %v4279 = vpack.c.b16 %v4267, %v4266
  %v4280 = vpack.c.b16 %v4269, %v4268
  %v4281 = vpack.c.b16 %v4271, %v4270
  %v4282 = vpack.c.b16 %v4273, %v4272
  %v4283 = vpack.c.b16 %v4275, %v4274
  %4292 = vmatprep.subr.bf16.mxu0 0
  %4293 = vmatpush1.bf16.msra.mxu0 %v4276
  %4294 = vmatprep.subr.bf16.mxu0 0
  %4295 = vmatpush1.bf16.msra.mxu0 %v4277
  %4296 = vmatprep.subr.bf16.mxu0 0
  %4297 = vmatpush1.bf16.msra.mxu0 %v4278
  %4298 = vmatprep.subr.bf16.mxu0 0
  %4299 = vmatpush1.bf16.msra.mxu0 %v4279
  %4300 = vmatprep.subr.bf16.mxu0 0
  %4301 = vmatpush1.bf16.msra.mxu0 %v4280
  %4302 = vmatprep.subr.bf16.mxu0 0
  %4303 = vmatpush1.bf16.msra.mxu0 %v4281
  %4304 = vmatprep.subr.bf16.mxu0 0
  %4305 = vmatpush1.bf16.msra.mxu0 %v4282
  %4306 = vmatprep.subr.bf16.mxu0 0
  %4307 = vmatpush1.bf16.msra.mxu0 %v4283
  %4308 = vmatprep.subr.bf16.mxu0 0
  %4309 = vmatpush1.bf16.msra.mxu0 0
  %4310 = vmatprep.subr.bf16.mxu0 0
  %4311 = vmatpush1.bf16.msra.mxu0 0
  %4312 = vmatprep.subr.bf16.mxu0 0
  %4313 = vmatpush1.bf16.msra.mxu0 0
  %4314 = vmatprep.subr.bf16.mxu0 0
  %4315 = vmatpush1.bf16.msra.mxu0 0
  %4316 = vmatprep.subr.bf16.mxu0 0
  %4317 = vmatpush1.bf16.msra.mxu0 0
  %4318 = vmatprep.subr.bf16.mxu0 0
  %4319 = vmatpush1.bf16.msra.mxu0 0
  %4320 = vmatprep.subr.bf16.mxu0 0
  %4321 = vmatpush1.bf16.msra.mxu0 0
  %4322 = vmatprep.subr.bf16.mxu0 0
  %4323 = vmatpush1.bf16.msra.mxu0 0
  %4324 = vmatprep.mubr.bf16.mxu0 0
  %4325 = vmatmul.mubr.bf16.gmra.mrb[0].mxu0 %v4205
  %v4326 = vpop.f32.mrb[0].mxu0
  %v4327 = vadd.f32 %v4242, %v4326
  %v4328 = vpop.f32.mrb[0].mxu0
  %v4329 = vpop.f32.mrb[0].mxu0
  %v4330 = vadd.f32 %v4242, %v4329
  %v4331 = vpop.f32.mrb[0].mxu0
  %4332 = vmatprep.mubr.bf16.mxu0 0
  %4333 = vmatmul.mubr.bf16.gmra.mrb[0].mxu0 %v4206
  %v4334 = vpop.f32.mrb[0].mxu0
  %v4335 = vadd.f32 %v4242, %v4334
  %v4336 = vpop.f32.mrb[0].mxu0
  %v4337 = vpop.f32.mrb[0].mxu0
  %v4338 = vadd.f32 %v4242, %v4337
  %v4339 = vpop.f32.mrb[0].mxu0
  %4340 = vmatprep.mubr.bf16.mxu0 0
  %4341 = vmatmul.mubr.bf16.gmra.mrb[0].mxu0 %v4207
  %v4342 = vpop.f32.mrb[0].mxu0
  %v4343 = vadd.f32 %v4242, %v4342
  %v4344 = vpop.f32.mrb[0].mxu0
  %v4345 = vpop.f32.mrb[0].mxu0
  %v4346 = vadd.f32 %v4242, %v4345
  %v4347 = vpop.f32.mrb[0].mxu0
  %4348 = vmatprep.mubr.bf16.mxu0 0
  %4349 = vmatmul.mubr.bf16.gmra.mrb[0].mxu0 %v4208
  %v4350 = vpop.f32.mrb[0].mxu0
  %v4351 = vadd.f32 %v4242, %v4350
  %v4352 = vpop.f32.mrb[0].mxu0
  %v4353 = vpop.f32.mrb[0].mxu0
  %v4354 = vadd.f32 %v4242, %v4353
  %v4355 = vpop.f32.mrb[0].mxu0
  %4356 = vmatprep.mubr.bf16.mxu0 0
  %4357 = vmatmul.mubr.bf16.gmra.mrb[0].mxu0 %v4209
  %v4358 = vpop.f32.mrb[0].mxu0
  %v4359 = vadd.f32 %v4242, %v4358
  %v4360 = vpop.f32.mrb[0].mxu0
  %v4361 = vpop.f32.mrb[0].mxu0
  %v4362 = vadd.f32 %v4242, %v4361
  %v4363 = vpop.f32.mrb[0].mxu0
  %4364 = vmatprep.mubr.bf16.mxu0 0
  %4365 = vmatmul.mubr.bf16.gmra.mrb[0].mxu0 %v4210
  %v4366 = vpop.f32.mrb[0].mxu0
  %v4367 = vadd.f32 %v4242, %v4366
  %v4368 = vpop.f32.mrb[0].mxu0
  %v4369 = vpop.f32.mrb[0].mxu0
  %v4370 = vadd.f32 %v4242, %v4369
  %v4371 = vpop.f32.mrb[0].mxu0
  %4372 = vmatprep.mubr.bf16.mxu0 0
  %4373 = vmatmul.mubr.bf16.gmra.mrb[0].mxu0 %v4211
  %v4374 = vpop.f32.mrb[0].mxu0
  %v4375 = vadd.f32 %v4242, %v4374
  %v4376 = vpop.f32.mrb[0].mxu0
  %v4377 = vpop.f32.mrb[0].mxu0
  %v4378 = vadd.f32 %v4242, %v4377
  %v4379 = vpop.f32.mrb[0].mxu0
  %4380 = vmatprep.mubr.bf16.mxu0 0
  %4381 = vmatmul.mubr.bf16.gmra.mrb[0].mxu0 %v4212
  %v4382 = vpop.f32.mrb[0].mxu0
  %v4383 = vadd.f32 %v4242, %v4382
  %v4384 = vpop.f32.mrb[0].mxu0
  %v4385 = vpop.f32.mrb[0].mxu0
  %v4386 = vadd.f32 %v4242, %v4385
  %v4387 = vpop.f32.mrb[0].mxu0
  %4388 = vmatprep.mubr.bf16.mxu0 0
  %4389 = vmatmul.mubr.bf16.gmra.mrb[0].mxu0 %v4213
  %v4390 = vpop.f32.mrb[0].mxu0
  %v4391 = vadd.f32 %v4242, %v4390
  %v4392 = vpop.f32.mrb[0].mxu0
  %v4393 = vpop.f32.mrb[0].mxu0
  %v4394 = vadd.f32 %v4242, %v4393
  %v4395 = vpop.f32.mrb[0].mxu0
  %4396 = vmatprep.mubr.bf16.mxu0 0
  %4397 = vmatmul.mubr.bf16.gmra.mrb[0].mxu0 %v4214
  %v4398 = vpop.f32.mrb[0].mxu0
  %v4399 = vadd.f32 %v4242, %v4398
  %v4400 = vpop.f32.mrb[0].mxu0
  %v4401 = vpop.f32.mrb[0].mxu0
  %v4402 = vadd.f32 %v4242, %v4401
  %v4403 = vpop.f32.mrb[0].mxu0
  %4404 = vmatprep.mubr.bf16.mxu0 0
  %4405 = vmatmul.mubr.bf16.gmra.mrb[0].mxu0 %v4215
  %v4406 = vpop.f32.mrb[0].mxu0
  %v4407 = vadd.f32 %v4242, %v4406
  %v4408 = vpop.f32.mrb[0].mxu0
  %v4409 = vpop.f32.mrb[0].mxu0
  %v4410 = vadd.f32 %v4242, %v4409
  %v4411 = vpop.f32.mrb[0].mxu0
  %4412 = vmatprep.mubr.bf16.mxu0 0
  %4413 = vmatmul.mubr.bf16.gmra.mrb[0].mxu0 %v4216
  %v4414 = vpop.f32.mrb[0].mxu0
  %v4415 = vadd.f32 %v4242, %v4414
  %v4416 = vpop.f32.mrb[0].mxu0
  %v4417 = vpop.f32.mrb[0].mxu0
  %v4418 = vadd.f32 %v4242, %v4417
  %v4419 = vpop.f32.mrb[0].mxu0
  %4420 = vmatprep.mubr.bf16.mxu0 0
  %4421 = vmatmul.mubr.bf16.gmra.mrb[0].mxu0 %v4217
  %v4422 = vpop.f32.mrb[0].mxu0
  %v4423 = vadd.f32 %v4242, %v4422
  %v4424 = vpop.f32.mrb[0].mxu0
  %v4425 = vpop.f32.mrb[0].mxu0
  %v4426 = vadd.f32 %v4242, %v4425
  %v4427 = vpop.f32.mrb[0].mxu0
  %4428 = vmatprep.mubr.bf16.mxu0 0
  %4429 = vmatmul.mubr.bf16.gmra.mrb[0].mxu0 %v4218
  %v4430 = vpop.f32.mrb[0].mxu0
  %v4431 = vadd.f32 %v4242, %v4430
  %v4432 = vpop.f32.mrb[0].mxu0
  %v4433 = vpop.f32.mrb[0].mxu0
  %v4434 = vadd.f32 %v4242, %v4433
  %v4435 = vpop.f32.mrb[0].mxu0
  %4436 = vmatprep.mubr.bf16.mxu0 0
  %4437 = vmatmul.mubr.bf16.gmra.mrb[0].mxu0 %v4219
  %v4438 = vpop.f32.mrb[0].mxu0
  %v4439 = vadd.f32 %v4242, %v4438
  %v4440 = vpop.f32.mrb[0].mxu0
  %v4441 = vpop.f32.mrb[0].mxu0
  %v4442 = vadd.f32 %v4242, %v4441
  %v4443 = vpop.f32.mrb[0].mxu0
  %4444 = vmatprep.mubr.bf16.mxu0 0
  %4445 = vmatmul.mubr.bf16.gmra.mrb[0].mxu0 %v4220
  %v4446 = vpop.f32.mrb[0].mxu0
  %v4447 = vadd.f32 %v4242, %v4446
  %v4448 = vpop.f32.mrb[0].mxu0
  %v4449 = vpop.f32.mrb[0].mxu0
  %v4450 = vadd.f32 %v4242, %v4449
  %v4451 = vpop.f32.mrb[0].mxu0
  %4452 = vdwg.mxu0
  %v4453 = vmax.f32 %v4327, 0.0
  %v4454 = vmax.f32 %v4330, 0.0
  %v4455 = vmax.f32 %v4335, 0.0
  %v4456 = vmax.f32 %v4338, 0.0
  %v4457 = vmax.f32 %v4343, 0.0
  %v4458 = vmax.f32 %v4346, 0.0
  %v4459 = vmax.f32 %v4351, 0.0
  %v4460 = vmax.f32 %v4354, 0.0
  %v4461 = vmax.f32 %v4359, 0.0
  %v4462 = vmax.f32 %v4362, 0.0
  %v4463 = vmax.f32 %v4367, 0.0
  %v4464 = vmax.f32 %v4370, 0.0
  %v4465 = vmax.f32 %v4375, 0.0
  %v4466 = vmax.f32 %v4378, 0.0
  %v4467 = vmax.f32 %v4383, 0.0
  %v4468 = vmax.f32 %v4386, 0.0
  %v4469 = vmax.f32 %v4391, 0.0
  %v4470 = vmax.f32 %v4394, 0.0
  %v4471 = vmax.f32 %v4399, 0.0
  %v4472 = vmax.f32 %v4402, 0.0
  %v4473 = vmax.f32 %v4407, 0.0
  %v4474 = vmax.f32 %v4410, 0.0
  %v4475 = vmax.f32 %v4415, 0.0
  %v4476 = vmax.f32 %v4418, 0.0
  %v4477 = vmax.f32 %v4423, 0.0
  %v4478 = vmax.f32 %v4426, 0.0
  %v4479 = vmax.f32 %v4431, 0.0
  %v4480 = vmax.f32 %v4434, 0.0
  %v4481 = vmax.f32 %v4439, 0.0
  %v4482 = vmax.f32 %v4442, 0.0
  %v4483 = vmax.f32 %v4447, 0.0
  %v4484 = vmax.f32 %v4450, 0.0
  %v4485 = vpack.c.bf16 %v4454, %v4453
  %v4486 = vpack.c.bf16 %v4456, %v4455
  %v4487 = vpack.c.bf16 %v4458, %v4457
  %v4488 = vpack.c.bf16 %v4460, %v4459
  %v4489 = vpack.c.bf16 %v4462, %v4461
  %v4490 = vpack.c.bf16 %v4464, %v4463
  %v4491 = vpack.c.bf16 %v4466, %v4465
  %v4492 = vpack.c.bf16 %v4468, %v4467
  %v4493 = vpack.c.bf16 %v4470, %v4469
  %v4494 = vpack.c.bf16 %v4472, %v4471
  %v4495 = vpack.c.bf16 %v4474, %v4473
  %v4496 = vpack.c.bf16 %v4476, %v4475
  %v4497 = vpack.c.bf16 %v4478, %v4477
  %v4498 = vpack.c.bf16 %v4480, %v4479
  %v4499 = vpack.c.bf16 %v4482, %v4481
  %v4500 = vpack.c.bf16 %v4484, %v4483
  %v4501 = vld [vmem:[%s1598] sm:$0xf]
  %v4502 = vld [vmem:[%s1598 + $0x4] sm:$0xf]
  %v4503 = vld [vmem:[%s1598 + $0x8] sm:$0xf]
  %v4504 = vld [vmem:[%s1598 + $0xc] sm:$0xf]
  %v4505 = vld [vmem:[%s1598 + $0x10] sm:$0xf]
  %v4506 = vld [vmem:[%s1598 + $0x14] sm:$0xf]
  %v4507 = vld [vmem:[%s1598 + $0x18] sm:$0xf]
  %v4508 = vld [vmem:[%s1598 + $0x1c] sm:$0xf]
  %v4509 = vld [vmem:[%s1598 + $0x20] sm:$0xf]
  %v4510 = vld [vmem:[%s1598 + $0x24] sm:$0xf]
  %v4511 = vld [vmem:[%s1598 + $0x28] sm:$0xf]
  %v4512 = vld [vmem:[%s1598 + $0x2c] sm:$0xf]
  %v4513 = vld [vmem:[%s1598 + $0x30] sm:$0xf]
  %v4514 = vld [vmem:[%s1598 + $0x34] sm:$0xf]
  %v4515 = vld [vmem:[%s1598 + $0x38] sm:$0xf]
  %v4516 = vld [vmem:[%s1598 + $0x3c] sm:$0xf]
  %v4517 = vld [vmem:[%s1615] sm:$0x1]
  %v4519 = vlaneseq
  %v4520 = vshrl.u32 %v4519, 7
  %v4521 = vsub.s32 0, %v4520
  %v4522 = vrot.slane %v4517, %v4521
  %v4540 = vunpack.c.l.b16 %v4501
  %v4541 = vunpack.c.l.b16 %v4502
  %v4542 = vunpack.c.l.b16 %v4503
  %v4543 = vunpack.c.l.b16 %v4504
  %v4544 = vunpack.c.l.b16 %v4505
  %v4545 = vunpack.c.l.b16 %v4506
  %v4546 = vunpack.c.l.b16 %v4507
  %v4547 = vunpack.c.l.b16 %v4508
  %v4548 = vunpack.c.l.b16 %v4509
  %v4549 = vunpack.c.l.b16 %v4510
  %v4550 = vunpack.c.l.b16 %v4511
  %v4551 = vunpack.c.l.b16 %v4512
  %v4552 = vunpack.c.l.b16 %v4513
  %v4553 = vunpack.c.l.b16 %v4514
  %v4554 = vunpack.c.l.b16 %v4515
  %v4555 = vunpack.c.l.b16 %v4516
  %v4556 = vpack.c.b16 %v4541, %v4540
  %v4557 = vpack.c.b16 %v4543, %v4542
  %v4558 = vpack.c.b16 %v4545, %v4544
  %v4559 = vpack.c.b16 %v4547, %v4546
  %v4560 = vpack.c.b16 %v4549, %v4548
  %v4561 = vpack.c.b16 %v4551, %v4550
  %v4562 = vpack.c.b16 %v4553, %v4552
  %v4563 = vpack.c.b16 %v4555, %v4554
  %4572 = vmatprep.subr.bf16.mxu0 0
  %4573 = vmatpush1.bf16.msra.mxu0 %v4556
  %4574 = vmatprep.subr.bf16.mxu0 0
  %4575 = vmatpush1.bf16.msra.mxu0 %v4557
  %4576 = vmatprep.subr.bf16.mxu0 0
  %4577 = vmatpush1.bf16.msra.mxu0 %v4558
  %4578 = vmatprep.subr.bf16.mxu0 0
  %4579 = vmatpush1.bf16.msra.mxu0 %v4559
  %4580 = vmatprep.subr.bf16.mxu0 0
  %4581 = vmatpush1.bf16.msra.mxu0 %v4560
  %4582 = vmatprep.subr.bf16.mxu0 0
  %4583 = vmatpush1.bf16.msra.mxu0 %v4561
  %4584 = vmatprep.subr.bf16.mxu0 0
  %4585 = vmatpush1.bf16.msra.mxu0 %v4562
  %4586 = vmatprep.subr.bf16.mxu0 0
  %4587 = vmatpush1.bf16.msra.mxu0 %v4563
  %4588 = vmatprep.subr.bf16.mxu0 0
  %4589 = vmatpush1.bf16.msra.mxu0 0
  %4590 = vmatprep.subr.bf16.mxu0 0
  %4591 = vmatpush1.bf16.msra.mxu0 0
  %4592 = vmatprep.subr.bf16.mxu0 0
  %4593 = vmatpush1.bf16.msra.mxu0 0
  %4594 = vmatprep.subr.bf16.mxu0 0
  %4595 = vmatpush1.bf16.msra.mxu0 0
  %4596 = vmatprep.subr.bf16.mxu0 0
  %4597 = vmatpush1.bf16.msra.mxu0 0
  %4598 = vmatprep.subr.bf16.mxu0 0
  %4599 = vmatpush1.bf16.msra.mxu0 0
  %4600 = vmatprep.subr.bf16.mxu0 0
  %4601 = vmatpush1.bf16.msra.mxu0 0
  %4602 = vmatprep.subr.bf16.mxu0 0
  %4603 = vmatpush1.bf16.msra.mxu0 0
  %4604 = vmatprep.mubr.bf16.mxu0 0
  %4605 = vmatmul.mubr.bf16.gmra.mrb[0].mxu0 %v4485
  %v4606 = vpop.f32.mrb[0].mxu0
  %v4607 = vadd.f32 %v4522, %v4606
  %v4608 = vpop.f32.mrb[0].mxu0
  %v4609 = vpop.f32.mrb[0].mxu0
  %v4610 = vadd.f32 %v4522, %v4609
  %v4611 = vpop.f32.mrb[0].mxu0
  %4612 = vmatprep.mubr.bf16.mxu0 0
  %4613 = vmatmul.mubr.bf16.gmra.mrb[0].mxu0 %v4486
  %v4614 = vpop.f32.mrb[0].mxu0
  %v4615 = vadd.f32 %v4522, %v4614
  %v4616 = vpop.f32.mrb[0].mxu0
  %v4617 = vpop.f32.mrb[0].mxu0
  %v4618 = vadd.f32 %v4522, %v4617
  %v4619 = vpop.f32.mrb[0].mxu0
  %4620 = vmatprep.mubr.bf16.mxu0 0
  %4621 = vmatmul.mubr.bf16.gmra.mrb[0].mxu0 %v4487
  %v4622 = vpop.f32.mrb[0].mxu0
  %v4623 = vadd.f32 %v4522, %v4622
  %v4624 = vpop.f32.mrb[0].mxu0
  %v4625 = vpop.f32.mrb[0].mxu0
  %v4626 = vadd.f32 %v4522, %v4625
  %v4627 = vpop.f32.mrb[0].mxu0
  %4628 = vmatprep.mubr.bf16.mxu0 0
  %4629 = vmatmul.mubr.bf16.gmra.mrb[0].mxu0 %v4488
  %v4630 = vpop.f32.mrb[0].mxu0
  %v4631 = vadd.f32 %v4522, %v4630
  %v4632 = vpop.f32.mrb[0].mxu0
  %v4633 = vpop.f32.mrb[0].mxu0
  %v4634 = vadd.f32 %v4522, %v4633
  %v4635 = vpop.f32.mrb[0].mxu0
  %4636 = vmatprep.mubr.bf16.mxu0 0
  %4637 = vmatmul.mubr.bf16.gmra.mrb[0].mxu0 %v4489
  %v4638 = vpop.f32.mrb[0].mxu0
  %v4639 = vadd.f32 %v4522, %v4638
  %v4640 = vpop.f32.mrb[0].mxu0
  %v4641 = vpop.f32.mrb[0].mxu0
  %v4642 = vadd.f32 %v4522, %v4641
  %v4643 = vpop.f32.mrb[0].mxu0
  %4644 = vmatprep.mubr.bf16.mxu0 0
  %4645 = vmatmul.mubr.bf16.gmra.mrb[0].mxu0 %v4490
  %v4646 = vpop.f32.mrb[0].mxu0
  %v4647 = vadd.f32 %v4522, %v4646
  %v4648 = vpop.f32.mrb[0].mxu0
  %v4649 = vpop.f32.mrb[0].mxu0
  %v4650 = vadd.f32 %v4522, %v4649
  %v4651 = vpop.f32.mrb[0].mxu0
  %4652 = vmatprep.mubr.bf16.mxu0 0
  %4653 = vmatmul.mubr.bf16.gmra.mrb[0].mxu0 %v4491
  %v4654 = vpop.f32.mrb[0].mxu0
  %v4655 = vadd.f32 %v4522, %v4654
  %v4656 = vpop.f32.mrb[0].mxu0
  %v4657 = vpop.f32.mrb[0].mxu0
  %v4658 = vadd.f32 %v4522, %v4657
  %v4659 = vpop.f32.mrb[0].mxu0
  %4660 = vmatprep.mubr.bf16.mxu0 0
  %4661 = vmatmul.mubr.bf16.gmra.mrb[0].mxu0 %v4492
  %v4662 = vpop.f32.mrb[0].mxu0
  %v4663 = vadd.f32 %v4522, %v4662
  %v4664 = vpop.f32.mrb[0].mxu0
  %v4665 = vpop.f32.mrb[0].mxu0
  %v4666 = vadd.f32 %v4522, %v4665
  %v4667 = vpop.f32.mrb[0].mxu0
  %4668 = vmatprep.mubr.bf16.mxu0 0
  %4669 = vmatmul.mubr.bf16.gmra.mrb[0].mxu0 %v4493
  %v4670 = vpop.f32.mrb[0].mxu0
  %v4671 = vadd.f32 %v4522, %v4670
  %v4672 = vpop.f32.mrb[0].mxu0
  %v4673 = vpop.f32.mrb[0].mxu0
  %v4674 = vadd.f32 %v4522, %v4673
  %v4675 = vpop.f32.mrb[0].mxu0
  %4676 = vmatprep.mubr.bf16.mxu0 0
  %4677 = vmatmul.mubr.bf16.gmra.mrb[0].mxu0 %v4494
  %v4678 = vpop.f32.mrb[0].mxu0
  %v4679 = vadd.f32 %v4522, %v4678
  %v4680 = vpop.f32.mrb[0].mxu0
  %v4681 = vpop.f32.mrb[0].mxu0
  %v4682 = vadd.f32 %v4522, %v4681
  %v4683 = vpop.f32.mrb[0].mxu0
  %4684 = vmatprep.mubr.bf16.mxu0 0
  %4685 = vmatmul.mubr.bf16.gmra.mrb[0].mxu0 %v4495
  %v4686 = vpop.f32.mrb[0].mxu0
  %v4687 = vadd.f32 %v4522, %v4686
  %v4688 = vpop.f32.mrb[0].mxu0
  %v4689 = vpop.f32.mrb[0].mxu0
  %v4690 = vadd.f32 %v4522, %v4689
  %v4691 = vpop.f32.mrb[0].mxu0
  %4692 = vmatprep.mubr.bf16.mxu0 0
  %4693 = vmatmul.mubr.bf16.gmra.mrb[0].mxu0 %v4496
  %v4694 = vpop.f32.mrb[0].mxu0
  %v4695 = vadd.f32 %v4522, %v4694
  %v4696 = vpop.f32.mrb[0].mxu0
  %v4697 = vpop.f32.mrb[0].mxu0
  %v4698 = vadd.f32 %v4522, %v4697
  %v4699 = vpop.f32.mrb[0].mxu0
  %4700 = vmatprep.mubr.bf16.mxu0 0
  %4701 = vmatmul.mubr.bf16.gmra.mrb[0].mxu0 %v4497
  %v4702 = vpop.f32.mrb[0].mxu0
  %v4703 = vadd.f32 %v4522, %v4702
  %v4704 = vpop.f32.mrb[0].mxu0
  %v4705 = vpop.f32.mrb[0].mxu0
  %v4706 = vadd.f32 %v4522, %v4705
  %v4707 = vpop.f32.mrb[0].mxu0
  %4708 = vmatprep.mubr.bf16.mxu0 0
  %4709 = vmatmul.mubr.bf16.gmra.mrb[0].mxu0 %v4498
  %v4710 = vpop.f32.mrb[0].mxu0
  %v4711 = vadd.f32 %v4522, %v4710
  %v4712 = vpop.f32.mrb[0].mxu0
  %v4713 = vpop.f32.mrb[0].mxu0
  %v4714 = vadd.f32 %v4522, %v4713
  %v4715 = vpop.f32.mrb[0].mxu0
  %4716 = vmatprep.mubr.bf16.mxu0 0
  %4717 = vmatmul.mubr.bf16.gmra.mrb[0].mxu0 %v4499
  %v4718 = vpop.f32.mrb[0].mxu0
  %v4719 = vadd.f32 %v4522, %v4718
  %v4720 = vpop.f32.mrb[0].mxu0
  %v4721 = vpop.f32.mrb[0].mxu0
  %v4722 = vadd.f32 %v4522, %v4721
  %v4723 = vpop.f32.mrb[0].mxu0
  %4724 = vmatprep.mubr.bf16.mxu0 0
  %4725 = vmatmul.mubr.bf16.gmra.mrb[0].mxu0 %v4500
  %v4726 = vpop.f32.mrb[0].mxu0
  %v4727 = vadd.f32 %v4522, %v4726
  %v4728 = vpop.f32.mrb[0].mxu0
  %v4729 = vpop.f32.mrb[0].mxu0
  %v4730 = vadd.f32 %v4522, %v4729
  %v4731 = vpop.f32.mrb[0].mxu0
  %4732 = vdwg.mxu0
  %v4733 = vmax.f32 %v4607, 0.0
  %v4734 = vmax.f32 %v4610, 0.0
  %v4735 = vmax.f32 %v4615, 0.0
  %v4736 = vmax.f32 %v4618, 0.0
  %v4737 = vmax.f32 %v4623, 0.0
  %v4738 = vmax.f32 %v4626, 0.0
  %v4739 = vmax.f32 %v4631, 0.0
  %v4740 = vmax.f32 %v4634, 0.0
  %v4741 = vmax.f32 %v4639, 0.0
  %v4742 = vmax.f32 %v4642, 0.0
  %v4743 = vmax.f32 %v4647, 0.0
  %v4744 = vmax.f32 %v4650, 0.0
  %v4745 = vmax.f32 %v4655, 0.0
  %v4746 = vmax.f32 %v4658, 0.0
  %v4747 = vmax.f32 %v4663, 0.0
  %v4748 = vmax.f32 %v4666, 0.0
  %v4749 = vmax.f32 %v4671, 0.0
  %v4750 = vmax.f32 %v4674, 0.0
  %v4751 = vmax.f32 %v4679, 0.0
  %v4752 = vmax.f32 %v4682, 0.0
  %v4753 = vmax.f32 %v4687, 0.0
  %v4754 = vmax.f32 %v4690, 0.0
  %v4755 = vmax.f32 %v4695, 0.0
  %v4756 = vmax.f32 %v4698, 0.0
  %v4757 = vmax.f32 %v4703, 0.0
  %v4758 = vmax.f32 %v4706, 0.0
  %v4759 = vmax.f32 %v4711, 0.0
  %v4760 = vmax.f32 %v4714, 0.0
  %v4761 = vmax.f32 %v4719, 0.0
  %v4762 = vmax.f32 %v4722, 0.0
  %v4763 = vmax.f32 %v4727, 0.0
  %v4764 = vmax.f32 %v4730, 0.0
  %v4765 = vpack.c.bf16 %v4734, %v4733
  %v4766 = vpack.c.bf16 %v4736, %v4735
  %v4767 = vpack.c.bf16 %v4738, %v4737
  %v4768 = vpack.c.bf16 %v4740, %v4739
  %v4769 = vpack.c.bf16 %v4742, %v4741
  %v4770 = vpack.c.bf16 %v4744, %v4743
  %v4771 = vpack.c.bf16 %v4746, %v4745
  %v4772 = vpack.c.bf16 %v4748, %v4747
  %v4773 = vpack.c.bf16 %v4750, %v4749
  %v4774 = vpack.c.bf16 %v4752, %v4751
  %v4775 = vpack.c.bf16 %v4754, %v4753
  %v4776 = vpack.c.bf16 %v4756, %v4755
  %v4777 = vpack.c.bf16 %v4758, %v4757
  %v4778 = vpack.c.bf16 %v4760, %v4759
  %v4779 = vpack.c.bf16 %v4762, %v4761
  %v4780 = vpack.c.bf16 %v4764, %v4763
  %v4781 = vld [vmem:[%s1880] sm:$0xf]
  %v4782 = vld [vmem:[%s1880 + $0x4] sm:$0xf]
  %v4783 = vld [vmem:[%s1880 + $0x8] sm:$0xf]
  %v4784 = vld [vmem:[%s1880 + $0xc] sm:$0xf]
  %v4785 = vld [vmem:[%s1880 + $0x10] sm:$0xf]
  %v4786 = vld [vmem:[%s1880 + $0x14] sm:$0xf]
  %v4787 = vld [vmem:[%s1880 + $0x18] sm:$0xf]
  %v4788 = vld [vmem:[%s1880 + $0x1c] sm:$0xf]
  %v4789 = vld [vmem:[%s1880 + $0x20] sm:$0xf]
  %v4790 = vld [vmem:[%s1880 + $0x24] sm:$0xf]
  %v4791 = vld [vmem:[%s1880 + $0x28] sm:$0xf]
  %v4792 = vld [vmem:[%s1880 + $0x2c] sm:$0xf]
  %v4793 = vld [vmem:[%s1880 + $0x30] sm:$0xf]
  %v4794 = vld [vmem:[%s1880 + $0x34] sm:$0xf]
  %v4795 = vld [vmem:[%s1880 + $0x38] sm:$0xf]
  %v4796 = vld [vmem:[%s1880 + $0x3c] sm:$0xf]
  %v4797 = vld [vmem:[%s1897] sm:$0x1]
  %v4799 = vlaneseq
  %v4800 = vshrl.u32 %v4799, 7
  %v4801 = vsub.s32 0, %v4800
  %v4802 = vrot.slane %v4797, %v4801
  %v4820 = vunpack.c.l.b16 %v4781
  %v4821 = vunpack.c.l.b16 %v4782
  %v4822 = vunpack.c.l.b16 %v4783
  %v4823 = vunpack.c.l.b16 %v4784
  %v4824 = vunpack.c.l.b16 %v4785
  %v4825 = vunpack.c.l.b16 %v4786
  %v4826 = vunpack.c.l.b16 %v4787
  %v4827 = vunpack.c.l.b16 %v4788
  %v4828 = vunpack.c.l.b16 %v4789
  %v4829 = vunpack.c.l.b16 %v4790
  %v4830 = vunpack.c.l.b16 %v4791
  %v4831 = vunpack.c.l.b16 %v4792
  %v4832 = vunpack.c.l.b16 %v4793
  %v4833 = vunpack.c.l.b16 %v4794
  %v4834 = vunpack.c.l.b16 %v4795
  %v4835 = vunpack.c.l.b16 %v4796
  %v4836 = vpack.c.b16 %v4821, %v4820
  %v4837 = vpack.c.b16 %v4823, %v4822
  %v4838 = vpack.c.b16 %v4825, %v4824
  %v4839 = vpack.c.b16 %v4827, %v4826
  %v4840 = vpack.c.b16 %v4829, %v4828
  %v4841 = vpack.c.b16 %v4831, %v4830
  %v4842 = vpack.c.b16 %v4833, %v4832
  %v4843 = vpack.c.b16 %v4835, %v4834
  %4852 = vmatprep.subr.bf16.mxu0 0
  %4853 = vmatpush1.bf16.msra.mxu0 %v4836
  %4854 = vmatprep.subr.bf16.mxu0 0
  %4855 = vmatpush1.bf16.msra.mxu0 %v4837
  %4856 = vmatprep.subr.bf16.mxu0 0
  %4857 = vmatpush1.bf16.msra.mxu0 %v4838
  %4858 = vmatprep.subr.bf16.mxu0 0
  %4859 = vmatpush1.bf16.msra.mxu0 %v4839
  %4860 = vmatprep.subr.bf16.mxu0 0
  %4861 = vmatpush1.bf16.msra.mxu0 %v4840
  %4862 = vmatprep.subr.bf16.mxu0 0
  %4863 = vmatpush1.bf16.msra.mxu0 %v4841
  %4864 = vmatprep.subr.bf16.mxu0 0
  %4865 = vmatpush1.bf16.msra.mxu0 %v4842
  %4866 = vmatprep.subr.bf16.mxu0 0
  %4867 = vmatpush1.bf16.msra.mxu0 %v4843
  %4868 = vmatprep.subr.bf16.mxu0 0
  %4869 = vmatpush1.bf16.msra.mxu0 0
  %4870 = vmatprep.subr.bf16.mxu0 0
  %4871 = vmatpush1.bf16.msra.mxu0 0
  %4872 = vmatprep.subr.bf16.mxu0 0
  %4873 = vmatpush1.bf16.msra.mxu0 0
  %4874 = vmatprep.subr.bf16.mxu0 0
  %4875 = vmatpush1.bf16.msra.mxu0 0
  %4876 = vmatprep.subr.bf16.mxu0 0
  %4877 = vmatpush1.bf16.msra.mxu0 0
  %4878 = vmatprep.subr.bf16.mxu0 0
  %4879 = vmatpush1.bf16.msra.mxu0 0
  %4880 = vmatprep.subr.bf16.mxu0 0
  %4881 = vmatpush1.bf16.msra.mxu0 0
  %4882 = vmatprep.subr.bf16.mxu0 0
  %4883 = vmatpush1.bf16.msra.mxu0 0
  %4884 = vmatprep.mubr.bf16.mxu0 0
  %4885 = vmatmul.mubr.bf16.gmra.mrb[0].mxu0 %v4765
  %v4886 = vpop.f32.mrb[0].mxu0
  %v4887 = vadd.f32 %v4802, %v4886
  %v4888 = vpop.f32.mrb[0].mxu0
  %v4889 = vpop.f32.mrb[0].mxu0
  %v4890 = vadd.f32 %v4802, %v4889
  %v4891 = vpop.f32.mrb[0].mxu0
  %4892 = vmatprep.mubr.bf16.mxu0 0
  %4893 = vmatmul.mubr.bf16.gmra.mrb[0].mxu0 %v4766
  %v4894 = vpop.f32.mrb[0].mxu0
  %v4895 = vadd.f32 %v4802, %v4894
  %v4896 = vpop.f32.mrb[0].mxu0
  %v4897 = vpop.f32.mrb[0].mxu0
  %v4898 = vadd.f32 %v4802, %v4897
  %v4899 = vpop.f32.mrb[0].mxu0
  %4900 = vmatprep.mubr.bf16.mxu0 0
  %4901 = vmatmul.mubr.bf16.gmra.mrb[0].mxu0 %v4767
  %v4902 = vpop.f32.mrb[0].mxu0
  %v4903 = vadd.f32 %v4802, %v4902
  %v4904 = vpop.f32.mrb[0].mxu0
  %v4905 = vpop.f32.mrb[0].mxu0
  %v4906 = vadd.f32 %v4802, %v4905
  %v4907 = vpop.f32.mrb[0].mxu0
  %4908 = vmatprep.mubr.bf16.mxu0 0
  %4909 = vmatmul.mubr.bf16.gmra.mrb[0].mxu0 %v4768
  %v4910 = vpop.f32.mrb[0].mxu0
  %v4911 = vadd.f32 %v4802, %v4910
  %v4912 = vpop.f32.mrb[0].mxu0
  %v4913 = vpop.f32.mrb[0].mxu0
  %v4914 = vadd.f32 %v4802, %v4913
  %v4915 = vpop.f32.mrb[0].mxu0
  %4916 = vmatprep.mubr.bf16.mxu0 0
  %4917 = vmatmul.mubr.bf16.gmra.mrb[0].mxu0 %v4769
  %v4918 = vpop.f32.mrb[0].mxu0
  %v4919 = vadd.f32 %v4802, %v4918
  %v4920 = vpop.f32.mrb[0].mxu0
  %v4921 = vpop.f32.mrb[0].mxu0
  %v4922 = vadd.f32 %v4802, %v4921
  %v4923 = vpop.f32.mrb[0].mxu0
  %4924 = vmatprep.mubr.bf16.mxu0 0
  %4925 = vmatmul.mubr.bf16.gmra.mrb[0].mxu0 %v4770
  %v4926 = vpop.f32.mrb[0].mxu0
  %v4927 = vadd.f32 %v4802, %v4926
  %v4928 = vpop.f32.mrb[0].mxu0
  %v4929 = vpop.f32.mrb[0].mxu0
  %v4930 = vadd.f32 %v4802, %v4929
  %v4931 = vpop.f32.mrb[0].mxu0
  %4932 = vmatprep.mubr.bf16.mxu0 0
  %4933 = vmatmul.mubr.bf16.gmra.mrb[0].mxu0 %v4771
  %v4934 = vpop.f32.mrb[0].mxu0
  %v4935 = vadd.f32 %v4802, %v4934
  %v4936 = vpop.f32.mrb[0].mxu0
  %v4937 = vpop.f32.mrb[0].mxu0
  %v4938 = vadd.f32 %v4802, %v4937
  %v4939 = vpop.f32.mrb[0].mxu0
  %4940 = vmatprep.mubr.bf16.mxu0 0
  %4941 = vmatmul.mubr.bf16.gmra.mrb[0].mxu0 %v4772
  %v4942 = vpop.f32.mrb[0].mxu0
  %v4943 = vadd.f32 %v4802, %v4942
  %v4944 = vpop.f32.mrb[0].mxu0
  %v4945 = vpop.f32.mrb[0].mxu0
  %v4946 = vadd.f32 %v4802, %v4945
  %v4947 = vpop.f32.mrb[0].mxu0
  %4948 = vmatprep.mubr.bf16.mxu0 0
  %4949 = vmatmul.mubr.bf16.gmra.mrb[0].mxu0 %v4773
  %v4950 = vpop.f32.mrb[0].mxu0
  %v4951 = vadd.f32 %v4802, %v4950
  %v4952 = vpop.f32.mrb[0].mxu0
  %v4953 = vpop.f32.mrb[0].mxu0
  %v4954 = vadd.f32 %v4802, %v4953
  %v4955 = vpop.f32.mrb[0].mxu0
  %4956 = vmatprep.mubr.bf16.mxu0 0
  %4957 = vmatmul.mubr.bf16.gmra.mrb[0].mxu0 %v4774
  %v4958 = vpop.f32.mrb[0].mxu0
  %v4959 = vadd.f32 %v4802, %v4958
  %v4960 = vpop.f32.mrb[0].mxu0
  %v4961 = vpop.f32.mrb[0].mxu0
  %v4962 = vadd.f32 %v4802, %v4961
  %v4963 = vpop.f32.mrb[0].mxu0
  %4964 = vmatprep.mubr.bf16.mxu0 0
  %4965 = vmatmul.mubr.bf16.gmra.mrb[0].mxu0 %v4775
  %v4966 = vpop.f32.mrb[0].mxu0
  %v4967 = vadd.f32 %v4802, %v4966
  %v4968 = vpop.f32.mrb[0].mxu0
  %v4969 = vpop.f32.mrb[0].mxu0
  %v4970 = vadd.f32 %v4802, %v4969
  %v4971 = vpop.f32.mrb[0].mxu0
  %4972 = vmatprep.mubr.bf16.mxu0 0
  %4973 = vmatmul.mubr.bf16.gmra.mrb[0].mxu0 %v4776
  %v4974 = vpop.f32.mrb[0].mxu0
  %v4975 = vadd.f32 %v4802, %v4974
  %v4976 = vpop.f32.mrb[0].mxu0
  %v4977 = vpop.f32.mrb[0].mxu0
  %v4978 = vadd.f32 %v4802, %v4977
  %v4979 = vpop.f32.mrb[0].mxu0
  %4980 = vmatprep.mubr.bf16.mxu0 0
  %4981 = vmatmul.mubr.bf16.gmra.mrb[0].mxu0 %v4777
  %v4982 = vpop.f32.mrb[0].mxu0
  %v4983 = vadd.f32 %v4802, %v4982
  %v4984 = vpop.f32.mrb[0].mxu0
  %v4985 = vpop.f32.mrb[0].mxu0
  %v4986 = vadd.f32 %v4802, %v4985
  %v4987 = vpop.f32.mrb[0].mxu0
  %4988 = vmatprep.mubr.bf16.mxu0 0
  %4989 = vmatmul.mubr.bf16.gmra.mrb[0].mxu0 %v4778
  %v4990 = vpop.f32.mrb[0].mxu0
  %v4991 = vadd.f32 %v4802, %v4990
  %v4992 = vpop.f32.mrb[0].mxu0
  %v4993 = vpop.f32.mrb[0].mxu0
  %v4994 = vadd.f32 %v4802, %v4993
  %v4995 = vpop.f32.mrb[0].mxu0
  %4996 = vmatprep.mubr.bf16.mxu0 0
  %4997 = vmatmul.mubr.bf16.gmra.mrb[0].mxu0 %v4779
  %v4998 = vpop.f32.mrb[0].mxu0
  %v4999 = vadd.f32 %v4802, %v4998
  %v5000 = vpop.f32.mrb[0].mxu0
  %v5001 = vpop.f32.mrb[0].mxu0
  %v5002 = vadd.f32 %v4802, %v5001
  %v5003 = vpop.f32.mrb[0].mxu0
  %5004 = vmatprep.mubr.bf16.mxu0 0
  %5005 = vmatmul.mubr.bf16.gmra.mrb[0].mxu0 %v4780
  %v5006 = vpop.f32.mrb[0].mxu0
  %v5007 = vadd.f32 %v4802, %v5006
  %v5008 = vpop.f32.mrb[0].mxu0
  %v5009 = vpop.f32.mrb[0].mxu0
  %v5010 = vadd.f32 %v4802, %v5009
  %v5011 = vpop.f32.mrb[0].mxu0
  %5012 = vdwg.mxu0
  %v5013 = vmax.f32 %v4887, 0.0
  %v5014 = vmax.f32 %v4890, 0.0
  %v5015 = vmax.f32 %v4895, 0.0
  %v5016 = vmax.f32 %v4898, 0.0
  %v5017 = vmax.f32 %v4903, 0.0
  %v5018 = vmax.f32 %v4906, 0.0
  %v5019 = vmax.f32 %v4911, 0.0
  %v5020 = vmax.f32 %v4914, 0.0
  %v5021 = vmax.f32 %v4919, 0.0
  %v5022 = vmax.f32 %v4922, 0.0
  %v5023 = vmax.f32 %v4927, 0.0
  %v5024 = vmax.f32 %v4930, 0.0
  %v5025 = vmax.f32 %v4935, 0.0
  %v5026 = vmax.f32 %v4938, 0.0
  %v5027 = vmax.f32 %v4943, 0.0
  %v5028 = vmax.f32 %v4946, 0.0
  %v5029 = vmax.f32 %v4951, 0.0
  %v5030 = vmax.f32 %v4954, 0.0
  %v5031 = vmax.f32 %v4959, 0.0
  %v5032 = vmax.f32 %v4962, 0.0
  %v5033 = vmax.f32 %v4967, 0.0
  %v5034 = vmax.f32 %v4970, 0.0
  %v5035 = vmax.f32 %v4975, 0.0
  %v5036 = vmax.f32 %v4978, 0.0
  %v5037 = vmax.f32 %v4983, 0.0
  %v5038 = vmax.f32 %v4986, 0.0
  %v5039 = vmax.f32 %v4991, 0.0
  %v5040 = vmax.f32 %v4994, 0.0
  %v5041 = vmax.f32 %v4999, 0.0
  %v5042 = vmax.f32 %v5002, 0.0
  %v5043 = vmax.f32 %v5007, 0.0
  %v5044 = vmax.f32 %v5010, 0.0
  %v5045 = vpack.c.bf16 %v5014, %v5013
  %v5046 = vpack.c.bf16 %v5016, %v5015
  %v5047 = vpack.c.bf16 %v5018, %v5017
  %v5048 = vpack.c.bf16 %v5020, %v5019
  %v5049 = vpack.c.bf16 %v5022, %v5021
  %v5050 = vpack.c.bf16 %v5024, %v5023
  %v5051 = vpack.c.bf16 %v5026, %v5025
  %v5052 = vpack.c.bf16 %v5028, %v5027
  %v5053 = vpack.c.bf16 %v5030, %v5029
  %v5054 = vpack.c.bf16 %v5032, %v5031
  %v5055 = vpack.c.bf16 %v5034, %v5033
  %v5056 = vpack.c.bf16 %v5036, %v5035
  %v5057 = vpack.c.bf16 %v5038, %v5037
  %v5058 = vpack.c.bf16 %v5040, %v5039
  %v5059 = vpack.c.bf16 %v5042, %v5041
  %v5060 = vpack.c.bf16 %v5044, %v5043
  %v5061 = vld [vmem:[%s2162] sm:$0xf]
  %v5062 = vld [vmem:[%s2162 + $0x4] sm:$0xf]
  %v5063 = vld [vmem:[%s2162 + $0x8] sm:$0xf]
  %v5064 = vld [vmem:[%s2162 + $0xc] sm:$0xf]
  %v5065 = vld [vmem:[%s2162 + $0x10] sm:$0xf]
  %v5066 = vld [vmem:[%s2162 + $0x14] sm:$0xf]
  %v5067 = vld [vmem:[%s2162 + $0x18] sm:$0xf]
  %v5068 = vld [vmem:[%s2162 + $0x1c] sm:$0xf]
  %v5069 = vld [vmem:[%s2162 + $0x20] sm:$0xf]
  %v5070 = vld [vmem:[%s2162 + $0x24] sm:$0xf]
  %v5071 = vld [vmem:[%s2162 + $0x28] sm:$0xf]
  %v5072 = vld [vmem:[%s2162 + $0x2c] sm:$0xf]
  %v5073 = vld [vmem:[%s2162 + $0x30] sm:$0xf]
  %v5074 = vld [vmem:[%s2162 + $0x34] sm:$0xf]
  %v5075 = vld [vmem:[%s2162 + $0x38] sm:$0xf]
  %v5076 = vld [vmem:[%s2162 + $0x3c] sm:$0xf]
  %v5077 = vld [vmem:[%s2179] sm:$0x1]
  %v5079 = vlaneseq
  %v5080 = vshrl.u32 %v5079, 7
  %v5081 = vsub.s32 0, %v5080
  %v5082 = vrot.slane %v5077, %v5081
  %v5100 = vunpack.c.l.b16 %v5061
  %v5101 = vunpack.c.l.b16 %v5062
  %v5102 = vunpack.c.l.b16 %v5063
  %v5103 = vunpack.c.l.b16 %v5064
  %v5104 = vunpack.c.l.b16 %v5065
  %v5105 = vunpack.c.l.b16 %v5066
  %v5106 = vunpack.c.l.b16 %v5067
  %v5107 = vunpack.c.l.b16 %v5068
  %v5108 = vunpack.c.l.b16 %v5069
  %v5109 = vunpack.c.l.b16 %v5070
  %v5110 = vunpack.c.l.b16 %v5071
  %v5111 = vunpack.c.l.b16 %v5072
  %v5112 = vunpack.c.l.b16 %v5073
  %v5113 = vunpack.c.l.b16 %v5074
  %v5114 = vunpack.c.l.b16 %v5075
  %v5115 = vunpack.c.l.b16 %v5076
  %v5116 = vpack.c.b16 %v5101, %v5100
  %v5117 = vpack.c.b16 %v5103, %v5102
  %v5118 = vpack.c.b16 %v5105, %v5104
  %v5119 = vpack.c.b16 %v5107, %v5106
  %v5120 = vpack.c.b16 %v5109, %v5108
  %v5121 = vpack.c.b16 %v5111, %v5110
  %v5122 = vpack.c.b16 %v5113, %v5112
  %v5123 = vpack.c.b16 %v5115, %v5114
  %5132 = vmatprep.subr.bf16.mxu0 0
  %5133 = vmatpush1.bf16.msra.mxu0 %v5116
  %5134 = vmatprep.subr.bf16.mxu0 0
  %5135 = vmatpush1.bf16.msra.mxu0 %v5117
  %5136 = vmatprep.subr.bf16.mxu0 0
  %5137 = vmatpush1.bf16.msra.mxu0 %v5118
  %5138 = vmatprep.subr.bf16.mxu0 0
  %5139 = vmatpush1.bf16.msra.mxu0 %v5119
  %5140 = vmatprep.subr.bf16.mxu0 0
  %5141 = vmatpush1.bf16.msra.mxu0 %v5120
  %5142 = vmatprep.subr.bf16.mxu0 0
  %5143 = vmatpush1.bf16.msra.mxu0 %v5121
  %5144 = vmatprep.subr.bf16.mxu0 0
  %5145 = vmatpush1.bf16.msra.mxu0 %v5122
  %5146 = vmatprep.subr.bf16.mxu0 0
  %5147 = vmatpush1.bf16.msra.mxu0 %v5123
  %5148 = vmatprep.subr.bf16.mxu0 0
  %5149 = vmatpush1.bf16.msra.mxu0 0
  %5150 = vmatprep.subr.bf16.mxu0 0
  %5151 = vmatpush1.bf16.msra.mxu0 0
  %5152 = vmatprep.subr.bf16.mxu0 0
  %5153 = vmatpush1.bf16.msra.mxu0 0
  %5154 = vmatprep.subr.bf16.mxu0 0
  %5155 = vmatpush1.bf16.msra.mxu0 0
  %5156 = vmatprep.subr.bf16.mxu0 0
  %5157 = vmatpush1.bf16.msra.mxu0 0
  %5158 = vmatprep.subr.bf16.mxu0 0
  %5159 = vmatpush1.bf16.msra.mxu0 0
  %5160 = vmatprep.subr.bf16.mxu0 0
  %5161 = vmatpush1.bf16.msra.mxu0 0
  %5162 = vmatprep.subr.bf16.mxu0 0
  %5163 = vmatpush1.bf16.msra.mxu0 0
  %5164 = vmatprep.mubr.bf16.mxu0 0
  %5165 = vmatmul.mubr.bf16.gmra.mrb[0].mxu0 %v5045
  %v5166 = vpop.f32.mrb[0].mxu0
  %v5167 = vadd.f32 %v5082, %v5166
  %v5168 = vpop.f32.mrb[0].mxu0
  %v5169 = vpop.f32.mrb[0].mxu0
  %v5170 = vadd.f32 %v5082, %v5169
  %v5171 = vpop.f32.mrb[0].mxu0
  %5172 = vmatprep.mubr.bf16.mxu0 0
  %5173 = vmatmul.mubr.bf16.gmra.mrb[0].mxu0 %v5046
  %v5174 = vpop.f32.mrb[0].mxu0
  %v5175 = vadd.f32 %v5082, %v5174
  %v5176 = vpop.f32.mrb[0].mxu0
  %v5177 = vpop.f32.mrb[0].mxu0
  %v5178 = vadd.f32 %v5082, %v5177
  %v5179 = vpop.f32.mrb[0].mxu0
  %5180 = vmatprep.mubr.bf16.mxu0 0
  %5181 = vmatmul.mubr.bf16.gmra.mrb[0].mxu0 %v5047
  %v5182 = vpop.f32.mrb[0].mxu0
  %v5183 = vadd.f32 %v5082, %v5182
  %v5184 = vpop.f32.mrb[0].mxu0
  %v5185 = vpop.f32.mrb[0].mxu0
  %v5186 = vadd.f32 %v5082, %v5185
  %v5187 = vpop.f32.mrb[0].mxu0
  %5188 = vmatprep.mubr.bf16.mxu0 0
  %5189 = vmatmul.mubr.bf16.gmra.mrb[0].mxu0 %v5048
  %v5190 = vpop.f32.mrb[0].mxu0
  %v5191 = vadd.f32 %v5082, %v5190
  %v5192 = vpop.f32.mrb[0].mxu0
  %v5193 = vpop.f32.mrb[0].mxu0
  %v5194 = vadd.f32 %v5082, %v5193
  %v5195 = vpop.f32.mrb[0].mxu0
  %5196 = vmatprep.mubr.bf16.mxu0 0
  %5197 = vmatmul.mubr.bf16.gmra.mrb[0].mxu0 %v5049
  %v5198 = vpop.f32.mrb[0].mxu0
  %v5199 = vadd.f32 %v5082, %v5198
  %v5200 = vpop.f32.mrb[0].mxu0
  %v5201 = vpop.f32.mrb[0].mxu0
  %v5202 = vadd.f32 %v5082, %v5201
  %v5203 = vpop.f32.mrb[0].mxu0
  %5204 = vmatprep.mubr.bf16.mxu0 0
  %5205 = vmatmul.mubr.bf16.gmra.mrb[0].mxu0 %v5050
  %v5206 = vpop.f32.mrb[0].mxu0
  %v5207 = vadd.f32 %v5082, %v5206
  %v5208 = vpop.f32.mrb[0].mxu0
  %v5209 = vpop.f32.mrb[0].mxu0
  %v5210 = vadd.f32 %v5082, %v5209
  %v5211 = vpop.f32.mrb[0].mxu0
  %5212 = vmatprep.mubr.bf16.mxu0 0
  %5213 = vmatmul.mubr.bf16.gmra.mrb[0].mxu0 %v5051
  %v5214 = vpop.f32.mrb[0].mxu0
  %v5215 = vadd.f32 %v5082, %v5214
  %v5216 = vpop.f32.mrb[0].mxu0
  %v5217 = vpop.f32.mrb[0].mxu0
  %v5218 = vadd.f32 %v5082, %v5217
  %v5219 = vpop.f32.mrb[0].mxu0
  %5220 = vmatprep.mubr.bf16.mxu0 0
  %5221 = vmatmul.mubr.bf16.gmra.mrb[0].mxu0 %v5052
  %v5222 = vpop.f32.mrb[0].mxu0
  %v5223 = vadd.f32 %v5082, %v5222
  %v5224 = vpop.f32.mrb[0].mxu0
  %v5225 = vpop.f32.mrb[0].mxu0
  %v5226 = vadd.f32 %v5082, %v5225
  %v5227 = vpop.f32.mrb[0].mxu0
  %5228 = vmatprep.mubr.bf16.mxu0 0
  %5229 = vmatmul.mubr.bf16.gmra.mrb[0].mxu0 %v5053
  %v5230 = vpop.f32.mrb[0].mxu0
  %v5231 = vadd.f32 %v5082, %v5230
  %v5232 = vpop.f32.mrb[0].mxu0
  %v5233 = vpop.f32.mrb[0].mxu0
  %v5234 = vadd.f32 %v5082, %v5233
  %v5235 = vpop.f32.mrb[0].mxu0
  %5236 = vmatprep.mubr.bf16.mxu0 0
  %5237 = vmatmul.mubr.bf16.gmra.mrb[0].mxu0 %v5054
  %v5238 = vpop.f32.mrb[0].mxu0
  %v5239 = vadd.f32 %v5082, %v5238
  %v5240 = vpop.f32.mrb[0].mxu0
  %v5241 = vpop.f32.mrb[0].mxu0
  %v5242 = vadd.f32 %v5082, %v5241
  %v5243 = vpop.f32.mrb[0].mxu0
  %5244 = vmatprep.mubr.bf16.mxu0 0
  %5245 = vmatmul.mubr.bf16.gmra.mrb[0].mxu0 %v5055
  %v5246 = vpop.f32.mrb[0].mxu0
  %v5247 = vadd.f32 %v5082, %v5246
  %v5248 = vpop.f32.mrb[0].mxu0
  %v5249 = vpop.f32.mrb[0].mxu0
  %v5250 = vadd.f32 %v5082, %v5249
  %v5251 = vpop.f32.mrb[0].mxu0
  %5252 = vmatprep.mubr.bf16.mxu0 0
  %5253 = vmatmul.mubr.bf16.gmra.mrb[0].mxu0 %v5056
  %v5254 = vpop.f32.mrb[0].mxu0
  %v5255 = vadd.f32 %v5082, %v5254
  %v5256 = vpop.f32.mrb[0].mxu0
  %v5257 = vpop.f32.mrb[0].mxu0
  %v5258 = vadd.f32 %v5082, %v5257
  %v5259 = vpop.f32.mrb[0].mxu0
  %5260 = vmatprep.mubr.bf16.mxu0 0
  %5261 = vmatmul.mubr.bf16.gmra.mrb[0].mxu0 %v5057
  %v5262 = vpop.f32.mrb[0].mxu0
  %v5263 = vadd.f32 %v5082, %v5262
  %v5264 = vpop.f32.mrb[0].mxu0
  %v5265 = vpop.f32.mrb[0].mxu0
  %v5266 = vadd.f32 %v5082, %v5265
  %v5267 = vpop.f32.mrb[0].mxu0
  %5268 = vmatprep.mubr.bf16.mxu0 0
  %5269 = vmatmul.mubr.bf16.gmra.mrb[0].mxu0 %v5058
  %v5270 = vpop.f32.mrb[0].mxu0
  %v5271 = vadd.f32 %v5082, %v5270
  %v5272 = vpop.f32.mrb[0].mxu0
  %v5273 = vpop.f32.mrb[0].mxu0
  %v5274 = vadd.f32 %v5082, %v5273
  %v5275 = vpop.f32.mrb[0].mxu0
  %5276 = vmatprep.mubr.bf16.mxu0 0
  %5277 = vmatmul.mubr.bf16.gmra.mrb[0].mxu0 %v5059
  %v5278 = vpop.f32.mrb[0].mxu0
  %v5279 = vadd.f32 %v5082, %v5278
  %v5280 = vpop.f32.mrb[0].mxu0
  %v5281 = vpop.f32.mrb[0].mxu0
  %v5282 = vadd.f32 %v5082, %v5281
  %v5283 = vpop.f32.mrb[0].mxu0
  %5284 = vmatprep.mubr.bf16.mxu0 0
  %5285 = vmatmul.mubr.bf16.gmra.mrb[0].mxu0 %v5060
  %v5286 = vpop.f32.mrb[0].mxu0
  %v5287 = vadd.f32 %v5082, %v5286
  %v5288 = vpop.f32.mrb[0].mxu0
  %v5289 = vpop.f32.mrb[0].mxu0
  %v5290 = vadd.f32 %v5082, %v5289
  %v5291 = vpop.f32.mrb[0].mxu0
  %5292 = vdwg.mxu0
  %v5293 = vmax.f32 %v5167, 0.0
  %v5294 = vmax.f32 %v5170, 0.0
  %v5295 = vmax.f32 %v5175, 0.0
  %v5296 = vmax.f32 %v5178, 0.0
  %v5297 = vmax.f32 %v5183, 0.0
  %v5298 = vmax.f32 %v5186, 0.0
  %v5299 = vmax.f32 %v5191, 0.0
  %v5300 = vmax.f32 %v5194, 0.0
  %v5301 = vmax.f32 %v5199, 0.0
  %v5302 = vmax.f32 %v5202, 0.0
  %v5303 = vmax.f32 %v5207, 0.0
  %v5304 = vmax.f32 %v5210, 0.0
  %v5305 = vmax.f32 %v5215, 0.0
  %v5306 = vmax.f32 %v5218, 0.0
  %v5307 = vmax.f32 %v5223, 0.0
  %v5308 = vmax.f32 %v5226, 0.0
  %v5309 = vmax.f32 %v5231, 0.0
  %v5310 = vmax.f32 %v5234, 0.0
  %v5311 = vmax.f32 %v5239, 0.0
  %v5312 = vmax.f32 %v5242, 0.0
  %v5313 = vmax.f32 %v5247, 0.0
  %v5314 = vmax.f32 %v5250, 0.0
  %v5315 = vmax.f32 %v5255, 0.0
  %v5316 = vmax.f32 %v5258, 0.0
  %v5317 = vmax.f32 %v5263, 0.0
  %v5318 = vmax.f32 %v5266, 0.0
  %v5319 = vmax.f32 %v5271, 0.0
  %v5320 = vmax.f32 %v5274, 0.0
  %v5321 = vmax.f32 %v5279, 0.0
  %v5322 = vmax.f32 %v5282, 0.0
  %v5323 = vmax.f32 %v5287, 0.0
  %v5324 = vmax.f32 %v5290, 0.0
  %v5325 = vpack.c.bf16 %v5294, %v5293
  %v5326 = vpack.c.bf16 %v5296, %v5295
  %v5327 = vpack.c.bf16 %v5298, %v5297
  %v5328 = vpack.c.bf16 %v5300, %v5299
  %v5329 = vpack.c.bf16 %v5302, %v5301
  %v5330 = vpack.c.bf16 %v5304, %v5303
  %v5331 = vpack.c.bf16 %v5306, %v5305
  %v5332 = vpack.c.bf16 %v5308, %v5307
  %v5333 = vpack.c.bf16 %v5310, %v5309
  %v5334 = vpack.c.bf16 %v5312, %v5311
  %v5335 = vpack.c.bf16 %v5314, %v5313
  %v5336 = vpack.c.bf16 %v5316, %v5315
  %v5337 = vpack.c.bf16 %v5318, %v5317
  %v5338 = vpack.c.bf16 %v5320, %v5319
  %v5339 = vpack.c.bf16 %v5322, %v5321
  %v5340 = vpack.c.bf16 %v5324, %v5323
  %v5341 = vld [vmem:[%s2444] sm:$0xf]
  %v5342 = vld [vmem:[%s2444 + $0x4] sm:$0xf]
  %v5343 = vld [vmem:[%s2444 + $0x8] sm:$0xf]
  %v5344 = vld [vmem:[%s2444 + $0xc] sm:$0xf]
  %v5345 = vld [vmem:[%s2444 + $0x10] sm:$0xf]
  %v5346 = vld [vmem:[%s2444 + $0x14] sm:$0xf]
  %v5347 = vld [vmem:[%s2444 + $0x18] sm:$0xf]
  %v5348 = vld [vmem:[%s2444 + $0x1c] sm:$0xf]
  %v5349 = vld [vmem:[%s2444 + $0x20] sm:$0xf]
  %v5350 = vld [vmem:[%s2444 + $0x24] sm:$0xf]
  %v5351 = vld [vmem:[%s2444 + $0x28] sm:$0xf]
  %v5352 = vld [vmem:[%s2444 + $0x2c] sm:$0xf]
  %v5353 = vld [vmem:[%s2444 + $0x30] sm:$0xf]
  %v5354 = vld [vmem:[%s2444 + $0x34] sm:$0xf]
  %v5355 = vld [vmem:[%s2444 + $0x38] sm:$0xf]
  %v5356 = vld [vmem:[%s2444 + $0x3c] sm:$0xf]
  %v5357 = vld [vmem:[%s2461] sm:$0x1]
  %v5359 = vlaneseq
  %v5360 = vshrl.u32 %v5359, 7
  %v5361 = vsub.s32 0, %v5360
  %v5362 = vrot.slane %v5357, %v5361
  %v5380 = vunpack.c.l.b16 %v5341
  %v5381 = vunpack.c.l.b16 %v5342
  %v5382 = vunpack.c.l.b16 %v5343
  %v5383 = vunpack.c.l.b16 %v5344
  %v5384 = vunpack.c.l.b16 %v5345
  %v5385 = vunpack.c.l.b16 %v5346
  %v5386 = vunpack.c.l.b16 %v5347
  %v5387 = vunpack.c.l.b16 %v5348
  %v5388 = vunpack.c.l.b16 %v5349
  %v5389 = vunpack.c.l.b16 %v5350
  %v5390 = vunpack.c.l.b16 %v5351
  %v5391 = vunpack.c.l.b16 %v5352
  %v5392 = vunpack.c.l.b16 %v5353
  %v5393 = vunpack.c.l.b16 %v5354
  %v5394 = vunpack.c.l.b16 %v5355
  %v5395 = vunpack.c.l.b16 %v5356
  %v5396 = vpack.c.b16 %v5381, %v5380
  %v5397 = vpack.c.b16 %v5383, %v5382
  %v5398 = vpack.c.b16 %v5385, %v5384
  %v5399 = vpack.c.b16 %v5387, %v5386
  %v5400 = vpack.c.b16 %v5389, %v5388
  %v5401 = vpack.c.b16 %v5391, %v5390
  %v5402 = vpack.c.b16 %v5393, %v5392
  %v5403 = vpack.c.b16 %v5395, %v5394
  %5412 = vmatprep.subr.bf16.mxu0 0
  %5413 = vmatpush1.bf16.msra.mxu0 %v5396
  %5414 = vmatprep.subr.bf16.mxu0 0
  %5415 = vmatpush1.bf16.msra.mxu0 %v5397
  %5416 = vmatprep.subr.bf16.mxu0 0
  %5417 = vmatpush1.bf16.msra.mxu0 %v5398
  %5418 = vmatprep.subr.bf16.mxu0 0
  %5419 = vmatpush1.bf16.msra.mxu0 %v5399
  %5420 = vmatprep.subr.bf16.mxu0 0
  %5421 = vmatpush1.bf16.msra.mxu0 %v5400
  %5422 = vmatprep.subr.bf16.mxu0 0
  %5423 = vmatpush1.bf16.msra.mxu0 %v5401
  %5424 = vmatprep.subr.bf16.mxu0 0
  %5425 = vmatpush1.bf16.msra.mxu0 %v5402
  %5426 = vmatprep.subr.bf16.mxu0 0
  %5427 = vmatpush1.bf16.msra.mxu0 %v5403
  %5428 = vmatprep.subr.bf16.mxu0 0
  %5429 = vmatpush1.bf16.msra.mxu0 0
  %5430 = vmatprep.subr.bf16.mxu0 0
  %5431 = vmatpush1.bf16.msra.mxu0 0
  %5432 = vmatprep.subr.bf16.mxu0 0
  %5433 = vmatpush1.bf16.msra.mxu0 0
  %5434 = vmatprep.subr.bf16.mxu0 0
  %5435 = vmatpush1.bf16.msra.mxu0 0
  %5436 = vmatprep.subr.bf16.mxu0 0
  %5437 = vmatpush1.bf16.msra.mxu0 0
  %5438 = vmatprep.subr.bf16.mxu0 0
  %5439 = vmatpush1.bf16.msra.mxu0 0
  %5440 = vmatprep.subr.bf16.mxu0 0
  %5441 = vmatpush1.bf16.msra.mxu0 0
  %5442 = vmatprep.subr.bf16.mxu0 0
  %5443 = vmatpush1.bf16.msra.mxu0 0
  %5444 = vmatprep.mubr.bf16.mxu0 0
  %5445 = vmatmul.mubr.bf16.gmra.mrb[0].mxu0 %v5325
  %v5446 = vpop.f32.mrb[0].mxu0
  %v5447 = vadd.f32 %v5362, %v5446
  %v5448 = vpop.f32.mrb[0].mxu0
  %v5449 = vpop.f32.mrb[0].mxu0
  %v5450 = vadd.f32 %v5362, %v5449
  %v5451 = vpop.f32.mrb[0].mxu0
  %5452 = vmatprep.mubr.bf16.mxu0 0
  %5453 = vmatmul.mubr.bf16.gmra.mrb[0].mxu0 %v5326
  %v5454 = vpop.f32.mrb[0].mxu0
  %v5455 = vadd.f32 %v5362, %v5454
  %v5456 = vpop.f32.mrb[0].mxu0
  %v5457 = vpop.f32.mrb[0].mxu0
  %v5458 = vadd.f32 %v5362, %v5457
  %v5459 = vpop.f32.mrb[0].mxu0
  %5460 = vmatprep.mubr.bf16.mxu0 0
  %5461 = vmatmul.mubr.bf16.gmra.mrb[0].mxu0 %v5327
  %v5462 = vpop.f32.mrb[0].mxu0
  %v5463 = vadd.f32 %v5362, %v5462
  %v5464 = vpop.f32.mrb[0].mxu0
  %v5465 = vpop.f32.mrb[0].mxu0
  %v5466 = vadd.f32 %v5362, %v5465
  %v5467 = vpop.f32.mrb[0].mxu0
  %5468 = vmatprep.mubr.bf16.mxu0 0
  %5469 = vmatmul.mubr.bf16.gmra.mrb[0].mxu0 %v5328
  %v5470 = vpop.f32.mrb[0].mxu0
  %v5471 = vadd.f32 %v5362, %v5470
  %v5472 = vpop.f32.mrb[0].mxu0
  %v5473 = vpop.f32.mrb[0].mxu0
  %v5474 = vadd.f32 %v5362, %v5473
  %v5475 = vpop.f32.mrb[0].mxu0
  %5476 = vmatprep.mubr.bf16.mxu0 0
  %5477 = vmatmul.mubr.bf16.gmra.mrb[0].mxu0 %v5329
  %v5478 = vpop.f32.mrb[0].mxu0
  %v5479 = vadd.f32 %v5362, %v5478
  %v5480 = vpop.f32.mrb[0].mxu0
  %v5481 = vpop.f32.mrb[0].mxu0
  %v5482 = vadd.f32 %v5362, %v5481
  %v5483 = vpop.f32.mrb[0].mxu0
  %5484 = vmatprep.mubr.bf16.mxu0 0
  %5485 = vmatmul.mubr.bf16.gmra.mrb[0].mxu0 %v5330
  %v5486 = vpop.f32.mrb[0].mxu0
  %v5487 = vadd.f32 %v5362, %v5486
  %v5488 = vpop.f32.mrb[0].mxu0
  %v5489 = vpop.f32.mrb[0].mxu0
  %v5490 = vadd.f32 %v5362, %v5489
  %v5491 = vpop.f32.mrb[0].mxu0
  %5492 = vmatprep.mubr.bf16.mxu0 0
  %5493 = vmatmul.mubr.bf16.gmra.mrb[0].mxu0 %v5331
  %v5494 = vpop.f32.mrb[0].mxu0
  %v5495 = vadd.f32 %v5362, %v5494
  %v5496 = vpop.f32.mrb[0].mxu0
  %v5497 = vpop.f32.mrb[0].mxu0
  %v5498 = vadd.f32 %v5362, %v5497
  %v5499 = vpop.f32.mrb[0].mxu0
  %5500 = vmatprep.mubr.bf16.mxu0 0
  %5501 = vmatmul.mubr.bf16.gmra.mrb[0].mxu0 %v5332
  %v5502 = vpop.f32.mrb[0].mxu0
  %v5503 = vadd.f32 %v5362, %v5502
  %v5504 = vpop.f32.mrb[0].mxu0
  %v5505 = vpop.f32.mrb[0].mxu0
  %v5506 = vadd.f32 %v5362, %v5505
  %v5507 = vpop.f32.mrb[0].mxu0
  %5508 = vmatprep.mubr.bf16.mxu0 0
  %5509 = vmatmul.mubr.bf16.gmra.mrb[0].mxu0 %v5333
  %v5510 = vpop.f32.mrb[0].mxu0
  %v5511 = vadd.f32 %v5362, %v5510
  %v5512 = vpop.f32.mrb[0].mxu0
  %v5513 = vpop.f32.mrb[0].mxu0
  %v5514 = vadd.f32 %v5362, %v5513
  %v5515 = vpop.f32.mrb[0].mxu0
  %5516 = vmatprep.mubr.bf16.mxu0 0
  %5517 = vmatmul.mubr.bf16.gmra.mrb[0].mxu0 %v5334
  %v5518 = vpop.f32.mrb[0].mxu0
  %v5519 = vadd.f32 %v5362, %v5518
  %v5520 = vpop.f32.mrb[0].mxu0
  %v5521 = vpop.f32.mrb[0].mxu0
  %v5522 = vadd.f32 %v5362, %v5521
  %v5523 = vpop.f32.mrb[0].mxu0
  %5524 = vmatprep.mubr.bf16.mxu0 0
  %5525 = vmatmul.mubr.bf16.gmra.mrb[0].mxu0 %v5335
  %v5526 = vpop.f32.mrb[0].mxu0
  %v5527 = vadd.f32 %v5362, %v5526
  %v5528 = vpop.f32.mrb[0].mxu0
  %v5529 = vpop.f32.mrb[0].mxu0
  %v5530 = vadd.f32 %v5362, %v5529
  %v5531 = vpop.f32.mrb[0].mxu0
  %5532 = vmatprep.mubr.bf16.mxu0 0
  %5533 = vmatmul.mubr.bf16.gmra.mrb[0].mxu0 %v5336
  %v5534 = vpop.f32.mrb[0].mxu0
  %v5535 = vadd.f32 %v5362, %v5534
  %v5536 = vpop.f32.mrb[0].mxu0
  %v5537 = vpop.f32.mrb[0].mxu0
  %v5538 = vadd.f32 %v5362, %v5537
  %v5539 = vpop.f32.mrb[0].mxu0
  %5540 = vmatprep.mubr.bf16.mxu0 0
  %5541 = vmatmul.mubr.bf16.gmra.mrb[0].mxu0 %v5337
  %v5542 = vpop.f32.mrb[0].mxu0
  %v5543 = vadd.f32 %v5362, %v5542
  %v5544 = vpop.f32.mrb[0].mxu0
  %v5545 = vpop.f32.mrb[0].mxu0
  %v5546 = vadd.f32 %v5362, %v5545
  %v5547 = vpop.f32.mrb[0].mxu0
  %5548 = vmatprep.mubr.bf16.mxu0 0
  %5549 = vmatmul.mubr.bf16.gmra.mrb[0].mxu0 %v5338
  %v5550 = vpop.f32.mrb[0].mxu0
  %v5551 = vadd.f32 %v5362, %v5550
  %v5552 = vpop.f32.mrb[0].mxu0
  %v5553 = vpop.f32.mrb[0].mxu0
  %v5554 = vadd.f32 %v5362, %v5553
  %v5555 = vpop.f32.mrb[0].mxu0
  %5556 = vmatprep.mubr.bf16.mxu0 0
  %5557 = vmatmul.mubr.bf16.gmra.mrb[0].mxu0 %v5339
  %v5558 = vpop.f32.mrb[0].mxu0
  %v5559 = vadd.f32 %v5362, %v5558
  %v5560 = vpop.f32.mrb[0].mxu0
  %v5561 = vpop.f32.mrb[0].mxu0
  %v5562 = vadd.f32 %v5362, %v5561
  %v5563 = vpop.f32.mrb[0].mxu0
  %5564 = vmatprep.mubr.bf16.mxu0 0
  %5565 = vmatmul.mubr.bf16.gmra.mrb[0].mxu0 %v5340
  %v5566 = vpop.f32.mrb[0].mxu0
  %v5567 = vadd.f32 %v5362, %v5566
  %v5568 = vpop.f32.mrb[0].mxu0
  %v5569 = vpop.f32.mrb[0].mxu0
  %v5570 = vadd.f32 %v5362, %v5569
  %v5571 = vpop.f32.mrb[0].mxu0
  %5572 = vdwg.mxu0
  %v5573 = vmax.f32 %v5447, 0.0
  %v5574 = vmax.f32 %v5450, 0.0
  %v5575 = vmax.f32 %v5455, 0.0
  %v5576 = vmax.f32 %v5458, 0.0
  %v5577 = vmax.f32 %v5463, 0.0
  %v5578 = vmax.f32 %v5466, 0.0
  %v5579 = vmax.f32 %v5471, 0.0
  %v5580 = vmax.f32 %v5474, 0.0
  %v5581 = vmax.f32 %v5479, 0.0
  %v5582 = vmax.f32 %v5482, 0.0
  %v5583 = vmax.f32 %v5487, 0.0
  %v5584 = vmax.f32 %v5490, 0.0
  %v5585 = vmax.f32 %v5495, 0.0
  %v5586 = vmax.f32 %v5498, 0.0
  %v5587 = vmax.f32 %v5503, 0.0
  %v5588 = vmax.f32 %v5506, 0.0
  %v5589 = vmax.f32 %v5511, 0.0
  %v5590 = vmax.f32 %v5514, 0.0
  %v5591 = vmax.f32 %v5519, 0.0
  %v5592 = vmax.f32 %v5522, 0.0
  %v5593 = vmax.f32 %v5527, 0.0
  %v5594 = vmax.f32 %v5530, 0.0
  %v5595 = vmax.f32 %v5535, 0.0
  %v5596 = vmax.f32 %v5538, 0.0
  %v5597 = vmax.f32 %v5543, 0.0
  %v5598 = vmax.f32 %v5546, 0.0
  %v5599 = vmax.f32 %v5551, 0.0
  %v5600 = vmax.f32 %v5554, 0.0
  %v5601 = vmax.f32 %v5559, 0.0
  %v5602 = vmax.f32 %v5562, 0.0
  %v5603 = vmax.f32 %v5567, 0.0
  %v5604 = vmax.f32 %v5570, 0.0
  %v5605 = vpack.c.bf16 %v5574, %v5573
  %v5606 = vpack.c.bf16 %v5576, %v5575
  %v5607 = vpack.c.bf16 %v5578, %v5577
  %v5608 = vpack.c.bf16 %v5580, %v5579
  %v5609 = vpack.c.bf16 %v5582, %v5581
  %v5610 = vpack.c.bf16 %v5584, %v5583
  %v5611 = vpack.c.bf16 %v5586, %v5585
  %v5612 = vpack.c.bf16 %v5588, %v5587
  %v5613 = vpack.c.bf16 %v5590, %v5589
  %v5614 = vpack.c.bf16 %v5592, %v5591
  %v5615 = vpack.c.bf16 %v5594, %v5593
  %v5616 = vpack.c.bf16 %v5596, %v5595
  %v5617 = vpack.c.bf16 %v5598, %v5597
  %v5618 = vpack.c.bf16 %v5600, %v5599
  %v5619 = vpack.c.bf16 %v5602, %v5601
  %v5620 = vpack.c.bf16 %v5604, %v5603
  %5621 = vmatprep.subr.bf16.mxu0 0
  %5622 = vmatpush1.bf16.msra.mxu0 %v2764
  %5623 = vmatprep.subr.bf16.mxu0 0
  %5624 = vmatpush1.bf16.msra.mxu0 %v2765
  %5625 = vmatprep.subr.bf16.mxu0 0
  %5626 = vmatpush1.bf16.msra.mxu0 %v2766
  %5627 = vmatprep.subr.bf16.mxu0 0
  %5628 = vmatpush1.bf16.msra.mxu0 %v2767
  %5629 = vmatprep.subr.bf16.mxu0 0
  %5630 = vmatpush1.bf16.msra.mxu0 %v2768
  %5631 = vmatprep.subr.bf16.mxu0 0
  %5632 = vmatpush1.bf16.msra.mxu0 %v2769
  %5633 = vmatprep.subr.bf16.mxu0 0
  %5634 = vmatpush1.bf16.msra.mxu0 %v2770
  %5635 = vmatprep.subr.bf16.mxu0 0
  %5636 = vmatpush1.bf16.msra.mxu0 %v2771
  %5637 = vmatprep.subr.bf16.mxu0 0
  %5638 = vmatpush1.bf16.msra.mxu0 0
  %5639 = vmatprep.subr.bf16.mxu0 0
  %5640 = vmatpush1.bf16.msra.mxu0 0
  %5641 = vmatprep.subr.bf16.mxu0 0
  %5642 = vmatpush1.bf16.msra.mxu0 0
  %5643 = vmatprep.subr.bf16.mxu0 0
  %5644 = vmatpush1.bf16.msra.mxu0 0
  %5645 = vmatprep.subr.bf16.mxu0 0
  %5646 = vmatpush1.bf16.msra.mxu0 0
  %5647 = vmatprep.subr.bf16.mxu0 0
  %5648 = vmatpush1.bf16.msra.mxu0 0
  %5649 = vmatprep.subr.bf16.mxu0 0
  %5650 = vmatpush1.bf16.msra.mxu0 0
  %5651 = vmatprep.subr.bf16.mxu0 0
  %5652 = vmatpush1.bf16.msra.mxu0 0
  %5653 = vmatprep.mubr.bf16.mxu0 0
  %5654 = vmatmul.mubr.bf16.gmra.mrb[0].mxu0 %v5605
  %v5655 = vpop.f32.mrb[0].mxu0
  %v5656 = vadd.f32 %v2730, %v5655
  %v5657 = vpop.f32.mrb[0].mxu0
  %v5658 = vpop.f32.mrb[0].mxu0
  %v5659 = vadd.f32 %v2730, %v5658
  %v5660 = vpop.f32.mrb[0].mxu0
  %5661 = vmatprep.mubr.bf16.mxu0 0
  %5662 = vmatmul.mubr.bf16.gmra.mrb[0].mxu0 %v5606
  %v5663 = vpop.f32.mrb[0].mxu0
  %v5664 = vadd.f32 %v2730, %v5663
  %v5665 = vpop.f32.mrb[0].mxu0
  %v5666 = vpop.f32.mrb[0].mxu0
  %v5667 = vadd.f32 %v2730, %v5666
  %v5668 = vpop.f32.mrb[0].mxu0
  %5669 = vmatprep.mubr.bf16.mxu0 0
  %5670 = vmatmul.mubr.bf16.gmra.mrb[0].mxu0 %v5607
  %v5671 = vpop.f32.mrb[0].mxu0
  %v5672 = vadd.f32 %v2730, %v5671
  %v5673 = vpop.f32.mrb[0].mxu0
  %v5674 = vpop.f32.mrb[0].mxu0
  %v5675 = vadd.f32 %v2730, %v5674
  %v5676 = vpop.f32.mrb[0].mxu0
  %5677 = vmatprep.mubr.bf16.mxu0 0
  %5678 = vmatmul.mubr.bf16.gmra.mrb[0].mxu0 %v5608
  %v5679 = vpop.f32.mrb[0].mxu0
  %v5680 = vadd.f32 %v2730, %v5679
  %v5681 = vpop.f32.mrb[0].mxu0
  %v5682 = vpop.f32.mrb[0].mxu0
  %v5683 = vadd.f32 %v2730, %v5682
  %v5684 = vpop.f32.mrb[0].mxu0
  %5685 = vmatprep.mubr.bf16.mxu0 0
  %5686 = vmatmul.mubr.bf16.gmra.mrb[0].mxu0 %v5609
  %v5687 = vpop.f32.mrb[0].mxu0
  %v5688 = vadd.f32 %v2730, %v5687
  %v5689 = vpop.f32.mrb[0].mxu0
  %v5690 = vpop.f32.mrb[0].mxu0
  %v5691 = vadd.f32 %v2730, %v5690
  %v5692 = vpop.f32.mrb[0].mxu0
  %5693 = vmatprep.mubr.bf16.mxu0 0
  %5694 = vmatmul.mubr.bf16.gmra.mrb[0].mxu0 %v5610
  %v5695 = vpop.f32.mrb[0].mxu0
  %v5696 = vadd.f32 %v2730, %v5695
  %v5697 = vpop.f32.mrb[0].mxu0
  %v5698 = vpop.f32.mrb[0].mxu0
  %v5699 = vadd.f32 %v2730, %v5698
  %v5700 = vpop.f32.mrb[0].mxu0
  %5701 = vmatprep.mubr.bf16.mxu0 0
  %5702 = vmatmul.mubr.bf16.gmra.mrb[0].mxu0 %v5611
  %v5703 = vpop.f32.mrb[0].mxu0
  %v5704 = vadd.f32 %v2730, %v5703
  %v5705 = vpop.f32.mrb[0].mxu0
  %v5706 = vpop.f32.mrb[0].mxu0
  %v5707 = vadd.f32 %v2730, %v5706
  %v5708 = vpop.f32.mrb[0].mxu0
  %5709 = vmatprep.mubr.bf16.mxu0 0
  %5710 = vmatmul.mubr.bf16.gmra.mrb[0].mxu0 %v5612
  %v5711 = vpop.f32.mrb[0].mxu0
  %v5712 = vadd.f32 %v2730, %v5711
  %v5713 = vpop.f32.mrb[0].mxu0
  %v5714 = vpop.f32.mrb[0].mxu0
  %v5715 = vadd.f32 %v2730, %v5714
  %v5716 = vpop.f32.mrb[0].mxu0
  %5717 = vmatprep.mubr.bf16.mxu0 0
  %5718 = vmatmul.mubr.bf16.gmra.mrb[0].mxu0 %v5613
  %v5719 = vpop.f32.mrb[0].mxu0
  %v5720 = vadd.f32 %v2730, %v5719
  %v5721 = vpop.f32.mrb[0].mxu0
  %v5722 = vpop.f32.mrb[0].mxu0
  %v5723 = vadd.f32 %v2730, %v5722
  %v5724 = vpop.f32.mrb[0].mxu0
  %5725 = vmatprep.mubr.bf16.mxu0 0
  %5726 = vmatmul.mubr.bf16.gmra.mrb[0].mxu0 %v5614
  %v5727 = vpop.f32.mrb[0].mxu0
  %v5728 = vadd.f32 %v2730, %v5727
  %v5729 = vpop.f32.mrb[0].mxu0
  %v5730 = vpop.f32.mrb[0].mxu0
  %v5731 = vadd.f32 %v2730, %v5730
  %v5732 = vpop.f32.mrb[0].mxu0
  %5733 = vmatprep.mubr.bf16.mxu0 0
  %5734 = vmatmul.mubr.bf16.gmra.mrb[0].mxu0 %v5615
  %v5735 = vpop.f32.mrb[0].mxu0
  %v5736 = vadd.f32 %v2730, %v5735
  %v5737 = vpop.f32.mrb[0].mxu0
  %v5738 = vpop.f32.mrb[0].mxu0
  %v5739 = vadd.f32 %v2730, %v5738
  %v5740 = vpop.f32.mrb[0].mxu0
  %5741 = vmatprep.mubr.bf16.mxu0 0
  %5742 = vmatmul.mubr.bf16.gmra.mrb[0].mxu0 %v5616
  %v5743 = vpop.f32.mrb[0].mxu0
  %v5744 = vadd.f32 %v2730, %v5743
  %v5745 = vpop.f32.mrb[0].mxu0
  %v5746 = vpop.f32.mrb[0].mxu0
  %v5747 = vadd.f32 %v2730, %v5746
  %v5748 = vpop.f32.mrb[0].mxu0
  %5749 = vmatprep.mubr.bf16.mxu0 0
  %5750 = vmatmul.mubr.bf16.gmra.mrb[0].mxu0 %v5617
  %v5751 = vpop.f32.mrb[0].mxu0
  %v5752 = vadd.f32 %v2730, %v5751
  %v5753 = vpop.f32.mrb[0].mxu0
  %v5754 = vpop.f32.mrb[0].mxu0
  %v5755 = vadd.f32 %v2730, %v5754
  %v5756 = vpop.f32.mrb[0].mxu0
  %5757 = vmatprep.mubr.bf16.mxu0 0
  %5758 = vmatmul.mubr.bf16.gmra.mrb[0].mxu0 %v5618
  %v5759 = vpop.f32.mrb[0].mxu0
  %v5760 = vadd.f32 %v2730, %v5759
  %v5761 = vpop.f32.mrb[0].mxu0
  %v5762 = vpop.f32.mrb[0].mxu0
  %v5763 = vadd.f32 %v2730, %v5762
  %v5764 = vpop.f32.mrb[0].mxu0
  %5765 = vmatprep.mubr.bf16.mxu0 0
  %5766 = vmatmul.mubr.bf16.gmra.mrb[0].mxu0 %v5619
  %v5767 = vpop.f32.mrb[0].mxu0
  %v5768 = vadd.f32 %v2730, %v5767
  %v5769 = vpop.f32.mrb[0].mxu0
  %v5770 = vpop.f32.mrb[0].mxu0
  %v5771 = vadd.f32 %v2730, %v5770
  %v5772 = vpop.f32.mrb[0].mxu0
  %5773 = vmatprep.mubr.bf16.mxu0 0
  %5774 = vmatmul.mubr.bf16.gmra.mrb[0].mxu0 %v5620
  %v5775 = vpop.f32.mrb[0].mxu0
  %v5776 = vadd.f32 %v2730, %v5775
  %v5777 = vpop.f32.mrb[0].mxu0
  %v5778 = vpop.f32.mrb[0].mxu0
  %v5779 = vadd.f32 %v2730, %v5778
  %v5780 = vpop.f32.mrb[0].mxu0
  %5781 = vdwg.mxu0
  %5782 = vst [vmem:[%s7 + $0x100] sm:$0xff] %v5656
  %5783 = vst [vmem:[%s7 + $0x108] sm:$0xff] %v5659
  %5784 = vst [vmem:[%s7 + $0x110] sm:$0xff] %v5664
  %5785 = vst [vmem:[%s7 + $0x118] sm:$0xff] %v5667
  %5786 = vst [vmem:[%s7 + $0x120] sm:$0xff] %v5672
  %5787 = vst [vmem:[%s7 + $0x128] sm:$0xff] %v5675
  %5788 = vst [vmem:[%s7 + $0x130] sm:$0xff] %v5680
  %5789 = vst [vmem:[%s7 + $0x138] sm:$0xff] %v5683
  %5790 = vst [vmem:[%s7 + $0x140] sm:$0xff] %v5688
  %5791 = vst [vmem:[%s7 + $0x148] sm:$0xff] %v5691
  %5792 = vst [vmem:[%s7 + $0x150] sm:$0xff] %v5696
  %5793 = vst [vmem:[%s7 + $0x158] sm:$0xff] %v5699
  %5794 = vst [vmem:[%s7 + $0x160] sm:$0xff] %v5704
  %5795 = vst [vmem:[%s7 + $0x168] sm:$0xff] %v5707
  %5796 = vst [vmem:[%s7 + $0x170] sm:$0xff] %v5712
  %5797 = vst [vmem:[%s7 + $0x178] sm:$0xff] %v5715
  %5798 = vst [vmem:[%s7 + $0x180] sm:$0xff] %v5720
  %5799 = vst [vmem:[%s7 + $0x188] sm:$0xff] %v5723
  %5800 = vst [vmem:[%s7 + $0x190] sm:$0xff] %v5728
  %5801 = vst [vmem:[%s7 + $0x198] sm:$0xff] %v5731
  %5802 = vst [vmem:[%s7 + $0x1a0] sm:$0xff] %v5736
  %5803 = vst [vmem:[%s7 + $0x1a8] sm:$0xff] %v5739
  %5804 = vst [vmem:[%s7 + $0x1b0] sm:$0xff] %v5744
  %5805 = vst [vmem:[%s7 + $0x1b8] sm:$0xff] %v5747
  %5806 = vst [vmem:[%s7 + $0x1c0] sm:$0xff] %v5752
  %5807 = vst [vmem:[%s7 + $0x1c8] sm:$0xff] %v5755
  %5808 = vst [vmem:[%s7 + $0x1d0] sm:$0xff] %v5760
  %5809 = vst [vmem:[%s7 + $0x1d8] sm:$0xff] %v5763
  %5810 = vst [vmem:[%s7 + $0x1e0] sm:$0xff] %v5768
  %5811 = vst [vmem:[%s7 + $0x1e8] sm:$0xff] %v5771
  %5812 = vst [vmem:[%s7 + $0x1f0] sm:$0xff] %v5776
  %5813 = vst [vmem:[%s7 + $0x1f8] sm:$0xff] %v5779
  // Predicated region
  $region30: #{neural_prior_flow.1} parent=0 // pred_check
    _
  $region31: #{neural_prior_flow.1} parent=0 // pred_check_branch
    %5815 = sbr.rel (0) target = $region33
  $region32: #{neural_prior_flow.1} parent=0 // pred_region
    _
  $region33: #{neural_prior_flow.1} parent=0 // pred_fallthru
    _
  // Predicated region
  $region34: #{neural_prior_flow.1} parent=0 // pred_check
    _
  $region35: #{neural_prior_flow.1} parent=0 // pred_check_branch
    %5817 = sbr.rel (0) target = $region37
  $region36: #{neural_prior_flow.1} parent=0 // pred_region
    _
  $region37: #{neural_prior_flow.1} parent=0 // pred_fallthru
    _

</llo_original>
